<compile_context>
chip_gen: v6e
topology: v6e:2x2x1
jax: 0.10.0
libtpu: 0.0.40
codegen_flags: <defaults>
</compile_context>

<pallas_src>
import functools

import jax
import jax.numpy as jnp
from jax.experimental import pallas as pl
from jax.experimental.pallas import tpu as pltpu

BN_EPS = 1e-5
LEAKY_SLOPE = 0.2
V7X_SAFE_VMEM = 48 * 1024 * 1024   # keep working set under this on every gen


# ----------------------------------------------------------------------------
# Fused kernel: grid = (pass, batch_tile)
# ----------------------------------------------------------------------------
def _fused_kernel(x_ref, w1_ref, g1_ref, be1_ref, w2_ref, g2_ref, be2_ref,
                  o_ref,
                  h_ref, z_ref, sum1_ref, sq1_ref, sum2_ref, sq2_ref,
                  sc1_ref, sh1_ref, sc2_ref, sh2_ref,
                  *, batch, tile_b):
    p = pl.program_id(0)          # 0: fc1+stats, 1: bn1+lrelu+fc2+stats, 2: bn2+tanh
    i = pl.program_id(1)          # batch tile index
    row0 = pl.multiple_of(i * tile_b, tile_b)
    rows = pl.ds(row0, tile_b)
    inv_b = 1.0 / batch

    # -------- pass 0: h = x @ W1 (fc1 bias cancelled by BN) + BN1 stats -------
    @pl.when(p == 0)
    def _():
        @pl.when(i == 0)
        def _():
            sum1_ref[...] = jnp.zeros_like(sum1_ref)
            sq1_ref[...] = jnp.zeros_like(sq1_ref)

        h = jnp.dot(x_ref[...].astype(jnp.bfloat16), w1_ref[...],
                    preferred_element_type=jnp.float32)          # [tb, d1] f32
        h_ref[rows, :] = h
        sum1_ref[...] += jnp.sum(h, axis=0, keepdims=True)
        sq1_ref[...] += jnp.sum(h * h, axis=0, keepdims=True)

    # -------- pass 1: BN1 (folded FMA) + LeakyReLU + z = . @ W2 + BN2 stats ---
    @pl.when(p == 1)
    def _():
        @pl.when(i == 0)
        def _():
            # Hoisted: BN1 scale/shift computed once for all batch tiles.
            # NOTE: E[h^2]-E[h]^2 variance form; fine for normalized inputs.
            mean1 = sum1_ref[...] * inv_b
            var1 = sq1_ref[...] * inv_b - mean1 * mean1
            scale1 = g1_ref[...] * jax.lax.rsqrt(var1 + BN_EPS)  # EUP rsqrt
            sc1_ref[...] = scale1
            sh1_ref[...] = be1_ref[...] - mean1 * scale1
            sum2_ref[...] = jnp.zeros_like(sum2_ref)
            sq2_ref[...] = jnp.zeros_like(sq2_ref)

        h = h_ref[rows, :] * sc1_ref[...] + sh1_ref[...]         # single FMA pass
        h = jnp.where(h > 0, h, LEAKY_SLOPE * h)
        z = jnp.dot(h.astype(jnp.bfloat16), w2_ref[...],
                    preferred_element_type=jnp.float32)          # [tb, d2] f32
        z_ref[rows, :] = z
        sum2_ref[...] += jnp.sum(z, axis=0, keepdims=True)
        sq2_ref[...] += jnp.sum(z * z, axis=0, keepdims=True)

    # -------- pass 2: BN2 (folded FMA) + tanh ---------------------------------
    @pl.when(p == 2)
    def _():
        @pl.when(i == 0)
        def _():
            mean2 = sum2_ref[...] * inv_b
            var2 = sq2_ref[...] * inv_b - mean2 * mean2
            scale2 = g2_ref[...] * jax.lax.rsqrt(var2 + BN_EPS)
            sc2_ref[...] = scale2
            sh2_ref[...] = be2_ref[...] - mean2 * scale2

        o_ref[...] = jnp.tanh(z_ref[rows, :] * sc2_ref[...] + sh2_ref[...])


# ----------------------------------------------------------------------------
# Wrapper
# ----------------------------------------------------------------------------
def _pick_tile(b):
    """tb = B for small batches; otherwise the largest nice divisor >= 256."""
    if b <= 512:
        return b
    for t in (1024, 512, 256, 128, 64, 32, 16, 8):
        if b % t == 0:
            return t
    return b


def fc_layers_forward(x, kparams, tile_b=None):
    """x: [B, 2048] f32.  kparams: output of pack_kernel_params (bf16 weights)."""
    B, in_dim = x.shape
    d1 = kparams["w1"].shape[1]
    d2 = kparams["w2"].shape[1]
    tb = tile_b if tile_b is not None else _pick_tile(B)
    assert B % tb == 0, "batch must be divisible by the batch tile"
    if tb != B:
        assert tb % 8 == 0, "batch tile must be a multiple of 8 (sublane)"
    nb = B // tb

    # VMEM budget: resident h/z scratch + double-buffered x/out tiles + weights.
    resident = B * (d1 + d2) * 4
    working = (2 * tb * in_dim * 4          # x tile (f32, double-buffered)
               + 2 * in_dim * d1 * 2        # w1 bf16 (double-buffered)
               + 2 * d1 * d2 * 2            # w2 bf16
               + 2 * tb * d2 * 4            # out tile
               + 16 * (d1 + d2) * 4)        # stats / scale / shift vectors
    est = resident + working
    # TODO(synk): for very large B fall back to an HBM-staged multi-call path
    # with bf16 intermediates instead of the resident VMEM h/z scratch.
    assert est <= V7X_SAFE_VMEM, (
        f"fused path needs ~{est/2**20:.1f} MiB VMEM (> 48 MiB v7x budget)")
    vmem_limit = int(min(max(32 * 1024 * 1024, 2 * est), V7X_SAFE_VMEM))

    # Block index maps: x only streamed on pass 0, output only on pass 2,
    # everything else VMEM-resident (constant index).
    x_map = lambda p, i: (jnp.where(p == 0, i, 0), 0)
    o_map = lambda p, i: (jnp.where(p == 2, i, 0), 0)
    c_map = lambda p, i: (0, 0)

    out = pl.pallas_call(
        functools.partial(_fused_kernel, batch=B, tile_b=tb),
        grid=(3, nb),
        in_specs=[pl.BlockSpec((tb, in_dim), x_map),
                  pl.BlockSpec((in_dim, d1), c_map),
                  pl.BlockSpec((1, d1), c_map),
                  pl.BlockSpec((1, d1), c_map),
                  pl.BlockSpec((d1, d2), c_map),
                  pl.BlockSpec((1, d2), c_map),
                  pl.BlockSpec((1, d2), c_map)],
        out_specs=pl.BlockSpec((tb, d2), o_map),
        out_shape=jax.ShapeDtypeStruct((B, d2), jnp.float32),
        scratch_shapes=[
            pltpu.VMEM((B, d1), jnp.float32),   # h (resident across grid)
            pltpu.VMEM((B, d2), jnp.float32),   # z (resident across grid)
            pltpu.VMEM((1, d1), jnp.float32),   # sum1
            pltpu.VMEM((1, d1), jnp.float32),   # sumsq1
            pltpu.VMEM((1, d2), jnp.float32),   # sum2
            pltpu.VMEM((1, d2), jnp.float32),   # sumsq2
            pltpu.VMEM((1, d1), jnp.float32),   # BN1 scale (hoisted)
            pltpu.VMEM((1, d1), jnp.float32),   # BN1 shift
            pltpu.VMEM((1, d2), jnp.float32),   # BN2 scale
            pltpu.VMEM((1, d2), jnp.float32),   # BN2 shift
        ],
        compiler_params=pltpu.CompilerParams(
            # Both axes sequential: passes depend on each other and the stats
            # accumulators make the batch axis a carried dependency.
            dimension_semantics=("arbitrary", "arbitrary"),
            vmem_limit_bytes=vmem_limit),
    )(x, kparams["w1"], kparams["g1"], kparams["be1"],
      kparams["w2"], kparams["g2"], kparams["be2"])
    return out


# ----------------------------------------------------------------------------
# Params (PyTorch-equivalent init) + kernel-side packing
# ----------------------------------------------------------------------------
def init_params(key, in_dim=2048, conv_dim_1=256, conv_dim_2=128):
    k1, k2, k3, k4 = jax.random.split(key, 4)
    bound1 = 1.0 / jnp.sqrt(in_dim)
    bound2 = 1.0 / jnp.sqrt(conv_dim_1)
    # Linear weights stored pre-transposed: [in, out].
    return {
        "w1": jax.random.uniform(k1, (in_dim, conv_dim_1), jnp.float32,
                                 -bound1, bound1),
        "b1": jax.random.uniform(k2, (1, conv_dim_1), jnp.float32,
                                 -bound1, bound1),
        "g1": jnp.ones((1, conv_dim_1), jnp.float32),    # BN gamma
        "be1": jnp.zeros((1, conv_dim_1), jnp.float32),  # BN beta
        "w2": jax.random.uniform(k3, (conv_dim_1, conv_dim_2), jnp.float32,
                                 -bound2, bound2),
        "b2": jax.random.uniform(k4, (1, conv_dim_2), jnp.float32,
                                 -bound2, bound2),
        "g2": jnp.ones((1, conv_dim_2), jnp.float32),
        "be2": jnp.zeros((1, conv_dim_2), jnp.float32),
    }


def pack_kernel_params(p):
    """One-time wrapper-side packing: bf16 MXU weights; fc biases are not
    needed by the kernel (exactly cancelled by training-mode BN)."""
    kp = dict(p)
    kp["w1"] = p["w1"].astype(jnp.bfloat16)
    kp["w2"] = p["w2"].astype(jnp.bfloat16)
    return kp


# ----------------------------------------------------------------------------
# Pure-JAX f32 reference (exact PyTorch semantics, biases included)
# ----------------------------------------------------------------------------
def reference_forward(x, p):
    h = x @ p["w1"] + p["b1"]
    m = h.mean(0, keepdims=True)
    v = ((h - m) ** 2).mean(0, keepdims=True)
    h = (h - m) / jnp.sqrt(v + BN_EPS) * p["g1"] + p["be1"]
    h = jnp.where(h > 0, h, LEAKY_SLOPE * h)
    z = h @ p["w2"] + p["b2"]
    m2 = z.mean(0, keepdims=True)
    v2 = ((z - m2) ** 2).mean(0, keepdims=True)
    z = (z - m2) / jnp.sqrt(v2 + BN_EPS) * p["g2"] + p["be2"]
    return jnp.tanh(z)


if __name__ == "__main__":
    key = jax.random.PRNGKey(0)
    kx, kp = jax.random.split(key)

    B, IN_DIM, D1, D2 = 512, 2048, 256, 128
    x = jax.random.normal(kx, (B, IN_DIM), jnp.float32)
    params = init_params(kp, IN_DIM, D1, D2)
    kparams = pack_kernel_params(params)

    # tile_b=256 -> 2 batch tiles per pass: exercises the multi-tile BN-stat
    # accumulation while keeping the MXU-friendly >=256-row tile.
    out = fc_layers_forward(x, kparams, tile_b=256)
    out = jax.block_until_ready(out)

    ref = reference_forward(x, params)
    assert out.shape == (B, D2)
    # bf16 MXU inputs + sum/sumsq BN statistics vs f32 reference -> loose tol.
    assert jnp.allclose(out, ref, atol=5e-2), float(jnp.max(jnp.abs(out - ref)))

    print("KERNEL_OK")
</pallas_src>

<mosaic_0001>
module attributes {stable_mosaic.version = 11 : i64} {
  func.func @_fused_kernel(%arg0: i32, %arg1: i32, %arg2: memref<256x2048xf32, #tpu.memory_space<vmem>>, %arg3: memref<2048x256xbf16, #tpu.memory_space<vmem>>, %arg4: memref<1x256xf32, #tpu.memory_space<vmem>>, %arg5: memref<1x256xf32, #tpu.memory_space<vmem>>, %arg6: memref<256x128xbf16, #tpu.memory_space<vmem>>, %arg7: memref<1x128xf32, #tpu.memory_space<vmem>>, %arg8: memref<1x128xf32, #tpu.memory_space<vmem>>, %arg9: memref<256x128xf32, #tpu.memory_space<vmem>>, %arg10: memref<512x256xf32, #tpu.memory_space<vmem>>, %arg11: memref<512x128xf32, #tpu.memory_space<vmem>>, %arg12: memref<1x256xf32, #tpu.memory_space<vmem>>, %arg13: memref<1x256xf32, #tpu.memory_space<vmem>>, %arg14: memref<1x128xf32, #tpu.memory_space<vmem>>, %arg15: memref<1x128xf32, #tpu.memory_space<vmem>>, %arg16: memref<1x256xf32, #tpu.memory_space<vmem>>, %arg17: memref<1x256xf32, #tpu.memory_space<vmem>>, %arg18: memref<1x128xf32, #tpu.memory_space<vmem>>, %arg19: memref<1x128xf32, #tpu.memory_space<vmem>>) attributes {dimension_semantics = [#tpu.dimension_semantics<arbitrary>, #tpu.dimension_semantics<arbitrary>], iteration_bounds = array<i64: 3, 2>, scalar_prefetch = 0 : i64, scratch_operands = 10 : i64, tpu.core_type = #tpu.core_type<tc>, window_params = [{transform_indices = @transform_0, window_bounds = array<i64: 256, 2048>}, {pipeline_mode = #tpu.pipeline_mode<synchronous>, transform_indices = @transform_1, window_bounds = array<i64: 2048, 256>}, {pipeline_mode = #tpu.pipeline_mode<synchronous>, transform_indices = @transform_2, window_bounds = array<i64: 1, 256>}, {pipeline_mode = #tpu.pipeline_mode<synchronous>, transform_indices = @transform_3, window_bounds = array<i64: 1, 256>}, {pipeline_mode = #tpu.pipeline_mode<synchronous>, transform_indices = @transform_4, window_bounds = array<i64: 256, 128>}, {pipeline_mode = #tpu.pipeline_mode<synchronous>, transform_indices = @transform_5, window_bounds = array<i64: 1, 128>}, {pipeline_mode = #tpu.pipeline_mode<synchronous>, transform_indices = @transform_6, window_bounds = array<i64: 1, 128>}, {transform_indices = @transform_7, window_bounds = array<i64: 256, 128>}]} {
    %c256_i32 = arith.constant 256 : i32
    %0 = arith.muli %arg1, %c256_i32 : i32
    %1 = tpu.assume_multiple %0, 256 : i32
    %c0_i32 = arith.constant 0 : i32
    %2 = arith.cmpi eq, %arg0, %c0_i32 : i32
    %3 = arith.extui %2 : i1 to i32
    %c0_i32_0 = arith.constant 0 : i32
    %4 = arith.cmpi ne, %3, %c0_i32_0 : i32
    scf.if %4 {
      %c0_i32_3 = arith.constant 0 : i32
      %11 = arith.cmpi eq, %arg1, %c0_i32_3 : i32
      %12 = arith.extui %11 : i1 to i32
      %c0_i32_4 = arith.constant 0 : i32
      %13 = arith.cmpi ne, %12, %c0_i32_4 : i32
      scf.if %13 {
        %cst_19 = arith.constant 0.000000e+00 : f32
        %31 = vector.broadcast %cst_19 : f32 to vector<1x256xf32>
        %c0_20 = arith.constant 0 : index
        %c0_21 = arith.constant 0 : index
        %32 = vector.load %arg12[%c0_20, %c0_21] : memref<1x256xf32, #tpu.memory_space<vmem>>, vector<1x256xf32>
        tpu.vector_store %arg12[%c0_20, %c0_21], %31 {strides = array<i32>} : memref<1x256xf32, #tpu.memory_space<vmem>>, vector<1x256xf32>,
        %cst_22 = arith.constant 0.000000e+00 : f32
        %33 = vector.broadcast %cst_22 : f32 to vector<1x256xf32>
        %c0_23 = arith.constant 0 : index
        %c0_24 = arith.constant 0 : index
        %34 = vector.load %arg13[%c0_23, %c0_24] : memref<1x256xf32, #tpu.memory_space<vmem>>, vector<1x256xf32>
        tpu.vector_store %arg13[%c0_23, %c0_24], %33 {strides = array<i32>} : memref<1x256xf32, #tpu.memory_space<vmem>>, vector<1x256xf32>,
      } else {
      }
      %c0 = arith.constant 0 : index
      %c0_5 = arith.constant 0 : index
      %14 = vector.load %arg2[%c0, %c0_5] : memref<256x2048xf32, #tpu.memory_space<vmem>>, vector<256x2048xf32>
      %15 = arith.truncf %14 : vector<256x2048xf32> to vector<256x2048xbf16>
      %c0_6 = arith.constant 0 : index
      %c0_7 = arith.constant 0 : index
      %16 = vector.load %arg3[%c0_6, %c0_7] : memref<2048x256xbf16, #tpu.memory_space<vmem>>, vector<2048x256xbf16>
      %cst = arith.constant dense<0.000000e+00> : vector<256x256xf32>
      %17 = tpu.matmul %15, %16, %cst {dimension_numbers = #tpu.dot_dimension_numbers<[1], [0], [0], [1], [0, 0, 1, 1], [], []>} : vector<256x2048xbf16>, vector<2048x256xbf16>, vector<256x256xf32> -> vector<256x256xf32>
      %18 = arith.index_cast %1 : i32 to index
      %c0_8 = arith.constant 0 : index
      %19 = vector.load %arg10[%18, %c0_8] : memref<512x256xf32, #tpu.memory_space<vmem>>, vector<256x256xf32>
      tpu.vector_store %arg10[%18, %c0_8], %17 {strides = array<i32>} : memref<512x256xf32, #tpu.memory_space<vmem>>, vector<256x256xf32>,
      %c0_9 = arith.constant 0 : index
      %c0_10 = arith.constant 0 : index
      %20 = vector.load %arg12[%c0_9, %c0_10] : memref<1x256xf32, #tpu.memory_space<vmem>>, vector<1x256xf32>
      %cst_11 = arith.constant dense<0.000000e+00> : vector<256xf32>
      %21 = vector.multi_reduction <add>, %17, %cst_11 [0] : vector<256x256xf32> to vector<256xf32>
      %22 = vector.shape_cast %21 : vector<256xf32> to vector<1x256xf32>
      %23 = arith.addf %20, %22 : vector<1x256xf32>
      %c0_12 = arith.constant 0 : index
      %c0_13 = arith.constant 0 : index
      %24 = vector.load %arg12[%c0_12, %c0_13] : memref<1x256xf32, #tpu.memory_space<vmem>>, vector<1x256xf32>
      tpu.vector_store %arg12[%c0_12, %c0_13], %23 {strides = array<i32>} : memref<1x256xf32, #tpu.memory_space<vmem>>, vector<1x256xf32>,
      %c0_14 = arith.constant 0 : index
      %c0_15 = arith.constant 0 : index
      %25 = vector.load %arg13[%c0_14, %c0_15] : memref<1x256xf32, #tpu.memory_space<vmem>>, vector<1x256xf32>
      %26 = arith.mulf %17, %17 : vector<256x256xf32>
      %cst_16 = arith.constant dense<0.000000e+00> : vector<256xf32>
      %27 = vector.multi_reduction <add>, %26, %cst_16 [0] : vector<256x256xf32> to vector<256xf32>
      %28 = vector.shape_cast %27 : vector<256xf32> to vector<1x256xf32>
      %29 = arith.addf %25, %28 : vector<1x256xf32>
      %c0_17 = arith.constant 0 : index
      %c0_18 = arith.constant 0 : index
      %30 = vector.load %arg13[%c0_17, %c0_18] : memref<1x256xf32, #tpu.memory_space<vmem>>, vector<1x256xf32>
      tpu.vector_store %arg13[%c0_17, %c0_18], %29 {strides = array<i32>} : memref<1x256xf32, #tpu.memory_space<vmem>>, vector<1x256xf32>,
    } else {
    }
    %c1_i32 = arith.constant 1 : i32
    %5 = arith.cmpi eq, %arg0, %c1_i32 : i32
    %6 = arith.extui %5 : i1 to i32
    %c0_i32_1 = arith.constant 0 : i32
    %7 = arith.cmpi ne, %6, %c0_i32_1 : i32
    scf.if %7 {
      %c0_i32_3 = arith.constant 0 : i32
      %11 = arith.cmpi eq, %arg1, %c0_i32_3 : i32
      %12 = arith.extui %11 : i1 to i32
      %c0_i32_4 = arith.constant 0 : i32
      %13 = arith.cmpi ne, %12, %c0_i32_4 : i32
      scf.if %13 {
        %c0_24 = arith.constant 0 : index
        %c0_25 = arith.constant 0 : index
        %43 = vector.load %arg12[%c0_24, %c0_25] : memref<1x256xf32, #tpu.memory_space<vmem>>, vector<1x256xf32>
        %cst_26 = arith.constant 0.001953125 : f32
        %44 = vector.broadcast %cst_26 : f32 to vector<1x256xf32>
        %45 = arith.mulf %43, %44 : vector<1x256xf32>
        %c0_27 = arith.constant 0 : index
        %c0_28 = arith.constant 0 : index
        %46 = vector.load %arg13[%c0_27, %c0_28] : memref<1x256xf32, #tpu.memory_space<vmem>>, vector<1x256xf32>
        %cst_29 = arith.constant 0.001953125 : f32
        %47 = vector.broadcast %cst_29 : f32 to vector<1x256xf32>
        %48 = arith.mulf %46, %47 : vector<1x256xf32>
        %49 = arith.mulf %45, %45 : vector<1x256xf32>
        %50 = arith.subf %48, %49 : vector<1x256xf32>
        %c0_30 = arith.constant 0 : index
        %c0_31 = arith.constant 0 : index
        %51 = vector.load %arg4[%c0_30, %c0_31] : memref<1x256xf32, #tpu.memory_space<vmem>>, vector<1x256xf32>
        %cst_32 = arith.constant 9.99999974E-6 : f32
        %52 = vector.broadcast %cst_32 : f32 to vector<1x256xf32>
        %53 = arith.addf %50, %52 : vector<1x256xf32>
        %54 = math.rsqrt %53 : vector<1x256xf32>
        %55 = arith.mulf %51, %54 : vector<1x256xf32>
        %c0_33 = arith.constant 0 : index
        %c0_34 = arith.constant 0 : index
        %56 = vector.load %arg16[%c0_33, %c0_34] : memref<1x256xf32, #tpu.memory_space<vmem>>, vector<1x256xf32>
        tpu.vector_store %arg16[%c0_33, %c0_34], %55 {strides = array<i32>} : memref<1x256xf32, #tpu.memory_space<vmem>>, vector<1x256xf32>,
        %c0_35 = arith.constant 0 : index
        %c0_36 = arith.constant 0 : index
        %57 = vector.load %arg5[%c0_35, %c0_36] : memref<1x256xf32, #tpu.memory_space<vmem>>, vector<1x256xf32>
        %58 = arith.mulf %45, %55 : vector<1x256xf32>
        %59 = arith.subf %57, %58 : vector<1x256xf32>
        %c0_37 = arith.constant 0 : index
        %c0_38 = arith.constant 0 : index
        %60 = vector.load %arg17[%c0_37, %c0_38] : memref<1x256xf32, #tpu.memory_space<vmem>>, vector<1x256xf32>
        tpu.vector_store %arg17[%c0_37, %c0_38], %59 {strides = array<i32>} : memref<1x256xf32, #tpu.memory_space<vmem>>, vector<1x256xf32>,
        %cst_39 = arith.constant 0.000000e+00 : f32
        %61 = vector.broadcast %cst_39 : f32 to vector<1x128xf32>
        %c0_40 = arith.constant 0 : index
        %c0_41 = arith.constant 0 : index
        %62 = vector.load %arg14[%c0_40, %c0_41] : memref<1x128xf32, #tpu.memory_space<vmem>>, vector<1x128xf32>
        tpu.vector_store %arg14[%c0_40, %c0_41], %61 {strides = array<i32>} : memref<1x128xf32, #tpu.memory_space<vmem>>, vector<1x128xf32>,
        %cst_42 = arith.constant 0.000000e+00 : f32
        %63 = vector.broadcast %cst_42 : f32 to vector<1x128xf32>
        %c0_43 = arith.constant 0 : index
        %c0_44 = arith.constant 0 : index
        %64 = vector.load %arg15[%c0_43, %c0_44] : memref<1x128xf32, #tpu.memory_space<vmem>>, vector<1x128xf32>
        tpu.vector_store %arg15[%c0_43, %c0_44], %63 {strides = array<i32>} : memref<1x128xf32, #tpu.memory_space<vmem>>, vector<1x128xf32>,
      } else {
      }
      %14 = arith.index_cast %1 : i32 to index
      %c0 = arith.constant 0 : index
      %15 = vector.load %arg10[%14, %c0] : memref<512x256xf32, #tpu.memory_space<vmem>>, vector<256x256xf32>
      %c0_5 = arith.constant 0 : index
      %c0_6 = arith.constant 0 : index
      %16 = vector.load %arg16[%c0_5, %c0_6] : memref<1x256xf32, #tpu.memory_space<vmem>>, vector<1x256xf32>
      %17 = vector.broadcast %16 : vector<1x256xf32> to vector<256x256xf32>
      %18 = arith.mulf %15, %17 : vector<256x256xf32>
      %c0_7 = arith.constant 0 : index
      %c0_8 = arith.constant 0 : index
      %19 = vector.load %arg17[%c0_7, %c0_8] : memref<1x256xf32, #tpu.memory_space<vmem>>, vector<1x256xf32>
      %20 = vector.broadcast %19 : vector<1x256xf32> to vector<256x256xf32>
      %21 = arith.addf %18, %20 : vector<256x256xf32>
      %cst = arith.constant 0.000000e+00 : f32
      %22 = vector.broadcast %cst : f32 to vector<256x256xf32>
      %23 = arith.cmpf ogt, %21, %22 : vector<256x256xf32>
      %cst_9 = arith.constant 2.000000e-01 : f32
      %24 = vector.broadcast %cst_9 : f32 to vector<256x256xf32>
      %25 = arith.mulf %24, %21 : vector<256x256xf32>
      %26 = arith.select %23, %21, %25 : vector<256x256xi1>, vector<256x256xf32>
      %27 = arith.truncf %26 : vector<256x256xf32> to vector<256x256xbf16>
      %c0_10 = arith.constant 0 : index
      %c0_11 = arith.constant 0 : index
      %28 = vector.load %arg6[%c0_10, %c0_11] : memref<256x128xbf16, #tpu.memory_space<vmem>>, vector<256x128xbf16>
      %cst_12 = arith.constant dense<0.000000e+00> : vector<256x128xf32>
      %29 = tpu.matmul %27, %28, %cst_12 {dimension_numbers = #tpu.dot_dimension_numbers<[1], [0], [0], [1], [0, 0, 1, 1], [], []>} : vector<256x256xbf16>, vector<256x128xbf16>, vector<256x128xf32> -> vector<256x128xf32>
      %30 = arith.index_cast %1 : i32 to index
      %c0_13 = arith.constant 0 : index
      %31 = vector.load %arg11[%30, %c0_13] : memref<512x128xf32, #tpu.memory_space<vmem>>, vector<256x128xf32>
      tpu.vector_store %arg11[%30, %c0_13], %29 {strides = array<i32>} : memref<512x128xf32, #tpu.memory_space<vmem>>, vector<256x128xf32>,
      %c0_14 = arith.constant 0 : index
      %c0_15 = arith.constant 0 : index
      %32 = vector.load %arg14[%c0_14, %c0_15] : memref<1x128xf32, #tpu.memory_space<vmem>>, vector<1x128xf32>
      %cst_16 = arith.constant dense<0.000000e+00> : vector<128xf32>
      %33 = vector.multi_reduction <add>, %29, %cst_16 [0] : vector<256x128xf32> to vector<128xf32>
      %34 = vector.shape_cast %33 : vector<128xf32> to vector<1x128xf32>
      %35 = arith.addf %32, %34 : vector<1x128xf32>
      %c0_17 = arith.constant 0 : index
      %c0_18 = arith.constant 0 : index
      %36 = vector.load %arg14[%c0_17, %c0_18] : memref<1x128xf32, #tpu.memory_space<vmem>>, vector<1x128xf32>
      tpu.vector_store %arg14[%c0_17, %c0_18], %35 {strides = array<i32>} : memref<1x128xf32, #tpu.memory_space<vmem>>, vector<1x128xf32>,
      %c0_19 = arith.constant 0 : index
      %c0_20 = arith.constant 0 : index
      %37 = vector.load %arg15[%c0_19, %c0_20] : memref<1x128xf32, #tpu.memory_space<vmem>>, vector<1x128xf32>
      %38 = arith.mulf %29, %29 : vector<256x128xf32>
      %cst_21 = arith.constant dense<0.000000e+00> : vector<128xf32>
      %39 = vector.multi_reduction <add>, %38, %cst_21 [0] : vector<256x128xf32> to vector<128xf32>
      %40 = vector.shape_cast %39 : vector<128xf32> to vector<1x128xf32>
      %41 = arith.addf %37, %40 : vector<1x128xf32>
      %c0_22 = arith.constant 0 : index
      %c0_23 = arith.constant 0 : index
      %42 = vector.load %arg15[%c0_22, %c0_23] : memref<1x128xf32, #tpu.memory_space<vmem>>, vector<1x128xf32>
      tpu.vector_store %arg15[%c0_22, %c0_23], %41 {strides = array<i32>} : memref<1x128xf32, #tpu.memory_space<vmem>>, vector<1x128xf32>,
    } else {
    }
    %c2_i32 = arith.constant 2 : i32
    %8 = arith.cmpi eq, %arg0, %c2_i32 : i32
    %9 = arith.extui %8 : i1 to i32
    %c0_i32_2 = arith.constant 0 : i32
    %10 = arith.cmpi ne, %9, %c0_i32_2 : i32
    scf.if %10 {
      %c0_i32_3 = arith.constant 0 : i32
      %11 = arith.cmpi eq, %arg1, %c0_i32_3 : i32
      %12 = arith.extui %11 : i1 to i32
      %c0_i32_4 = arith.constant 0 : i32
      %13 = arith.cmpi ne, %12, %c0_i32_4 : i32
      scf.if %13 {
        %c0_11 = arith.constant 0 : index
        %c0_12 = arith.constant 0 : index
        %24 = vector.load %arg14[%c0_11, %c0_12] : memref<1x128xf32, #tpu.memory_space<vmem>>, vector<1x128xf32>
        %cst = arith.constant 0.001953125 : f32
        %25 = vector.broadcast %cst : f32 to vector<1x128xf32>
        %26 = arith.mulf %24, %25 : vector<1x128xf32>
        %c0_13 = arith.constant 0 : index
        %c0_14 = arith.constant 0 : index
        %27 = vector.load %arg15[%c0_13, %c0_14] : memref<1x128xf32, #tpu.memory_space<vmem>>, vector<1x128xf32>
        %cst_15 = arith.constant 0.001953125 : f32
        %28 = vector.broadcast %cst_15 : f32 to vector<1x128xf32>
        %29 = arith.mulf %27, %28 : vector<1x128xf32>
        %30 = arith.mulf %26, %26 : vector<1x128xf32>
        %31 = arith.subf %29, %30 : vector<1x128xf32>
        %c0_16 = arith.constant 0 : index
        %c0_17 = arith.constant 0 : index
        %32 = vector.load %arg7[%c0_16, %c0_17] : memref<1x128xf32, #tpu.memory_space<vmem>>, vector<1x128xf32>
        %cst_18 = arith.constant 9.99999974E-6 : f32
        %33 = vector.broadcast %cst_18 : f32 to vector<1x128xf32>
        %34 = arith.addf %31, %33 : vector<1x128xf32>
        %35 = math.rsqrt %34 : vector<1x128xf32>
        %36 = arith.mulf %32, %35 : vector<1x128xf32>
        %c0_19 = arith.constant 0 : index
        %c0_20 = arith.constant 0 : index
        %37 = vector.load %arg18[%c0_19, %c0_20] : memref<1x128xf32, #tpu.memory_space<vmem>>, vector<1x128xf32>
        tpu.vector_store %arg18[%c0_19, %c0_20], %36 {strides = array<i32>} : memref<1x128xf32, #tpu.memory_space<vmem>>, vector<1x128xf32>,
        %c0_21 = arith.constant 0 : index
        %c0_22 = arith.constant 0 : index
        %38 = vector.load %arg8[%c0_21, %c0_22] : memref<1x128xf32, #tpu.memory_space<vmem>>, vector<1x128xf32>
        %39 = arith.mulf %26, %36 : vector<1x128xf32>
        %40 = arith.subf %38, %39 : vector<1x128xf32>
        %c0_23 = arith.constant 0 : index
        %c0_24 = arith.constant 0 : index
        %41 = vector.load %arg19[%c0_23, %c0_24] : memref<1x128xf32, #tpu.memory_space<vmem>>, vector<1x128xf32>
        tpu.vector_store %arg19[%c0_23, %c0_24], %40 {strides = array<i32>} : memref<1x128xf32, #tpu.memory_space<vmem>>, vector<1x128xf32>,
      } else {
      }
      %14 = arith.index_cast %1 : i32 to index
      %c0 = arith.constant 0 : index
      %15 = vector.load %arg11[%14, %c0] : memref<512x128xf32, #tpu.memory_space<vmem>>, vector<256x128xf32>
      %c0_5 = arith.constant 0 : index
      %c0_6 = arith.constant 0 : index
      %16 = vector.load %arg18[%c0_5, %c0_6] : memref<1x128xf32, #tpu.memory_space<vmem>>, vector<1x128xf32>
      %17 = vector.broadcast %16 : vector<1x128xf32> to vector<256x128xf32>
      %18 = arith.mulf %15, %17 : vector<256x128xf32>
      %c0_7 = arith.constant 0 : index
      %c0_8 = arith.constant 0 : index
      %19 = vector.load %arg19[%c0_7, %c0_8] : memref<1x128xf32, #tpu.memory_space<vmem>>, vector<1x128xf32>
      %20 = vector.broadcast %19 : vector<1x128xf32> to vector<256x128xf32>
      %21 = arith.addf %18, %20 : vector<256x128xf32>
      %22 = math.tanh %21 : vector<256x128xf32>
      %c0_9 = arith.constant 0 : index
      %c0_10 = arith.constant 0 : index
      %23 = vector.load %arg9[%c0_9, %c0_10] : memref<256x128xf32, #tpu.memory_space<vmem>>, vector<256x128xf32>
      tpu.vector_store %arg9[%c0_9, %c0_10], %22 {strides = array<i32>} : memref<256x128xf32, #tpu.memory_space<vmem>>, vector<256x128xf32>,
    } else {
    }
    return
  }
  func.func @transform_0(%arg0: i32, %arg1: i32) -> (i32, i32) {
    %c0_i32 = arith.constant 0 : i32
    %0 = arith.cmpi eq, %arg0, %c0_i32 : i32
    %c0_i32_0 = arith.constant 0 : i32
    %1 = arith.select %0, %arg1, %c0_i32_0 : i32
    %c0_i32_1 = arith.constant 0 : i32
    %c0_i32_2 = arith.constant 0 : i32
    return %1, %c0_i32_1 : i32, i32
  }
  func.func @transform_1(%arg0: i32, %arg1: i32) -> (i32, i32) {
    %c0_i32 = arith.constant 0 : i32
    %c0_i32_0 = arith.constant 0 : i32
    %c0_i32_1 = arith.constant 0 : i32
    return %c0_i32, %c0_i32_0 : i32, i32
  }
  func.func @transform_2(%arg0: i32, %arg1: i32) -> (i32, i32) {
    %c0_i32 = arith.constant 0 : i32
    %c0_i32_0 = arith.constant 0 : i32
    %c0_i32_1 = arith.constant 0 : i32
    return %c0_i32, %c0_i32_0 : i32, i32
  }
  func.func @transform_3(%arg0: i32, %arg1: i32) -> (i32, i32) {
    %c0_i32 = arith.constant 0 : i32
    %c0_i32_0 = arith.constant 0 : i32
    %c0_i32_1 = arith.constant 0 : i32
    return %c0_i32, %c0_i32_0 : i32, i32
  }
  func.func @transform_4(%arg0: i32, %arg1: i32) -> (i32, i32) {
    %c0_i32 = arith.constant 0 : i32
    %c0_i32_0 = arith.constant 0 : i32
    %c0_i32_1 = arith.constant 0 : i32
    return %c0_i32, %c0_i32_0 : i32, i32
  }
  func.func @transform_5(%arg0: i32, %arg1: i32) -> (i32, i32) {
    %c0_i32 = arith.constant 0 : i32
    %c0_i32_0 = arith.constant 0 : i32
    %c0_i32_1 = arith.constant 0 : i32
    return %c0_i32, %c0_i32_0 : i32, i32
  }
  func.func @transform_6(%arg0: i32, %arg1: i32) -> (i32, i32) {
    %c0_i32 = arith.constant 0 : i32
    %c0_i32_0 = arith.constant 0 : i32
    %c0_i32_1 = arith.constant 0 : i32
    return %c0_i32, %c0_i32_0 : i32, i32
  }
  func.func @transform_7(%arg0: i32, %arg1: i32) -> (i32, i32) {
    %c2_i32 = arith.constant 2 : i32
    %0 = arith.cmpi eq, %arg0, %c2_i32 : i32
    %c0_i32 = arith.constant 0 : i32
    %1 = arith.select %0, %arg1, %c0_i32 : i32
    %c0_i32_0 = arith.constant 0 : i32
    %c0_i32_1 = arith.constant 0 : i32
    return %1, %c0_i32_0 : i32, i32
  }
}

</mosaic_0001>

<llo_original>
// kernel: tpu_custom_call.1
$region0: #{tpu_custom_call.1}
  #allocation0 [shape = 'u32[]', space=smem, size = 0x4, offset = 0x4, fixed_abs, tag = 'smem constant byte address 0x4 - core index']
  #allocation1 [shape = 'u32[144,128]{1,0:T(1,128)}', space=vmem, size = 0x12000, scoped, tag = 'internal scratch']
  #allocation2 [shape = 'f32[512,256]{1,0:T(8,128)}', space=vmem, size = 0x80000, scoped, tag = 'scratch operand']
  #allocation3 [shape = 'f32[512,128]{1,0:T(8,128)}', space=vmem, size = 0x40000, scoped, tag = 'scratch operand']
  #allocation4 [shape = 'f32[1,256]{1,0:T(1,128)}', space=vmem, size = 0x400, scoped, tag = 'scratch operand']
  #allocation5 [shape = 'f32[1,256]{1,0:T(1,128)}', space=vmem, size = 0x400, scoped, tag = 'scratch operand']
  #allocation6 [shape = 'f32[1,128]{1,0:T(1,128)}', space=vmem, size = 0x200, scoped, tag = 'scratch operand']
  #allocation7 [shape = 'f32[1,128]{1,0:T(1,128)}', space=vmem, size = 0x200, scoped, tag = 'scratch operand']
  #allocation8 [shape = 'f32[1,256]{1,0:T(1,128)}', space=vmem, size = 0x400, scoped, tag = 'scratch operand']
  #allocation9 [shape = 'f32[1,256]{1,0:T(1,128)}', space=vmem, size = 0x400, scoped, tag = 'scratch operand']
  #allocation10 [shape = 'f32[1,128]{1,0:T(1,128)}', space=vmem, size = 0x200, scoped, tag = 'scratch operand']
  #allocation11 [shape = 'f32[1,128]{1,0:T(1,128)}', space=vmem, size = 0x200, scoped, tag = 'scratch operand']
  %s0 = inlined_call_operand.hbm [shape: f32[512,2048], index: 0, kind: input, shape index: {}]
  %s1 = inlined_call_operand.hbm [shape: bf16[2048,256], index: 1, kind: input, shape index: {}]
  %s2 = inlined_call_operand.hbm [shape: f32[1,256], index: 2, kind: input, shape index: {}]
  %s3 = inlined_call_operand.hbm [shape: f32[1,256], index: 3, kind: input, shape index: {}]
  %s4 = inlined_call_operand.hbm [shape: bf16[256,128], index: 4, kind: input, shape index: {}]
  %s5 = inlined_call_operand.hbm [shape: f32[1,128], index: 5, kind: input, shape index: {}]
  %s6 = inlined_call_operand.hbm [shape: f32[1,128], index: 6, kind: input, shape index: {}]
  %s7 = inlined_call_operand.hbm [shape: f32[512,128], index: 7, kind: output, shape index: {}]
  %s8 = sld [smem:[#allocation0]]
  $region113: #{tpu_custom_call.1} parent=0
    _
  %s10 = ssub.s32 1, %s8
  %s11 = scalar_select 0, %s10, %s8
  $region1: #{tpu_custom_call.1} parent=0
    #allocation12 [shape = 'u8[4194304]{0}', space=vmem, size = 0x400000, scoped, tag = 'input window, operand 0']
    #allocation13 [shape = 's32[2]{0}', space=sflag, size = 0x8, scoped, tag = 'scoped memory for tpu_custom_call.1']
    #allocation14 [shape = 's32[2]{0}', space=sflag, size = 0x8, scoped, tag = 'scoped memory for tpu_custom_call.1']
    #allocation15 [shape = 'u8[1048576]{0}', space=vmem, size = 0x100000, scoped, tag = 'input window, operand 1, single buffered']
    #allocation16 [shape = 's32[1]{0}', space=sflag, size = 0x4, scoped, tag = 'scoped memory for tpu_custom_call.1']
    #allocation17 [shape = 'u8[1024]{0}', space=vmem, size = 0x400, scoped, tag = 'input window, operand 2, single buffered']
    #allocation18 [shape = 'u8[1024]{0}', space=vmem, size = 0x400, scoped, tag = 'input window, operand 3, single buffered']
    #allocation19 [shape = 's32[1]{0}', space=sflag, size = 0x4, scoped, tag = 'scoped memory for tpu_custom_call.1']
    #allocation20 [shape = 'u8[65536]{0}', space=vmem, size = 0x10000, scoped, tag = 'input window, operand 4, single buffered']
    #allocation21 [shape = 'u8[512]{0}', space=vmem, size = 0x400, scoped, tag = 'input window, operand 5, single buffered']
    #allocation22 [shape = 's32[1]{0}', space=sflag, size = 0x4, scoped, tag = 'scoped memory for tpu_custom_call.1']
    #allocation23 [shape = 'u8[512]{0}', space=vmem, size = 0x400, scoped, tag = 'input window, operand 6, single buffered']
    #allocation24 [shape = 'u8[262144]{0}', space=vmem, size = 0x40000, scoped, tag = 'output window, operand 0']
    %12 = vsyncpa [#allocation13], 0
    %s13 = scalar_lea.sflag [#allocation13], 1
    %14 = vsyncpa %s13, 0
    %15 = vsyncpa [#allocation16], 0
    %16 = vsyncpa [#allocation19], 0
    %17 = vsyncpa [#allocation22], 0
    %18 = vsyncpa [#allocation14], 0
    %s19 = scalar_lea.sflag [#allocation14], 1
    %20 = vsyncpa %s19, 0
    loop: start=0, step=1, limit=8
    $region2: #{tpu_custom_call.1} parent=1 // loop_pre_header
      _
    $region3: #{tpu_custom_call.1} parent=1 // loop_header
      %s22 = sphi 0, %s26
      %p23 = scmp.ge.s32.totalorder %s22, 8
      %s29 = sphi 0, %s41
      %s30 = sphi 0, %s37
      %s31 = sphi 0, %s29
      %s32 = sphi 0, %s30
      %s33 = sphi 0, %s31
      %s34 = sphi 0, %s32
      %s48 = sphi 0, %s50
      %s51 = sphi 0, %s48
      %s52 = sphi 0, %s51
      %s68 = sphi 0, %s52
      %s72 = sphi 0, %s72
      %s74 = sphi 0, %s72
      %s75 = sphi 0, %s74
      %s89 = sphi 0, %s75
      %s93 = sphi 0, %s93
      %s95 = sphi 0, %s93
      %s96 = sphi 0, %s95
      %s110 = sphi 0, %s96
      %s114 = sphi 0, %s114
      %s116 = sphi 0, %s114
      %s117 = sphi 0, %s116
      %s131 = sphi 0, %s117
      %s135 = sphi 0, %s135
      %s137 = sphi 0, %s135
      %s138 = sphi 0, %s137
      %s152 = sphi 0, %s138
      %s156 = sphi 0, %s156
      %s158 = sphi 0, %s156
      %s159 = sphi 0, %s158
      %s173 = sphi 0, %s159
      %s177 = sphi 0, %s177
      %s179 = sphi 0, %s177
      %s180 = sphi 0, %s179
      %s194 = sphi 0, %s180
      %s204 = sphi 0, %s206
      %s207 = sphi 0, %s204
      %s208 = sphi 0, %s207
      %s224 = sphi 0, %s208
    $region4: #{tpu_custom_call.1} parent=1 // loop_header_branch
      %25 = sbr.rel (%p23) target = $region8
    $region5: #{tpu_custom_call.1} parent=1 // loop_body
      %s27 = ssub.s32 %s22, 1
      %s28 = ssub.s32 %s22, 2
      %s35 = sadd.s32 1, %s30
      %p36 = scmp.ge.s32.totalorder %s35, 2
      %s37 = scalar_select %p36, 0, %s35
      %s38 = sadd.s32 1, %s29
      %s39 = scalar_select %p36, %s38, %s29
      %p40 = scmp.ge.s32.totalorder %s39, 3
      %s41 = scalar_select %p40, 0, %s39
      %p42 = scmp.eq.s32.totalorder %s29, 0
      %s43 = scalar_select %p42, %s30, 0
      %p44 = scmp.eq.s32.totalorder %s41, 0
      %s45 = scalar_select %p44, %s37, 0
      %s46 = ssub.s32 %s43, %s45
      %p47 = scmp.eq.s32.totalorder %s46, 0
      %s49 = sadd.s32 %s48, 1
      %s50 = scalar_select %p47, %s48, %s49
      %p53 = pneg %p47
      %p54 = scmp.eq.s32.totalorder %s22, 5
      %p55 = por %p53, %p54
      %p56 = scmp.ne.s32.totalorder %s48, %s51
      %p57 = scmp.eq.s32.totalorder %s22, 0
      %p58 = por %p56, %p57
      %p59 = scmp.ne.s32.totalorder %s48, %s51
      %p60 = scmp.eq.s32.totalorder %s27, 5
      %p61 = por %p59, %p60
      %p62 = scmp.ne.s32.totalorder %s51, %s52
      %p63 = scmp.eq.s32.totalorder %s27, 0
      %p64 = por %p62, %p63
      %p65 = scmp.ne.s32.totalorder %s51, %s52
      %p66 = scmp.eq.s32.totalorder %s28, 5
      %p67 = por %p65, %p66
      %p69 = scmp.ne.s32.totalorder %s52, %s68
      %p70 = scmp.eq.s32.totalorder %s28, 0
      %p71 = por %p69, %p70
      %s73 = sadd.s32 %s72, 1
      %p76 = scmp.eq.s32.totalorder %s22, 5
      %p77 = scmp.ne.s32.totalorder %s72, %s74
      %p78 = scmp.eq.s32.totalorder %s22, 0
      %p79 = por %p77, %p78
      %p80 = scmp.ne.s32.totalorder %s72, %s74
      %p81 = scmp.eq.s32.totalorder %s27, 5
      %p82 = por %p80, %p81
      %p83 = scmp.ne.s32.totalorder %s74, %s75
      %p84 = scmp.eq.s32.totalorder %s27, 0
      %p85 = por %p83, %p84
      %p86 = scmp.ne.s32.totalorder %s74, %s75
      %p87 = scmp.eq.s32.totalorder %s28, 5
      %p88 = por %p86, %p87
      %p90 = scmp.ne.s32.totalorder %s75, %s89
      %p91 = scmp.eq.s32.totalorder %s28, 0
      %p92 = por %p90, %p91
      %s94 = sadd.s32 %s93, 1
      %p97 = scmp.eq.s32.totalorder %s22, 5
      %p98 = scmp.ne.s32.totalorder %s93, %s95
      %p99 = scmp.eq.s32.totalorder %s22, 0
      %p100 = por %p98, %p99
      %p101 = scmp.ne.s32.totalorder %s93, %s95
      %p102 = scmp.eq.s32.totalorder %s27, 5
      %p103 = por %p101, %p102
      %p104 = scmp.ne.s32.totalorder %s95, %s96
      %p105 = scmp.eq.s32.totalorder %s27, 0
      %p106 = por %p104, %p105
      %p107 = scmp.ne.s32.totalorder %s95, %s96
      %p108 = scmp.eq.s32.totalorder %s28, 5
      %p109 = por %p107, %p108
      %p111 = scmp.ne.s32.totalorder %s96, %s110
      %p112 = scmp.eq.s32.totalorder %s28, 0
      %p113 = por %p111, %p112
      %s115 = sadd.s32 %s114, 1
      %p118 = scmp.eq.s32.totalorder %s22, 5
      %p119 = scmp.ne.s32.totalorder %s114, %s116
      %p120 = scmp.eq.s32.totalorder %s22, 0
      %p121 = por %p119, %p120
      %p122 = scmp.ne.s32.totalorder %s114, %s116
      %p123 = scmp.eq.s32.totalorder %s27, 5
      %p124 = por %p122, %p123
      %p125 = scmp.ne.s32.totalorder %s116, %s117
      %p126 = scmp.eq.s32.totalorder %s27, 0
      %p127 = por %p125, %p126
      %p128 = scmp.ne.s32.totalorder %s116, %s117
      %p129 = scmp.eq.s32.totalorder %s28, 5
      %p130 = por %p128, %p129
      %p132 = scmp.ne.s32.totalorder %s117, %s131
      %p133 = scmp.eq.s32.totalorder %s28, 0
      %p134 = por %p132, %p133
      %s136 = sadd.s32 %s135, 1
      %p139 = scmp.eq.s32.totalorder %s22, 5
      %p140 = scmp.ne.s32.totalorder %s135, %s137
      %p141 = scmp.eq.s32.totalorder %s22, 0
      %p142 = por %p140, %p141
      %p143 = scmp.ne.s32.totalorder %s135, %s137
      %p144 = scmp.eq.s32.totalorder %s27, 5
      %p145 = por %p143, %p144
      %p146 = scmp.ne.s32.totalorder %s137, %s138
      %p147 = scmp.eq.s32.totalorder %s27, 0
      %p148 = por %p146, %p147
      %p149 = scmp.ne.s32.totalorder %s137, %s138
      %p150 = scmp.eq.s32.totalorder %s28, 5
      %p151 = por %p149, %p150
      %p153 = scmp.ne.s32.totalorder %s138, %s152
      %p154 = scmp.eq.s32.totalorder %s28, 0
      %p155 = por %p153, %p154
      %s157 = sadd.s32 %s156, 1
      %p160 = scmp.eq.s32.totalorder %s22, 5
      %p161 = scmp.ne.s32.totalorder %s156, %s158
      %p162 = scmp.eq.s32.totalorder %s22, 0
      %p163 = por %p161, %p162
      %p164 = scmp.ne.s32.totalorder %s156, %s158
      %p165 = scmp.eq.s32.totalorder %s27, 5
      %p166 = por %p164, %p165
      %p167 = scmp.ne.s32.totalorder %s158, %s159
      %p168 = scmp.eq.s32.totalorder %s27, 0
      %p169 = por %p167, %p168
      %p170 = scmp.ne.s32.totalorder %s158, %s159
      %p171 = scmp.eq.s32.totalorder %s28, 5
      %p172 = por %p170, %p171
      %p174 = scmp.ne.s32.totalorder %s159, %s173
      %p175 = scmp.eq.s32.totalorder %s28, 0
      %p176 = por %p174, %p175
      %s178 = sadd.s32 %s177, 1
      %p181 = scmp.eq.s32.totalorder %s22, 5
      %p182 = scmp.ne.s32.totalorder %s177, %s179
      %p183 = scmp.eq.s32.totalorder %s22, 0
      %p184 = por %p182, %p183
      %p185 = scmp.ne.s32.totalorder %s177, %s179
      %p186 = scmp.eq.s32.totalorder %s27, 5
      %p187 = por %p185, %p186
      %p188 = scmp.ne.s32.totalorder %s179, %s180
      %p189 = scmp.eq.s32.totalorder %s27, 0
      %p190 = por %p188, %p189
      %p191 = scmp.ne.s32.totalorder %s179, %s180
      %p192 = scmp.eq.s32.totalorder %s28, 5
      %p193 = por %p191, %p192
      %p195 = scmp.ne.s32.totalorder %s180, %s194
      %p196 = scmp.eq.s32.totalorder %s28, 0
      %p197 = por %p195, %p196
      %p198 = scmp.eq.s32.totalorder %s29, 2
      %s199 = scalar_select %p198, %s30, 0
      %p200 = scmp.eq.s32.totalorder %s41, 2
      %s201 = scalar_select %p200, %s37, 0
      %s202 = ssub.s32 %s199, %s201
      %p203 = scmp.eq.s32.totalorder %s202, 0
      %s205 = sadd.s32 %s204, 1
      %s206 = scalar_select %p203, %s204, %s205
      %p209 = pneg %p203
      %p210 = scmp.eq.s32.totalorder %s22, 5
      %p211 = por %p209, %p210
      %p212 = scmp.ne.s32.totalorder %s204, %s207
      %p213 = scmp.eq.s32.totalorder %s22, 0
      %p214 = por %p212, %p213
      %p215 = scmp.ne.s32.totalorder %s204, %s207
      %p216 = scmp.eq.s32.totalorder %s27, 5
      %p217 = por %p215, %p216
      %p218 = scmp.ne.s32.totalorder %s207, %s208
      %p219 = scmp.eq.s32.totalorder %s27, 0
      %p220 = por %p218, %p219
      %p221 = scmp.ne.s32.totalorder %s207, %s208
      %p222 = scmp.eq.s32.totalorder %s28, 5
      %p223 = por %p221, %p222
      %p225 = scmp.ne.s32.totalorder %s208, %s224
      %p226 = scmp.eq.s32.totalorder %s28, 0
      %p227 = por %p225, %p226
      %p228 = scmp.le.s32.totalorder 1, %s22
      %p229 = scmp.lt.s32.totalorder %s22, 7
      %p230 = pnand %p228, %p229
      %p231 = pneg %p230
      // Predicated region
      $region9: #{tpu_custom_call.1} parent=5 // pred_check
        _
      $region10: #{tpu_custom_call.1} parent=5 // pred_check_branch
        %233 = sbr.rel (%p230) target = $region12
      $region11: #{tpu_custom_call.1} parent=5 // pred_region
        %s234 = ssub.s32 %s22, 1
        // Predicated region
        $region13: #{tpu_custom_call.1} parent=11 // pred_check
          %p235 = pneg %p85
        $region14: #{tpu_custom_call.1} parent=11 // pred_check_branch
          %237 = sbr.rel (%p235) target = $region16
        $region15: #{tpu_custom_call.1} parent=11 // pred_region
          %s239 = ssub.s32 32768, 32768
          %240 = vsyncadd [#allocation16], %s239
          %s241 = sshll.u32 [#allocation15], 4
          %s242 = int_to_ptr.vmem [resolvable:$true] %s241
          %247 = dma.hbm_to_vmem [thread:$0]  %s1, 32768, %s242, [#allocation16], 128, 128, 8
        $region16: #{tpu_custom_call.1} parent=11 // pred_fallthru
          _
        // Predicated region
        $region17: #{tpu_custom_call.1} parent=11 // pred_check
          %p248 = pneg %p106
        $region18: #{tpu_custom_call.1} parent=11 // pred_check_branch
          %250 = sbr.rel (%p248) target = $region20
        $region19: #{tpu_custom_call.1} parent=11 // pred_region
          %s252 = ssub.s32 32, 32
          %253 = vsyncadd [#allocation16], %s252
          %s255 = sshll.u32 [#allocation17], 4
          %s256 = int_to_ptr.vmem [resolvable:$true] %s255
          %258 = dma.hbm_to_vmem [thread:$0]  %s2, 32, %s256, [#allocation16]
        $region20: #{tpu_custom_call.1} parent=11 // pred_fallthru
          _
        // Predicated region
        $region21: #{tpu_custom_call.1} parent=11 // pred_check
          %p259 = pneg %p127
        $region22: #{tpu_custom_call.1} parent=11 // pred_check_branch
          %261 = sbr.rel (%p259) target = $region24
        $region23: #{tpu_custom_call.1} parent=11 // pred_region
          %s263 = ssub.s32 32, 32
          %264 = vsyncadd [#allocation19], %s263
          %s266 = sshll.u32 [#allocation18], 4
          %s267 = int_to_ptr.vmem [resolvable:$true] %s266
          %269 = dma.hbm_to_vmem [thread:$0]  %s3, 32, %s267, [#allocation19]
        $region24: #{tpu_custom_call.1} parent=11 // pred_fallthru
          _
        // Predicated region
        $region25: #{tpu_custom_call.1} parent=11 // pred_check
          %p270 = pneg %p148
        $region26: #{tpu_custom_call.1} parent=11 // pred_check_branch
          %272 = sbr.rel (%p270) target = $region28
        $region27: #{tpu_custom_call.1} parent=11 // pred_region
          %s274 = ssub.s32 2048, 2048
          %275 = vsyncadd [#allocation19], %s274
          %s276 = sshll.u32 [#allocation20], 4
          %s277 = int_to_ptr.vmem [resolvable:$true] %s276
          %282 = dma.hbm_to_vmem [thread:$0]  %s4, 2048, %s277, [#allocation19], 64, 64, 4
        $region28: #{tpu_custom_call.1} parent=11 // pred_fallthru
          _
        // Predicated region
        $region29: #{tpu_custom_call.1} parent=11 // pred_check
          %p283 = pneg %p169
        $region30: #{tpu_custom_call.1} parent=11 // pred_check_branch
          %285 = sbr.rel (%p283) target = $region32
        $region31: #{tpu_custom_call.1} parent=11 // pred_region
          %s287 = ssub.s32 16, 16
          %288 = vsyncadd [#allocation22], %s287
          %s290 = sshll.u32 [#allocation21], 4
          %s291 = int_to_ptr.vmem [resolvable:$true] %s290
          %293 = dma.hbm_to_vmem [thread:$0]  %s5, 16, %s291, [#allocation22]
        $region32: #{tpu_custom_call.1} parent=11 // pred_fallthru
          _
        // Predicated region
        $region33: #{tpu_custom_call.1} parent=11 // pred_check
          %p294 = pneg %p190
        $region34: #{tpu_custom_call.1} parent=11 // pred_check_branch
          %296 = sbr.rel (%p294) target = $region36
        $region35: #{tpu_custom_call.1} parent=11 // pred_region
          %s298 = ssub.s32 16, 16
          %299 = vsyncadd [#allocation22], %s298
          %s301 = sshll.u32 [#allocation23], 4
          %s302 = int_to_ptr.vmem [resolvable:$true] %s301
          %304 = dma.hbm_to_vmem [thread:$0]  %s6, 16, %s302, [#allocation22]
        $region36: #{tpu_custom_call.1} parent=11 // pred_fallthru
          _
      $region12: #{tpu_custom_call.1} parent=5 // pred_fallthru
        _
      %p305 = scmp.lt.s32.totalorder %s22, 6
      // Predicated region
      $region37: #{tpu_custom_call.1} parent=5 // pred_check
        %p306 = pneg %p305
      $region38: #{tpu_custom_call.1} parent=5 // pred_check_branch
        %308 = sbr.rel (%p306) target = $region40
      $region39: #{tpu_custom_call.1} parent=5 // pred_region
        // Predicated region
        $region41: #{tpu_custom_call.1} parent=39 // pred_check
          %p309 = pneg %p58
        $region42: #{tpu_custom_call.1} parent=39 // pred_check_branch
          %311 = sbr.rel (%p309) target = $region44
        $region43: #{tpu_custom_call.1} parent=39 // pred_region
          %s312 = sand.u32 %s48, 1
          %s313 = scalar_lea.sflag [#allocation13], %s312
          %s314 = sand.u32 %s48, 1
          %s315 = smul.addr %s314, 4096
          %s316 = scalar_lea.vmem [#allocation12], %s315
          %p317 = scmp.eq.s32.totalorder %s29, 0
          %s318 = scalar_select %p317, %s30, 0
          %s319 = smul.u32 32, %s318
          %s321 = ssub.s32 65536, 65536
          %322 = vsyncadd %s313, %s321
          %s323 = smul.addr %s319, 16
          %s324 = smul.addr %s323, 128
          %s325 = scalar_lea.hbm %s0, %s324
          %s326 = sshll.u32 %s316, 4
          %s327 = int_to_ptr.vmem [resolvable:$true] %s326
          %332 = dma.hbm_to_vmem [thread:$0]  %s325, 65536, %s327, %s313, 2048, 2048, 128
        $region44: #{tpu_custom_call.1} parent=39 // pred_fallthru
          _
      $region40: #{tpu_custom_call.1} parent=5 // pred_fallthru
        _
      %p333 = scmp.le.s32.totalorder 1, %s22
      %p334 = scmp.lt.s32.totalorder %s22, 7
      %p335 = pnand %p333, %p334
      %p336 = pneg %p335
      // Predicated region
      $region45: #{tpu_custom_call.1} parent=5 // pred_check
        _
      $region46: #{tpu_custom_call.1} parent=5 // pred_check_branch
        %338 = sbr.rel (%p335) target = $region48
      $region47: #{tpu_custom_call.1} parent=5 // pred_region
        %s339 = ssub.s32 %s22, 1
        %s340 = sand.u32 %s51, 1
        %s341 = scalar_lea.sflag [#allocation13], %s340
        %s342 = sand.u32 %s51, 1
        %s343 = smul.addr %s342, 4096
        %s344 = scalar_lea.vmem [#allocation12], %s343
        // Predicated region
        $region49: #{tpu_custom_call.1} parent=47 // pred_check
          %p345 = pneg %p64
        $region50: #{tpu_custom_call.1} parent=47 // pred_check_branch
          %347 = sbr.rel (%p345) target = $region52
        $region51: #{tpu_custom_call.1} parent=47 // pred_region
          %348 = dma.done %s341, 65536
        $region52: #{tpu_custom_call.1} parent=47 // pred_fallthru
          _
        // Predicated region
        $region53: #{tpu_custom_call.1} parent=47 // pred_check
          %p349 = pneg %p85
        $region54: #{tpu_custom_call.1} parent=47 // pred_check_branch
          %351 = sbr.rel (%p349) target = $region56
        $region55: #{tpu_custom_call.1} parent=47 // pred_region
          %352 = dma.done [#allocation16], 32768
        $region56: #{tpu_custom_call.1} parent=47 // pred_fallthru
          _
        // Predicated region
        $region57: #{tpu_custom_call.1} parent=47 // pred_check
          %p353 = pneg %p106
        $region58: #{tpu_custom_call.1} parent=47 // pred_check_branch
          %355 = sbr.rel (%p353) target = $region60
        $region59: #{tpu_custom_call.1} parent=47 // pred_region
          %356 = dma.done [#allocation16], 32
        $region60: #{tpu_custom_call.1} parent=47 // pred_fallthru
          _
        // Predicated region
        $region61: #{tpu_custom_call.1} parent=47 // pred_check
          %p357 = pneg %p127
        $region62: #{tpu_custom_call.1} parent=47 // pred_check_branch
          %359 = sbr.rel (%p357) target = $region64
        $region63: #{tpu_custom_call.1} parent=47 // pred_region
          %360 = dma.done [#allocation19], 32
        $region64: #{tpu_custom_call.1} parent=47 // pred_fallthru
          _
        // Predicated region
        $region65: #{tpu_custom_call.1} parent=47 // pred_check
          %p361 = pneg %p148
        $region66: #{tpu_custom_call.1} parent=47 // pred_check_branch
          %363 = sbr.rel (%p361) target = $region68
        $region67: #{tpu_custom_call.1} parent=47 // pred_region
          %364 = dma.done [#allocation19], 2048
        $region68: #{tpu_custom_call.1} parent=47 // pred_fallthru
          _
        // Predicated region
        $region69: #{tpu_custom_call.1} parent=47 // pred_check
          %p365 = pneg %p169
        $region70: #{tpu_custom_call.1} parent=47 // pred_check_branch
          %367 = sbr.rel (%p365) target = $region72
        $region71: #{tpu_custom_call.1} parent=47 // pred_region
          %368 = dma.done [#allocation22], 16
        $region72: #{tpu_custom_call.1} parent=47 // pred_fallthru
          _
        // Predicated region
        $region73: #{tpu_custom_call.1} parent=47 // pred_check
          %p369 = pneg %p190
        $region74: #{tpu_custom_call.1} parent=47 // pred_check_branch
          %371 = sbr.rel (%p369) target = $region76
        $region75: #{tpu_custom_call.1} parent=47 // pred_region
          %372 = dma.done [#allocation22], 16
        $region76: #{tpu_custom_call.1} parent=47 // pred_fallthru
          _
        %s373 = sand.u32 %s51, 1
        %s374 = scalar_lea.sflag [#allocation13], %s373
        %s375 = sand.u32 %s51, 1
        %s376 = smul.addr %s375, 4096
        %s377 = scalar_lea.vmem [#allocation12], %s376
        %p378 = pneg %p64
        %p379 = pneg %p61
        %p380 = pneg %p85
        %p381 = pneg %p82
        %p382 = pneg %p106
        %p383 = pneg %p103
        %p384 = pneg %p127
        %p385 = pneg %p124
        %p386 = pneg %p148
        %p387 = pneg %p145
        %p388 = pneg %p169
        %p389 = pneg %p166
        %p390 = pneg %p190
        %p391 = pneg %p187
        %p392 = pneg %p220
        %p393 = pneg %p217
        %s394 = sand.u32 %s207, 1
        %s395 = scalar_lea.sflag [#allocation14], %s394
        %s396 = sand.u32 %s207, 1
        %s397 = smul.addr %s396, 256
        %s398 = scalar_lea.vmem [#allocation24], %s397
        %p399 = scmp.eq.s32.totalorder %s31, 0
        %s400 = scalar_select %p399, %s32, 0
        %s401 = smul.u32 32, %s400
        %p402 = scmp.eq.s32.totalorder %s31, 2
        %s403 = scalar_select %p402, %s32, 0
        %s404 = smul.u32 32, %s403
        %s406 = smul.u32 %s32, 256
        %p407 = scmp.eq.s32.totalorder %s31, 0
        // Predicated region
        $region77: #{tpu_custom_call.1} parent=47 // pred_check
          %p408 = pneg %p407
        $region78: #{tpu_custom_call.1} parent=47 // pred_check_branch
          %410 = sbr.rel (%p408) target = $region80
        $region79: #{tpu_custom_call.1} parent=47 // pred_region
          %p411 = scmp.eq.s32.totalorder %s32, 0
          // Predicated region
          $region81: #{tpu_custom_call.1} parent=79 // pred_check
            %p412 = pneg %p411
          $region82: #{tpu_custom_call.1} parent=79 // pred_check_branch
            %414 = sbr.rel (%p412) target = $region84
          $region83: #{tpu_custom_call.1} parent=79 // pred_region
            %v415 = vlaneseq
            %vm416 = vcmp.ge.s32.totalorder %v415, 0
            %vm417 = vcmp.lt.s32.totalorder %v415, 256
            %vm418 = vmand %vm416, %vm417
            %419 = vst.msk [vmem:[#allocation4] sm:$0x3] %vm418, 0.0
            %420 = vst.msk [vmem:[#allocation5] sm:$0x3] %vm418, 0.0
          $region84: #{tpu_custom_call.1} parent=79 // pred_fallthru
            _
          %v421 = vld [vmem:[%s344] sm:$0xff]
          %v422 = vld [vmem:[%s344 + $0x8] sm:$0xff]
          %v423 = vld [vmem:[%s344 + $0x10] sm:$0xff]
          %v424 = vld [vmem:[%s344 + $0x18] sm:$0xff]
          %v425 = vld [vmem:[%s344 + $0x20] sm:$0xff]
          %v426 = vld [vmem:[%s344 + $0x28] sm:$0xff]
          %v427 = vld [vmem:[%s344 + $0x30] sm:$0xff]
          %v428 = vld [vmem:[%s344 + $0x38] sm:$0xff]
          %v429 = vld [vmem:[%s344 + $0x40] sm:$0xff]
          %v430 = vld [vmem:[%s344 + $0x48] sm:$0xff]
          %v431 = vld [vmem:[%s344 + $0x50] sm:$0xff]
          %v432 = vld [vmem:[%s344 + $0x58] sm:$0xff]
          %v433 = vld [vmem:[%s344 + $0x60] sm:$0xff]
          %v434 = vld [vmem:[%s344 + $0x68] sm:$0xff]
          %v435 = vld [vmem:[%s344 + $0x70] sm:$0xff]
          %v436 = vld [vmem:[%s344 + $0x78] sm:$0xff]
          %v437 = vld [vmem:[%s344 + $0x80] sm:$0xff]
          %v438 = vld [vmem:[%s344 + $0x88] sm:$0xff]
          %v439 = vld [vmem:[%s344 + $0x90] sm:$0xff]
          %v440 = vld [vmem:[%s344 + $0x98] sm:$0xff]
          %v441 = vld [vmem:[%s344 + $0xa0] sm:$0xff]
          %v442 = vld [vmem:[%s344 + $0xa8] sm:$0xff]
          %v443 = vld [vmem:[%s344 + $0xb0] sm:$0xff]
          %v444 = vld [vmem:[%s344 + $0xb8] sm:$0xff]
          %v445 = vld [vmem:[%s344 + $0xc0] sm:$0xff]
          %v446 = vld [vmem:[%s344 + $0xc8] sm:$0xff]
          %v447 = vld [vmem:[%s344 + $0xd0] sm:$0xff]
          %v448 = vld [vmem:[%s344 + $0xd8] sm:$0xff]
          %v449 = vld [vmem:[%s344 + $0xe0] sm:$0xff]
          %v450 = vld [vmem:[%s344 + $0xe8] sm:$0xff]
          %v451 = vld [vmem:[%s344 + $0xf0] sm:$0xff]
          %v452 = vld [vmem:[%s344 + $0xf8] sm:$0xff]
          %v453 = vld [vmem:[%s344 + $0x100] sm:$0xff]
          %v454 = vld [vmem:[%s344 + $0x108] sm:$0xff]
          %v455 = vld [vmem:[%s344 + $0x110] sm:$0xff]
          %v456 = vld [vmem:[%s344 + $0x118] sm:$0xff]
          %v457 = vld [vmem:[%s344 + $0x120] sm:$0xff]
          %v458 = vld [vmem:[%s344 + $0x128] sm:$0xff]
          %v459 = vld [vmem:[%s344 + $0x130] sm:$0xff]
          %v460 = vld [vmem:[%s344 + $0x138] sm:$0xff]
          %v461 = vld [vmem:[%s344 + $0x140] sm:$0xff]
          %v462 = vld [vmem:[%s344 + $0x148] sm:$0xff]
          %v463 = vld [vmem:[%s344 + $0x150] sm:$0xff]
          %v464 = vld [vmem:[%s344 + $0x158] sm:$0xff]
          %v465 = vld [vmem:[%s344 + $0x160] sm:$0xff]
          %v466 = vld [vmem:[%s344 + $0x168] sm:$0xff]
          %v467 = vld [vmem:[%s344 + $0x170] sm:$0xff]
          %v468 = vld [vmem:[%s344 + $0x178] sm:$0xff]
          %v469 = vld [vmem:[%s344 + $0x180] sm:$0xff]
          %v470 = vld [vmem:[%s344 + $0x188] sm:$0xff]
          %v471 = vld [vmem:[%s344 + $0x190] sm:$0xff]
          %v472 = vld [vmem:[%s344 + $0x198] sm:$0xff]
          %v473 = vld [vmem:[%s344 + $0x1a0] sm:$0xff]
          %v474 = vld [vmem:[%s344 + $0x1a8] sm:$0xff]
          %v475 = vld [vmem:[%s344 + $0x1b0] sm:$0xff]
          %v476 = vld [vmem:[%s344 + $0x1b8] sm:$0xff]
          %v477 = vld [vmem:[%s344 + $0x1c0] sm:$0xff]
          %v478 = vld [vmem:[%s344 + $0x1c8] sm:$0xff]
          %v479 = vld [vmem:[%s344 + $0x1d0] sm:$0xff]
          %v480 = vld [vmem:[%s344 + $0x1d8] sm:$0xff]
          %v481 = vld [vmem:[%s344 + $0x1e0] sm:$0xff]
          %v482 = vld [vmem:[%s344 + $0x1e8] sm:$0xff]
          %v483 = vld [vmem:[%s344 + $0x1f0] sm:$0xff]
          %v484 = vld [vmem:[%s344 + $0x1f8] sm:$0xff]
          %v485 = vld [vmem:[%s344 + $0x200] sm:$0xff]
          %v486 = vld [vmem:[%s344 + $0x208] sm:$0xff]
          %v487 = vld [vmem:[%s344 + $0x210] sm:$0xff]
          %v488 = vld [vmem:[%s344 + $0x218] sm:$0xff]
          %v489 = vld [vmem:[%s344 + $0x220] sm:$0xff]
          %v490 = vld [vmem:[%s344 + $0x228] sm:$0xff]
          %v491 = vld [vmem:[%s344 + $0x230] sm:$0xff]
          %v492 = vld [vmem:[%s344 + $0x238] sm:$0xff]
          %v493 = vld [vmem:[%s344 + $0x240] sm:$0xff]
          %v494 = vld [vmem:[%s344 + $0x248] sm:$0xff]
          %v495 = vld [vmem:[%s344 + $0x250] sm:$0xff]
          %v496 = vld [vmem:[%s344 + $0x258] sm:$0xff]
          %v497 = vld [vmem:[%s344 + $0x260] sm:$0xff]
          %v498 = vld [vmem:[%s344 + $0x268] sm:$0xff]
          %v499 = vld [vmem:[%s344 + $0x270] sm:$0xff]
          %v500 = vld [vmem:[%s344 + $0x278] sm:$0xff]
          %v501 = vld [vmem:[%s344 + $0x280] sm:$0xff]
          %v502 = vld [vmem:[%s344 + $0x288] sm:$0xff]
          %v503 = vld [vmem:[%s344 + $0x290] sm:$0xff]
          %v504 = vld [vmem:[%s344 + $0x298] sm:$0xff]
          %v505 = vld [vmem:[%s344 + $0x2a0] sm:$0xff]
          %v506 = vld [vmem:[%s344 + $0x2a8] sm:$0xff]
          %v507 = vld [vmem:[%s344 + $0x2b0] sm:$0xff]
          %v508 = vld [vmem:[%s344 + $0x2b8] sm:$0xff]
          %v509 = vld [vmem:[%s344 + $0x2c0] sm:$0xff]
          %v510 = vld [vmem:[%s344 + $0x2c8] sm:$0xff]
          %v511 = vld [vmem:[%s344 + $0x2d0] sm:$0xff]
          %v512 = vld [vmem:[%s344 + $0x2d8] sm:$0xff]
          %v513 = vld [vmem:[%s344 + $0x2e0] sm:$0xff]
          %v514 = vld [vmem:[%s344 + $0x2e8] sm:$0xff]
          %v515 = vld [vmem:[%s344 + $0x2f0] sm:$0xff]
          %v516 = vld [vmem:[%s344 + $0x2f8] sm:$0xff]
          %v517 = vld [vmem:[%s344 + $0x300] sm:$0xff]
          %v518 = vld [vmem:[%s344 + $0x308] sm:$0xff]
          %v519 = vld [vmem:[%s344 + $0x310] sm:$0xff]
          %v520 = vld [vmem:[%s344 + $0x318] sm:$0xff]
          %v521 = vld [vmem:[%s344 + $0x320] sm:$0xff]
          %v522 = vld [vmem:[%s344 + $0x328] sm:$0xff]
          %v523 = vld [vmem:[%s344 + $0x330] sm:$0xff]
          %v524 = vld [vmem:[%s344 + $0x338] sm:$0xff]
          %v525 = vld [vmem:[%s344 + $0x340] sm:$0xff]
          %v526 = vld [vmem:[%s344 + $0x348] sm:$0xff]
          %v527 = vld [vmem:[%s344 + $0x350] sm:$0xff]
          %v528 = vld [vmem:[%s344 + $0x358] sm:$0xff]
          %v529 = vld [vmem:[%s344 + $0x360] sm:$0xff]
          %v530 = vld [vmem:[%s344 + $0x368] sm:$0xff]
          %v531 = vld [vmem:[%s344 + $0x370] sm:$0xff]
          %v532 = vld [vmem:[%s344 + $0x378] sm:$0xff]
          %v533 = vld [vmem:[%s344 + $0x380] sm:$0xff]
          %v534 = vld [vmem:[%s344 + $0x388] sm:$0xff]
          %v535 = vld [vmem:[%s344 + $0x390] sm:$0xff]
          %v536 = vld [vmem:[%s344 + $0x398] sm:$0xff]
          %v537 = vld [vmem:[%s344 + $0x3a0] sm:$0xff]
          %v538 = vld [vmem:[%s344 + $0x3a8] sm:$0xff]
          %v539 = vld [vmem:[%s344 + $0x3b0] sm:$0xff]
          %v540 = vld [vmem:[%s344 + $0x3b8] sm:$0xff]
          %v541 = vld [vmem:[%s344 + $0x3c0] sm:$0xff]
          %v542 = vld [vmem:[%s344 + $0x3c8] sm:$0xff]
          %v543 = vld [vmem:[%s344 + $0x3d0] sm:$0xff]
          %v544 = vld [vmem:[%s344 + $0x3d8] sm:$0xff]
          %v545 = vld [vmem:[%s344 + $0x3e0] sm:$0xff]
          %v546 = vld [vmem:[%s344 + $0x3e8] sm:$0xff]
          %v547 = vld [vmem:[%s344 + $0x3f0] sm:$0xff]
          %v548 = vld [vmem:[%s344 + $0x3f8] sm:$0xff]
          %v549 = vld [vmem:[%s344 + $0x400] sm:$0xff]
          %v550 = vld [vmem:[%s344 + $0x408] sm:$0xff]
          %v551 = vld [vmem:[%s344 + $0x410] sm:$0xff]
          %v552 = vld [vmem:[%s344 + $0x418] sm:$0xff]
          %v553 = vld [vmem:[%s344 + $0x420] sm:$0xff]
          %v554 = vld [vmem:[%s344 + $0x428] sm:$0xff]
          %v555 = vld [vmem:[%s344 + $0x430] sm:$0xff]
          %v556 = vld [vmem:[%s344 + $0x438] sm:$0xff]
          %v557 = vld [vmem:[%s344 + $0x440] sm:$0xff]
          %v558 = vld [vmem:[%s344 + $0x448] sm:$0xff]
          %v559 = vld [vmem:[%s344 + $0x450] sm:$0xff]
          %v560 = vld [vmem:[%s344 + $0x458] sm:$0xff]
          %v561 = vld [vmem:[%s344 + $0x460] sm:$0xff]
          %v562 = vld [vmem:[%s344 + $0x468] sm:$0xff]
          %v563 = vld [vmem:[%s344 + $0x470] sm:$0xff]
          %v564 = vld [vmem:[%s344 + $0x478] sm:$0xff]
          %v565 = vld [vmem:[%s344 + $0x480] sm:$0xff]
          %v566 = vld [vmem:[%s344 + $0x488] sm:$0xff]
          %v567 = vld [vmem:[%s344 + $0x490] sm:$0xff]
          %v568 = vld [vmem:[%s344 + $0x498] sm:$0xff]
          %v569 = vld [vmem:[%s344 + $0x4a0] sm:$0xff]
          %v570 = vld [vmem:[%s344 + $0x4a8] sm:$0xff]
          %v571 = vld [vmem:[%s344 + $0x4b0] sm:$0xff]
          %v572 = vld [vmem:[%s344 + $0x4b8] sm:$0xff]
          %v573 = vld [vmem:[%s344 + $0x4c0] sm:$0xff]
          %v574 = vld [vmem:[%s344 + $0x4c8] sm:$0xff]
          %v575 = vld [vmem:[%s344 + $0x4d0] sm:$0xff]
          %v576 = vld [vmem:[%s344 + $0x4d8] sm:$0xff]
          %v577 = vld [vmem:[%s344 + $0x4e0] sm:$0xff]
          %v578 = vld [vmem:[%s344 + $0x4e8] sm:$0xff]
          %v579 = vld [vmem:[%s344 + $0x4f0] sm:$0xff]
          %v580 = vld [vmem:[%s344 + $0x4f8] sm:$0xff]
          %v581 = vld [vmem:[%s344 + $0x500] sm:$0xff]
          %v582 = vld [vmem:[%s344 + $0x508] sm:$0xff]
          %v583 = vld [vmem:[%s344 + $0x510] sm:$0xff]
          %v584 = vld [vmem:[%s344 + $0x518] sm:$0xff]
          %v585 = vld [vmem:[%s344 + $0x520] sm:$0xff]
          %v586 = vld [vmem:[%s344 + $0x528] sm:$0xff]
          %v587 = vld [vmem:[%s344 + $0x530] sm:$0xff]
          %v588 = vld [vmem:[%s344 + $0x538] sm:$0xff]
          %v589 = vld [vmem:[%s344 + $0x540] sm:$0xff]
          %v590 = vld [vmem:[%s344 + $0x548] sm:$0xff]
          %v591 = vld [vmem:[%s344 + $0x550] sm:$0xff]
          %v592 = vld [vmem:[%s344 + $0x558] sm:$0xff]
          %v593 = vld [vmem:[%s344 + $0x560] sm:$0xff]
          %v594 = vld [vmem:[%s344 + $0x568] sm:$0xff]
          %v595 = vld [vmem:[%s344 + $0x570] sm:$0xff]
          %v596 = vld [vmem:[%s344 + $0x578] sm:$0xff]
          %v597 = vld [vmem:[%s344 + $0x580] sm:$0xff]
          %v598 = vld [vmem:[%s344 + $0x588] sm:$0xff]
          %v599 = vld [vmem:[%s344 + $0x590] sm:$0xff]
          %v600 = vld [vmem:[%s344 + $0x598] sm:$0xff]
          %v601 = vld [vmem:[%s344 + $0x5a0] sm:$0xff]
          %v602 = vld [vmem:[%s344 + $0x5a8] sm:$0xff]
          %v603 = vld [vmem:[%s344 + $0x5b0] sm:$0xff]
          %v604 = vld [vmem:[%s344 + $0x5b8] sm:$0xff]
          %v605 = vld [vmem:[%s344 + $0x5c0] sm:$0xff]
          %v606 = vld [vmem:[%s344 + $0x5c8] sm:$0xff]
          %v607 = vld [vmem:[%s344 + $0x5d0] sm:$0xff]
          %v608 = vld [vmem:[%s344 + $0x5d8] sm:$0xff]
          %v609 = vld [vmem:[%s344 + $0x5e0] sm:$0xff]
          %v610 = vld [vmem:[%s344 + $0x5e8] sm:$0xff]
          %v611 = vld [vmem:[%s344 + $0x5f0] sm:$0xff]
          %v612 = vld [vmem:[%s344 + $0x5f8] sm:$0xff]
          %v613 = vld [vmem:[%s344 + $0x600] sm:$0xff]
          %v614 = vld [vmem:[%s344 + $0x608] sm:$0xff]
          %v615 = vld [vmem:[%s344 + $0x610] sm:$0xff]
          %v616 = vld [vmem:[%s344 + $0x618] sm:$0xff]
          %v617 = vld [vmem:[%s344 + $0x620] sm:$0xff]
          %v618 = vld [vmem:[%s344 + $0x628] sm:$0xff]
          %v619 = vld [vmem:[%s344 + $0x630] sm:$0xff]
          %v620 = vld [vmem:[%s344 + $0x638] sm:$0xff]
          %v621 = vld [vmem:[%s344 + $0x640] sm:$0xff]
          %v622 = vld [vmem:[%s344 + $0x648] sm:$0xff]
          %v623 = vld [vmem:[%s344 + $0x650] sm:$0xff]
          %v624 = vld [vmem:[%s344 + $0x658] sm:$0xff]
          %v625 = vld [vmem:[%s344 + $0x660] sm:$0xff]
          %v626 = vld [vmem:[%s344 + $0x668] sm:$0xff]
          %v627 = vld [vmem:[%s344 + $0x670] sm:$0xff]
          %v628 = vld [vmem:[%s344 + $0x678] sm:$0xff]
          %v629 = vld [vmem:[%s344 + $0x680] sm:$0xff]
          %v630 = vld [vmem:[%s344 + $0x688] sm:$0xff]
          %v631 = vld [vmem:[%s344 + $0x690] sm:$0xff]
          %v632 = vld [vmem:[%s344 + $0x698] sm:$0xff]
          %v633 = vld [vmem:[%s344 + $0x6a0] sm:$0xff]
          %v634 = vld [vmem:[%s344 + $0x6a8] sm:$0xff]
          %v635 = vld [vmem:[%s344 + $0x6b0] sm:$0xff]
          %v636 = vld [vmem:[%s344 + $0x6b8] sm:$0xff]
          %v637 = vld [vmem:[%s344 + $0x6c0] sm:$0xff]
          %v638 = vld [vmem:[%s344 + $0x6c8] sm:$0xff]
          %v639 = vld [vmem:[%s344 + $0x6d0] sm:$0xff]
          %v640 = vld [vmem:[%s344 + $0x6d8] sm:$0xff]
          %v641 = vld [vmem:[%s344 + $0x6e0] sm:$0xff]
          %v642 = vld [vmem:[%s344 + $0x6e8] sm:$0xff]
          %v643 = vld [vmem:[%s344 + $0x6f0] sm:$0xff]
          %v644 = vld [vmem:[%s344 + $0x6f8] sm:$0xff]
          %v645 = vld [vmem:[%s344 + $0x700] sm:$0xff]
          %v646 = vld [vmem:[%s344 + $0x708] sm:$0xff]
          %v647 = vld [vmem:[%s344 + $0x710] sm:$0xff]
          %v648 = vld [vmem:[%s344 + $0x718] sm:$0xff]
          %v649 = vld [vmem:[%s344 + $0x720] sm:$0xff]
          %v650 = vld [vmem:[%s344 + $0x728] sm:$0xff]
          %v651 = vld [vmem:[%s344 + $0x730] sm:$0xff]
          %v652 = vld [vmem:[%s344 + $0x738] sm:$0xff]
          %v653 = vld [vmem:[%s344 + $0x740] sm:$0xff]
          %v654 = vld [vmem:[%s344 + $0x748] sm:$0xff]
          %v655 = vld [vmem:[%s344 + $0x750] sm:$0xff]
          %v656 = vld [vmem:[%s344 + $0x758] sm:$0xff]
          %v657 = vld [vmem:[%s344 + $0x760] sm:$0xff]
          %v658 = vld [vmem:[%s344 + $0x768] sm:$0xff]
          %v659 = vld [vmem:[%s344 + $0x770] sm:$0xff]
          %v660 = vld [vmem:[%s344 + $0x778] sm:$0xff]
          %v661 = vld [vmem:[%s344 + $0x780] sm:$0xff]
          %v662 = vld [vmem:[%s344 + $0x788] sm:$0xff]
          %v663 = vld [vmem:[%s344 + $0x790] sm:$0xff]
          %v664 = vld [vmem:[%s344 + $0x798] sm:$0xff]
          %v665 = vld [vmem:[%s344 + $0x7a0] sm:$0xff]
          %v666 = vld [vmem:[%s344 + $0x7a8] sm:$0xff]
          %v667 = vld [vmem:[%s344 + $0x7b0] sm:$0xff]
          %v668 = vld [vmem:[%s344 + $0x7b8] sm:$0xff]
          %v669 = vld [vmem:[%s344 + $0x7c0] sm:$0xff]
          %v670 = vld [vmem:[%s344 + $0x7c8] sm:$0xff]
          %v671 = vld [vmem:[%s344 + $0x7d0] sm:$0xff]
          %v672 = vld [vmem:[%s344 + $0x7d8] sm:$0xff]
          %v673 = vld [vmem:[%s344 + $0x7e0] sm:$0xff]
          %v674 = vld [vmem:[%s344 + $0x7e8] sm:$0xff]
          %v675 = vld [vmem:[%s344 + $0x7f0] sm:$0xff]
          %v676 = vld [vmem:[%s344 + $0x7f8] sm:$0xff]
          %v677 = vld [vmem:[%s344 + $0x800] sm:$0xff]
          %v678 = vld [vmem:[%s344 + $0x808] sm:$0xff]
          %v679 = vld [vmem:[%s344 + $0x810] sm:$0xff]
          %v680 = vld [vmem:[%s344 + $0x818] sm:$0xff]
          %v681 = vld [vmem:[%s344 + $0x820] sm:$0xff]
          %v682 = vld [vmem:[%s344 + $0x828] sm:$0xff]
          %v683 = vld [vmem:[%s344 + $0x830] sm:$0xff]
          %v684 = vld [vmem:[%s344 + $0x838] sm:$0xff]
          %v685 = vld [vmem:[%s344 + $0x840] sm:$0xff]
          %v686 = vld [vmem:[%s344 + $0x848] sm:$0xff]
          %v687 = vld [vmem:[%s344 + $0x850] sm:$0xff]
          %v688 = vld [vmem:[%s344 + $0x858] sm:$0xff]
          %v689 = vld [vmem:[%s344 + $0x860] sm:$0xff]
          %v690 = vld [vmem:[%s344 + $0x868] sm:$0xff]
          %v691 = vld [vmem:[%s344 + $0x870] sm:$0xff]
          %v692 = vld [vmem:[%s344 + $0x878] sm:$0xff]
          %v693 = vld [vmem:[%s344 + $0x880] sm:$0xff]
          %v694 = vld [vmem:[%s344 + $0x888] sm:$0xff]
          %v695 = vld [vmem:[%s344 + $0x890] sm:$0xff]
          %v696 = vld [vmem:[%s344 + $0x898] sm:$0xff]
          %v697 = vld [vmem:[%s344 + $0x8a0] sm:$0xff]
          %v698 = vld [vmem:[%s344 + $0x8a8] sm:$0xff]
          %v699 = vld [vmem:[%s344 + $0x8b0] sm:$0xff]
          %v700 = vld [vmem:[%s344 + $0x8b8] sm:$0xff]
          %v701 = vld [vmem:[%s344 + $0x8c0] sm:$0xff]
          %v702 = vld [vmem:[%s344 + $0x8c8] sm:$0xff]
          %v703 = vld [vmem:[%s344 + $0x8d0] sm:$0xff]
          %v704 = vld [vmem:[%s344 + $0x8d8] sm:$0xff]
          %v705 = vld [vmem:[%s344 + $0x8e0] sm:$0xff]
          %v706 = vld [vmem:[%s344 + $0x8e8] sm:$0xff]
          %v707 = vld [vmem:[%s344 + $0x8f0] sm:$0xff]
          %v708 = vld [vmem:[%s344 + $0x8f8] sm:$0xff]
          %v709 = vld [vmem:[%s344 + $0x900] sm:$0xff]
          %v710 = vld [vmem:[%s344 + $0x908] sm:$0xff]
          %v711 = vld [vmem:[%s344 + $0x910] sm:$0xff]
          %v712 = vld [vmem:[%s344 + $0x918] sm:$0xff]
          %v713 = vld [vmem:[%s344 + $0x920] sm:$0xff]
          %v714 = vld [vmem:[%s344 + $0x928] sm:$0xff]
          %v715 = vld [vmem:[%s344 + $0x930] sm:$0xff]
          %v716 = vld [vmem:[%s344 + $0x938] sm:$0xff]
          %v717 = vld [vmem:[%s344 + $0x940] sm:$0xff]
          %v718 = vld [vmem:[%s344 + $0x948] sm:$0xff]
          %v719 = vld [vmem:[%s344 + $0x950] sm:$0xff]
          %v720 = vld [vmem:[%s344 + $0x958] sm:$0xff]
          %v721 = vld [vmem:[%s344 + $0x960] sm:$0xff]
          %v722 = vld [vmem:[%s344 + $0x968] sm:$0xff]
          %v723 = vld [vmem:[%s344 + $0x970] sm:$0xff]
          %v724 = vld [vmem:[%s344 + $0x978] sm:$0xff]
          %v725 = vld [vmem:[%s344 + $0x980] sm:$0xff]
          %v726 = vld [vmem:[%s344 + $0x988] sm:$0xff]
          %v727 = vld [vmem:[%s344 + $0x990] sm:$0xff]
          %v728 = vld [vmem:[%s344 + $0x998] sm:$0xff]
          %v729 = vld [vmem:[%s344 + $0x9a0] sm:$0xff]
          %v730 = vld [vmem:[%s344 + $0x9a8] sm:$0xff]
          %v731 = vld [vmem:[%s344 + $0x9b0] sm:$0xff]
          %v732 = vld [vmem:[%s344 + $0x9b8] sm:$0xff]
          %v733 = vld [vmem:[%s344 + $0x9c0] sm:$0xff]
          %v734 = vld [vmem:[%s344 + $0x9c8] sm:$0xff]
          %v735 = vld [vmem:[%s344 + $0x9d0] sm:$0xff]
          %v736 = vld [vmem:[%s344 + $0x9d8] sm:$0xff]
          %v737 = vld [vmem:[%s344 + $0x9e0] sm:$0xff]
          %v738 = vld [vmem:[%s344 + $0x9e8] sm:$0xff]
          %v739 = vld [vmem:[%s344 + $0x9f0] sm:$0xff]
          %v740 = vld [vmem:[%s344 + $0x9f8] sm:$0xff]
          %v741 = vld [vmem:[%s344 + $0xa00] sm:$0xff]
          %v742 = vld [vmem:[%s344 + $0xa08] sm:$0xff]
          %v743 = vld [vmem:[%s344 + $0xa10] sm:$0xff]
          %v744 = vld [vmem:[%s344 + $0xa18] sm:$0xff]
          %v745 = vld [vmem:[%s344 + $0xa20] sm:$0xff]
          %v746 = vld [vmem:[%s344 + $0xa28] sm:$0xff]
          %v747 = vld [vmem:[%s344 + $0xa30] sm:$0xff]
          %v748 = vld [vmem:[%s344 + $0xa38] sm:$0xff]
          %v749 = vld [vmem:[%s344 + $0xa40] sm:$0xff]
          %v750 = vld [vmem:[%s344 + $0xa48] sm:$0xff]
          %v751 = vld [vmem:[%s344 + $0xa50] sm:$0xff]
          %v752 = vld [vmem:[%s344 + $0xa58] sm:$0xff]
          %v753 = vld [vmem:[%s344 + $0xa60] sm:$0xff]
          %v754 = vld [vmem:[%s344 + $0xa68] sm:$0xff]
          %v755 = vld [vmem:[%s344 + $0xa70] sm:$0xff]
          %v756 = vld [vmem:[%s344 + $0xa78] sm:$0xff]
          %v757 = vld [vmem:[%s344 + $0xa80] sm:$0xff]
          %v758 = vld [vmem:[%s344 + $0xa88] sm:$0xff]
          %v759 = vld [vmem:[%s344 + $0xa90] sm:$0xff]
          %v760 = vld [vmem:[%s344 + $0xa98] sm:$0xff]
          %v761 = vld [vmem:[%s344 + $0xaa0] sm:$0xff]
          %v762 = vld [vmem:[%s344 + $0xaa8] sm:$0xff]
          %v763 = vld [vmem:[%s344 + $0xab0] sm:$0xff]
          %v764 = vld [vmem:[%s344 + $0xab8] sm:$0xff]
          %v765 = vld [vmem:[%s344 + $0xac0] sm:$0xff]
          %v766 = vld [vmem:[%s344 + $0xac8] sm:$0xff]
          %v767 = vld [vmem:[%s344 + $0xad0] sm:$0xff]
          %v768 = vld [vmem:[%s344 + $0xad8] sm:$0xff]
          %v769 = vld [vmem:[%s344 + $0xae0] sm:$0xff]
          %v770 = vld [vmem:[%s344 + $0xae8] sm:$0xff]
          %v771 = vld [vmem:[%s344 + $0xaf0] sm:$0xff]
          %v772 = vld [vmem:[%s344 + $0xaf8] sm:$0xff]
          %v773 = vld [vmem:[%s344 + $0xb00] sm:$0xff]
          %v774 = vld [vmem:[%s344 + $0xb08] sm:$0xff]
          %v775 = vld [vmem:[%s344 + $0xb10] sm:$0xff]
          %v776 = vld [vmem:[%s344 + $0xb18] sm:$0xff]
          %v777 = vld [vmem:[%s344 + $0xb20] sm:$0xff]
          %v778 = vld [vmem:[%s344 + $0xb28] sm:$0xff]
          %v779 = vld [vmem:[%s344 + $0xb30] sm:$0xff]
          %v780 = vld [vmem:[%s344 + $0xb38] sm:$0xff]
          %v781 = vld [vmem:[%s344 + $0xb40] sm:$0xff]
          %v782 = vld [vmem:[%s344 + $0xb48] sm:$0xff]
          %v783 = vld [vmem:[%s344 + $0xb50] sm:$0xff]
          %v784 = vld [vmem:[%s344 + $0xb58] sm:$0xff]
          %v785 = vld [vmem:[%s344 + $0xb60] sm:$0xff]
          %v786 = vld [vmem:[%s344 + $0xb68] sm:$0xff]
          %v787 = vld [vmem:[%s344 + $0xb70] sm:$0xff]
          %v788 = vld [vmem:[%s344 + $0xb78] sm:$0xff]
          %v789 = vld [vmem:[%s344 + $0xb80] sm:$0xff]
          %v790 = vld [vmem:[%s344 + $0xb88] sm:$0xff]
          %v791 = vld [vmem:[%s344 + $0xb90] sm:$0xff]
          %v792 = vld [vmem:[%s344 + $0xb98] sm:$0xff]
          %v793 = vld [vmem:[%s344 + $0xba0] sm:$0xff]
          %v794 = vld [vmem:[%s344 + $0xba8] sm:$0xff]
          %v795 = vld [vmem:[%s344 + $0xbb0] sm:$0xff]
          %v796 = vld [vmem:[%s344 + $0xbb8] sm:$0xff]
          %v797 = vld [vmem:[%s344 + $0xbc0] sm:$0xff]
          %v798 = vld [vmem:[%s344 + $0xbc8] sm:$0xff]
          %v799 = vld [vmem:[%s344 + $0xbd0] sm:$0xff]
          %v800 = vld [vmem:[%s344 + $0xbd8] sm:$0xff]
          %v801 = vld [vmem:[%s344 + $0xbe0] sm:$0xff]
          %v802 = vld [vmem:[%s344 + $0xbe8] sm:$0xff]
          %v803 = vld [vmem:[%s344 + $0xbf0] sm:$0xff]
          %v804 = vld [vmem:[%s344 + $0xbf8] sm:$0xff]
          %v805 = vld [vmem:[%s344 + $0xc00] sm:$0xff]
          %v806 = vld [vmem:[%s344 + $0xc08] sm:$0xff]
          %v807 = vld [vmem:[%s344 + $0xc10] sm:$0xff]
          %v808 = vld [vmem:[%s344 + $0xc18] sm:$0xff]
          %v809 = vld [vmem:[%s344 + $0xc20] sm:$0xff]
          %v810 = vld [vmem:[%s344 + $0xc28] sm:$0xff]
          %v811 = vld [vmem:[%s344 + $0xc30] sm:$0xff]
          %v812 = vld [vmem:[%s344 + $0xc38] sm:$0xff]
          %v813 = vld [vmem:[%s344 + $0xc40] sm:$0xff]
          %v814 = vld [vmem:[%s344 + $0xc48] sm:$0xff]
          %v815 = vld [vmem:[%s344 + $0xc50] sm:$0xff]
          %v816 = vld [vmem:[%s344 + $0xc58] sm:$0xff]
          %v817 = vld [vmem:[%s344 + $0xc60] sm:$0xff]
          %v818 = vld [vmem:[%s344 + $0xc68] sm:$0xff]
          %v819 = vld [vmem:[%s344 + $0xc70] sm:$0xff]
          %v820 = vld [vmem:[%s344 + $0xc78] sm:$0xff]
          %v821 = vld [vmem:[%s344 + $0xc80] sm:$0xff]
          %v822 = vld [vmem:[%s344 + $0xc88] sm:$0xff]
          %v823 = vld [vmem:[%s344 + $0xc90] sm:$0xff]
          %v824 = vld [vmem:[%s344 + $0xc98] sm:$0xff]
          %v825 = vld [vmem:[%s344 + $0xca0] sm:$0xff]
          %v826 = vld [vmem:[%s344 + $0xca8] sm:$0xff]
          %v827 = vld [vmem:[%s344 + $0xcb0] sm:$0xff]
          %v828 = vld [vmem:[%s344 + $0xcb8] sm:$0xff]
          %v829 = vld [vmem:[%s344 + $0xcc0] sm:$0xff]
          %v830 = vld [vmem:[%s344 + $0xcc8] sm:$0xff]
          %v831 = vld [vmem:[%s344 + $0xcd0] sm:$0xff]
          %v832 = vld [vmem:[%s344 + $0xcd8] sm:$0xff]
          %v833 = vld [vmem:[%s344 + $0xce0] sm:$0xff]
          %v834 = vld [vmem:[%s344 + $0xce8] sm:$0xff]
          %v835 = vld [vmem:[%s344 + $0xcf0] sm:$0xff]
          %v836 = vld [vmem:[%s344 + $0xcf8] sm:$0xff]
          %v837 = vld [vmem:[%s344 + $0xd00] sm:$0xff]
          %v838 = vld [vmem:[%s344 + $0xd08] sm:$0xff]
          %v839 = vld [vmem:[%s344 + $0xd10] sm:$0xff]
          %v840 = vld [vmem:[%s344 + $0xd18] sm:$0xff]
          %v841 = vld [vmem:[%s344 + $0xd20] sm:$0xff]
          %v842 = vld [vmem:[%s344 + $0xd28] sm:$0xff]
          %v843 = vld [vmem:[%s344 + $0xd30] sm:$0xff]
          %v844 = vld [vmem:[%s344 + $0xd38] sm:$0xff]
          %v845 = vld [vmem:[%s344 + $0xd40] sm:$0xff]
          %v846 = vld [vmem:[%s344 + $0xd48] sm:$0xff]
          %v847 = vld [vmem:[%s344 + $0xd50] sm:$0xff]
          %v848 = vld [vmem:[%s344 + $0xd58] sm:$0xff]
          %v849 = vld [vmem:[%s344 + $0xd60] sm:$0xff]
          %v850 = vld [vmem:[%s344 + $0xd68] sm:$0xff]
          %v851 = vld [vmem:[%s344 + $0xd70] sm:$0xff]
          %v852 = vld [vmem:[%s344 + $0xd78] sm:$0xff]
          %v853 = vld [vmem:[%s344 + $0xd80] sm:$0xff]
          %v854 = vld [vmem:[%s344 + $0xd88] sm:$0xff]
          %v855 = vld [vmem:[%s344 + $0xd90] sm:$0xff]
          %v856 = vld [vmem:[%s344 + $0xd98] sm:$0xff]
          %v857 = vld [vmem:[%s344 + $0xda0] sm:$0xff]
          %v858 = vld [vmem:[%s344 + $0xda8] sm:$0xff]
          %v859 = vld [vmem:[%s344 + $0xdb0] sm:$0xff]
          %v860 = vld [vmem:[%s344 + $0xdb8] sm:$0xff]
          %v861 = vld [vmem:[%s344 + $0xdc0] sm:$0xff]
          %v862 = vld [vmem:[%s344 + $0xdc8] sm:$0xff]
          %v863 = vld [vmem:[%s344 + $0xdd0] sm:$0xff]
          %v864 = vld [vmem:[%s344 + $0xdd8] sm:$0xff]
          %v865 = vld [vmem:[%s344 + $0xde0] sm:$0xff]
          %v866 = vld [vmem:[%s344 + $0xde8] sm:$0xff]
          %v867 = vld [vmem:[%s344 + $0xdf0] sm:$0xff]
          %v868 = vld [vmem:[%s344 + $0xdf8] sm:$0xff]
          %v869 = vld [vmem:[%s344 + $0xe00] sm:$0xff]
          %v870 = vld [vmem:[%s344 + $0xe08] sm:$0xff]
          %v871 = vld [vmem:[%s344 + $0xe10] sm:$0xff]
          %v872 = vld [vmem:[%s344 + $0xe18] sm:$0xff]
          %v873 = vld [vmem:[%s344 + $0xe20] sm:$0xff]
          %v874 = vld [vmem:[%s344 + $0xe28] sm:$0xff]
          %v875 = vld [vmem:[%s344 + $0xe30] sm:$0xff]
          %v876 = vld [vmem:[%s344 + $0xe38] sm:$0xff]
          %v877 = vld [vmem:[%s344 + $0xe40] sm:$0xff]
          %v878 = vld [vmem:[%s344 + $0xe48] sm:$0xff]
          %v879 = vld [vmem:[%s344 + $0xe50] sm:$0xff]
          %v880 = vld [vmem:[%s344 + $0xe58] sm:$0xff]
          %v881 = vld [vmem:[%s344 + $0xe60] sm:$0xff]
          %v882 = vld [vmem:[%s344 + $0xe68] sm:$0xff]
          %v883 = vld [vmem:[%s344 + $0xe70] sm:$0xff]
          %v884 = vld [vmem:[%s344 + $0xe78] sm:$0xff]
          %v885 = vld [vmem:[%s344 + $0xe80] sm:$0xff]
          %v886 = vld [vmem:[%s344 + $0xe88] sm:$0xff]
          %v887 = vld [vmem:[%s344 + $0xe90] sm:$0xff]
          %v888 = vld [vmem:[%s344 + $0xe98] sm:$0xff]
          %v889 = vld [vmem:[%s344 + $0xea0] sm:$0xff]
          %v890 = vld [vmem:[%s344 + $0xea8] sm:$0xff]
          %v891 = vld [vmem:[%s344 + $0xeb0] sm:$0xff]
          %v892 = vld [vmem:[%s344 + $0xeb8] sm:$0xff]
          %v893 = vld [vmem:[%s344 + $0xec0] sm:$0xff]
          %v894 = vld [vmem:[%s344 + $0xec8] sm:$0xff]
          %v895 = vld [vmem:[%s344 + $0xed0] sm:$0xff]
          %v896 = vld [vmem:[%s344 + $0xed8] sm:$0xff]
          %v897 = vld [vmem:[%s344 + $0xee0] sm:$0xff]
          %v898 = vld [vmem:[%s344 + $0xee8] sm:$0xff]
          %v899 = vld [vmem:[%s344 + $0xef0] sm:$0xff]
          %v900 = vld [vmem:[%s344 + $0xef8] sm:$0xff]
          %v901 = vld [vmem:[%s344 + $0xf00] sm:$0xff]
          %v902 = vld [vmem:[%s344 + $0xf08] sm:$0xff]
          %v903 = vld [vmem:[%s344 + $0xf10] sm:$0xff]
          %v904 = vld [vmem:[%s344 + $0xf18] sm:$0xff]
          %v905 = vld [vmem:[%s344 + $0xf20] sm:$0xff]
          %v906 = vld [vmem:[%s344 + $0xf28] sm:$0xff]
          %v907 = vld [vmem:[%s344 + $0xf30] sm:$0xff]
          %v908 = vld [vmem:[%s344 + $0xf38] sm:$0xff]
          %v909 = vld [vmem:[%s344 + $0xf40] sm:$0xff]
          %v910 = vld [vmem:[%s344 + $0xf48] sm:$0xff]
          %v911 = vld [vmem:[%s344 + $0xf50] sm:$0xff]
          %v912 = vld [vmem:[%s344 + $0xf58] sm:$0xff]
          %v913 = vld [vmem:[%s344 + $0xf60] sm:$0xff]
          %v914 = vld [vmem:[%s344 + $0xf68] sm:$0xff]
          %v915 = vld [vmem:[%s344 + $0xf70] sm:$0xff]
          %v916 = vld [vmem:[%s344 + $0xf78] sm:$0xff]
          %v917 = vld [vmem:[%s344 + $0xf80] sm:$0xff]
          %v918 = vld [vmem:[%s344 + $0xf88] sm:$0xff]
          %v919 = vld [vmem:[%s344 + $0xf90] sm:$0xff]
          %v920 = vld [vmem:[%s344 + $0xf98] sm:$0xff]
          %v921 = vld [vmem:[%s344 + $0xfa0] sm:$0xff]
          %v922 = vld [vmem:[%s344 + $0xfa8] sm:$0xff]
          %v923 = vld [vmem:[%s344 + $0xfb0] sm:$0xff]
          %v924 = vld [vmem:[%s344 + $0xfb8] sm:$0xff]
          %v925 = vld [vmem:[%s344 + $0xfc0] sm:$0xff]
          %v926 = vld [vmem:[%s344 + $0xfc8] sm:$0xff]
          %v927 = vld [vmem:[%s344 + $0xfd0] sm:$0xff]
          %v928 = vld [vmem:[%s344 + $0xfd8] sm:$0xff]
          %v929 = vld [vmem:[%s344 + $0xfe0] sm:$0xff]
          %v930 = vld [vmem:[%s344 + $0xfe8] sm:$0xff]
          %v931 = vld [vmem:[%s344 + $0xff0] sm:$0xff]
          %v932 = vld [vmem:[%s344 + $0xff8] sm:$0xff]
          %v933 = vpack.c.bf16 %v437, %v421
          %v934 = vpack.c.bf16 %v438, %v422
          %v935 = vpack.c.bf16 %v439, %v423
          %v936 = vpack.c.bf16 %v440, %v424
          %v937 = vpack.c.bf16 %v441, %v425
          %v938 = vpack.c.bf16 %v442, %v426
          %v939 = vpack.c.bf16 %v443, %v427
          %v940 = vpack.c.bf16 %v444, %v428
          %v941 = vpack.c.bf16 %v445, %v429
          %v942 = vpack.c.bf16 %v446, %v430
          %v943 = vpack.c.bf16 %v447, %v431
          %v944 = vpack.c.bf16 %v448, %v432
          %v945 = vpack.c.bf16 %v449, %v433
          %v946 = vpack.c.bf16 %v450, %v434
          %v947 = vpack.c.bf16 %v451, %v435
          %v948 = vpack.c.bf16 %v452, %v436
          %v949 = vpack.c.bf16 %v469, %v453
          %v950 = vpack.c.bf16 %v470, %v454
          %v951 = vpack.c.bf16 %v471, %v455
          %v952 = vpack.c.bf16 %v472, %v456
          %v953 = vpack.c.bf16 %v473, %v457
          %v954 = vpack.c.bf16 %v474, %v458
          %v955 = vpack.c.bf16 %v475, %v459
          %v956 = vpack.c.bf16 %v476, %v460
          %v957 = vpack.c.bf16 %v477, %v461
          %v958 = vpack.c.bf16 %v478, %v462
          %v959 = vpack.c.bf16 %v479, %v463
          %v960 = vpack.c.bf16 %v480, %v464
          %v961 = vpack.c.bf16 %v481, %v465
          %v962 = vpack.c.bf16 %v482, %v466
          %v963 = vpack.c.bf16 %v483, %v467
          %v964 = vpack.c.bf16 %v484, %v468
          %v965 = vpack.c.bf16 %v501, %v485
          %v966 = vpack.c.bf16 %v502, %v486
          %v967 = vpack.c.bf16 %v503, %v487
          %v968 = vpack.c.bf16 %v504, %v488
          %v969 = vpack.c.bf16 %v505, %v489
          %v970 = vpack.c.bf16 %v506, %v490
          %v971 = vpack.c.bf16 %v507, %v491
          %v972 = vpack.c.bf16 %v508, %v492
          %v973 = vpack.c.bf16 %v509, %v493
          %v974 = vpack.c.bf16 %v510, %v494
          %v975 = vpack.c.bf16 %v511, %v495
          %v976 = vpack.c.bf16 %v512, %v496
          %v977 = vpack.c.bf16 %v513, %v497
          %v978 = vpack.c.bf16 %v514, %v498
          %v979 = vpack.c.bf16 %v515, %v499
          %v980 = vpack.c.bf16 %v516, %v500
          %v981 = vpack.c.bf16 %v533, %v517
          %v982 = vpack.c.bf16 %v534, %v518
          %v983 = vpack.c.bf16 %v535, %v519
          %v984 = vpack.c.bf16 %v536, %v520
          %v985 = vpack.c.bf16 %v537, %v521
          %v986 = vpack.c.bf16 %v538, %v522
          %v987 = vpack.c.bf16 %v539, %v523
          %v988 = vpack.c.bf16 %v540, %v524
          %v989 = vpack.c.bf16 %v541, %v525
          %v990 = vpack.c.bf16 %v542, %v526
          %v991 = vpack.c.bf16 %v543, %v527
          %v992 = vpack.c.bf16 %v544, %v528
          %v993 = vpack.c.bf16 %v545, %v529
          %v994 = vpack.c.bf16 %v546, %v530
          %v995 = vpack.c.bf16 %v547, %v531
          %v996 = vpack.c.bf16 %v548, %v532
          %v997 = vpack.c.bf16 %v565, %v549
          %v998 = vpack.c.bf16 %v566, %v550
          %v999 = vpack.c.bf16 %v567, %v551
          %v1000 = vpack.c.bf16 %v568, %v552
          %v1001 = vpack.c.bf16 %v569, %v553
          %v1002 = vpack.c.bf16 %v570, %v554
          %v1003 = vpack.c.bf16 %v571, %v555
          %v1004 = vpack.c.bf16 %v572, %v556
          %v1005 = vpack.c.bf16 %v573, %v557
          %v1006 = vpack.c.bf16 %v574, %v558
          %v1007 = vpack.c.bf16 %v575, %v559
          %v1008 = vpack.c.bf16 %v576, %v560
          %v1009 = vpack.c.bf16 %v577, %v561
          %v1010 = vpack.c.bf16 %v578, %v562
          %v1011 = vpack.c.bf16 %v579, %v563
          %v1012 = vpack.c.bf16 %v580, %v564
          %v1013 = vpack.c.bf16 %v597, %v581
          %v1014 = vpack.c.bf16 %v598, %v582
          %v1015 = vpack.c.bf16 %v599, %v583
          %v1016 = vpack.c.bf16 %v600, %v584
          %v1017 = vpack.c.bf16 %v601, %v585
          %v1018 = vpack.c.bf16 %v602, %v586
          %v1019 = vpack.c.bf16 %v603, %v587
          %v1020 = vpack.c.bf16 %v604, %v588
          %v1021 = vpack.c.bf16 %v605, %v589
          %v1022 = vpack.c.bf16 %v606, %v590
          %v1023 = vpack.c.bf16 %v607, %v591
          %v1024 = vpack.c.bf16 %v608, %v592
          %v1025 = vpack.c.bf16 %v609, %v593
          %v1026 = vpack.c.bf16 %v610, %v594
          %v1027 = vpack.c.bf16 %v611, %v595
          %v1028 = vpack.c.bf16 %v612, %v596
          %v1029 = vpack.c.bf16 %v629, %v613
          %v1030 = vpack.c.bf16 %v630, %v614
          %v1031 = vpack.c.bf16 %v631, %v615
          %v1032 = vpack.c.bf16 %v632, %v616
          %v1033 = vpack.c.bf16 %v633, %v617
          %v1034 = vpack.c.bf16 %v634, %v618
          %v1035 = vpack.c.bf16 %v635, %v619
          %v1036 = vpack.c.bf16 %v636, %v620
          %v1037 = vpack.c.bf16 %v637, %v621
          %v1038 = vpack.c.bf16 %v638, %v622
          %v1039 = vpack.c.bf16 %v639, %v623
          %v1040 = vpack.c.bf16 %v640, %v624
          %v1041 = vpack.c.bf16 %v641, %v625
          %v1042 = vpack.c.bf16 %v642, %v626
          %v1043 = vpack.c.bf16 %v643, %v627
          %v1044 = vpack.c.bf16 %v644, %v628
          %v1045 = vpack.c.bf16 %v661, %v645
          %v1046 = vpack.c.bf16 %v662, %v646
          %v1047 = vpack.c.bf16 %v663, %v647
          %v1048 = vpack.c.bf16 %v664, %v648
          %v1049 = vpack.c.bf16 %v665, %v649
          %v1050 = vpack.c.bf16 %v666, %v650
          %v1051 = vpack.c.bf16 %v667, %v651
          %v1052 = vpack.c.bf16 %v668, %v652
          %v1053 = vpack.c.bf16 %v669, %v653
          %v1054 = vpack.c.bf16 %v670, %v654
          %v1055 = vpack.c.bf16 %v671, %v655
          %v1056 = vpack.c.bf16 %v672, %v656
          %v1057 = vpack.c.bf16 %v673, %v657
          %v1058 = vpack.c.bf16 %v674, %v658
          %v1059 = vpack.c.bf16 %v675, %v659
          %v1060 = vpack.c.bf16 %v676, %v660
          %v1061 = vpack.c.bf16 %v693, %v677
          %v1062 = vpack.c.bf16 %v694, %v678
          %v1063 = vpack.c.bf16 %v695, %v679
          %v1064 = vpack.c.bf16 %v696, %v680
          %v1065 = vpack.c.bf16 %v697, %v681
          %v1066 = vpack.c.bf16 %v698, %v682
          %v1067 = vpack.c.bf16 %v699, %v683
          %v1068 = vpack.c.bf16 %v700, %v684
          %v1069 = vpack.c.bf16 %v701, %v685
          %v1070 = vpack.c.bf16 %v702, %v686
          %v1071 = vpack.c.bf16 %v703, %v687
          %v1072 = vpack.c.bf16 %v704, %v688
          %v1073 = vpack.c.bf16 %v705, %v689
          %v1074 = vpack.c.bf16 %v706, %v690
          %v1075 = vpack.c.bf16 %v707, %v691
          %v1076 = vpack.c.bf16 %v708, %v692
          %v1077 = vpack.c.bf16 %v725, %v709
          %v1078 = vpack.c.bf16 %v726, %v710
          %v1079 = vpack.c.bf16 %v727, %v711
          %v1080 = vpack.c.bf16 %v728, %v712
          %v1081 = vpack.c.bf16 %v729, %v713
          %v1082 = vpack.c.bf16 %v730, %v714
          %v1083 = vpack.c.bf16 %v731, %v715
          %v1084 = vpack.c.bf16 %v732, %v716
          %v1085 = vpack.c.bf16 %v733, %v717
          %v1086 = vpack.c.bf16 %v734, %v718
          %v1087 = vpack.c.bf16 %v735, %v719
          %v1088 = vpack.c.bf16 %v736, %v720
          %v1089 = vpack.c.bf16 %v737, %v721
          %v1090 = vpack.c.bf16 %v738, %v722
          %v1091 = vpack.c.bf16 %v739, %v723
          %v1092 = vpack.c.bf16 %v740, %v724
          %v1093 = vpack.c.bf16 %v757, %v741
          %v1094 = vpack.c.bf16 %v758, %v742
          %v1095 = vpack.c.bf16 %v759, %v743
          %v1096 = vpack.c.bf16 %v760, %v744
          %v1097 = vpack.c.bf16 %v761, %v745
          %v1098 = vpack.c.bf16 %v762, %v746
          %v1099 = vpack.c.bf16 %v763, %v747
          %v1100 = vpack.c.bf16 %v764, %v748
          %v1101 = vpack.c.bf16 %v765, %v749
          %v1102 = vpack.c.bf16 %v766, %v750
          %v1103 = vpack.c.bf16 %v767, %v751
          %v1104 = vpack.c.bf16 %v768, %v752
          %v1105 = vpack.c.bf16 %v769, %v753
          %v1106 = vpack.c.bf16 %v770, %v754
          %v1107 = vpack.c.bf16 %v771, %v755
          %v1108 = vpack.c.bf16 %v772, %v756
          %v1109 = vpack.c.bf16 %v789, %v773
          %v1110 = vpack.c.bf16 %v790, %v774
          %v1111 = vpack.c.bf16 %v791, %v775
          %v1112 = vpack.c.bf16 %v792, %v776
          %v1113 = vpack.c.bf16 %v793, %v777
          %v1114 = vpack.c.bf16 %v794, %v778
          %v1115 = vpack.c.bf16 %v795, %v779
          %v1116 = vpack.c.bf16 %v796, %v780
          %v1117 = vpack.c.bf16 %v797, %v781
          %v1118 = vpack.c.bf16 %v798, %v782
          %v1119 = vpack.c.bf16 %v799, %v783
          %v1120 = vpack.c.bf16 %v800, %v784
          %v1121 = vpack.c.bf16 %v801, %v785
          %v1122 = vpack.c.bf16 %v802, %v786
          %v1123 = vpack.c.bf16 %v803, %v787
          %v1124 = vpack.c.bf16 %v804, %v788
          %v1125 = vpack.c.bf16 %v821, %v805
          %v1126 = vpack.c.bf16 %v822, %v806
          %v1127 = vpack.c.bf16 %v823, %v807
          %v1128 = vpack.c.bf16 %v824, %v808
          %v1129 = vpack.c.bf16 %v825, %v809
          %v1130 = vpack.c.bf16 %v826, %v810
          %v1131 = vpack.c.bf16 %v827, %v811
          %v1132 = vpack.c.bf16 %v828, %v812
          %v1133 = vpack.c.bf16 %v829, %v813
          %v1134 = vpack.c.bf16 %v830, %v814
          %v1135 = vpack.c.bf16 %v831, %v815
          %v1136 = vpack.c.bf16 %v832, %v816
          %v1137 = vpack.c.bf16 %v833, %v817
          %v1138 = vpack.c.bf16 %v834, %v818
          %v1139 = vpack.c.bf16 %v835, %v819
          %v1140 = vpack.c.bf16 %v836, %v820
          %v1141 = vpack.c.bf16 %v853, %v837
          %v1142 = vpack.c.bf16 %v854, %v838
          %v1143 = vpack.c.bf16 %v855, %v839
          %v1144 = vpack.c.bf16 %v856, %v840
          %v1145 = vpack.c.bf16 %v857, %v841
          %v1146 = vpack.c.bf16 %v858, %v842
          %v1147 = vpack.c.bf16 %v859, %v843
          %v1148 = vpack.c.bf16 %v860, %v844
          %v1149 = vpack.c.bf16 %v861, %v845
          %v1150 = vpack.c.bf16 %v862, %v846
          %v1151 = vpack.c.bf16 %v863, %v847
          %v1152 = vpack.c.bf16 %v864, %v848
          %v1153 = vpack.c.bf16 %v865, %v849
          %v1154 = vpack.c.bf16 %v866, %v850
          %v1155 = vpack.c.bf16 %v867, %v851
          %v1156 = vpack.c.bf16 %v868, %v852
          %v1157 = vpack.c.bf16 %v885, %v869
          %v1158 = vpack.c.bf16 %v886, %v870
          %v1159 = vpack.c.bf16 %v887, %v871
          %v1160 = vpack.c.bf16 %v888, %v872
          %v1161 = vpack.c.bf16 %v889, %v873
          %v1162 = vpack.c.bf16 %v890, %v874
          %v1163 = vpack.c.bf16 %v891, %v875
          %v1164 = vpack.c.bf16 %v892, %v876
          %v1165 = vpack.c.bf16 %v893, %v877
          %v1166 = vpack.c.bf16 %v894, %v878
          %v1167 = vpack.c.bf16 %v895, %v879
          %v1168 = vpack.c.bf16 %v896, %v880
          %v1169 = vpack.c.bf16 %v897, %v881
          %v1170 = vpack.c.bf16 %v898, %v882
          %v1171 = vpack.c.bf16 %v899, %v883
          %v1172 = vpack.c.bf16 %v900, %v884
          %v1173 = vpack.c.bf16 %v917, %v901
          %v1174 = vpack.c.bf16 %v918, %v902
          %v1175 = vpack.c.bf16 %v919, %v903
          %v1176 = vpack.c.bf16 %v920, %v904
          %v1177 = vpack.c.bf16 %v921, %v905
          %v1178 = vpack.c.bf16 %v922, %v906
          %v1179 = vpack.c.bf16 %v923, %v907
          %v1180 = vpack.c.bf16 %v924, %v908
          %v1181 = vpack.c.bf16 %v925, %v909
          %v1182 = vpack.c.bf16 %v926, %v910
          %v1183 = vpack.c.bf16 %v927, %v911
          %v1184 = vpack.c.bf16 %v928, %v912
          %v1185 = vpack.c.bf16 %v929, %v913
          %v1186 = vpack.c.bf16 %v930, %v914
          %v1187 = vpack.c.bf16 %v931, %v915
          %v1188 = vpack.c.bf16 %v932, %v916
          %v1189 = vld [vmem:[#allocation15] sm:$0xff]
          %v1190 = vld [vmem:[#allocation15 + $0x8] sm:$0xff]
          %v1191 = vld [vmem:[#allocation15 + $0x10] sm:$0xff]
          %v1192 = vld [vmem:[#allocation15 + $0x18] sm:$0xff]
          %v1193 = vld [vmem:[#allocation15 + $0x20] sm:$0xff]
          %v1194 = vld [vmem:[#allocation15 + $0x28] sm:$0xff]
          %v1195 = vld [vmem:[#allocation15 + $0x30] sm:$0xff]
          %v1196 = vld [vmem:[#allocation15 + $0x38] sm:$0xff]
          %v1197 = vld [vmem:[#allocation15 + $0x40] sm:$0xff]
          %v1198 = vld [vmem:[#allocation15 + $0x48] sm:$0xff]
          %v1199 = vld [vmem:[#allocation15 + $0x50] sm:$0xff]
          %v1200 = vld [vmem:[#allocation15 + $0x58] sm:$0xff]
          %v1201 = vld [vmem:[#allocation15 + $0x60] sm:$0xff]
          %v1202 = vld [vmem:[#allocation15 + $0x68] sm:$0xff]
          %v1203 = vld [vmem:[#allocation15 + $0x70] sm:$0xff]
          %v1204 = vld [vmem:[#allocation15 + $0x78] sm:$0xff]
          %v1205 = vld [vmem:[#allocation15 + $0x80] sm:$0xff]
          %v1206 = vld [vmem:[#allocation15 + $0x88] sm:$0xff]
          %v1207 = vld [vmem:[#allocation15 + $0x90] sm:$0xff]
          %v1208 = vld [vmem:[#allocation15 + $0x98] sm:$0xff]
          %v1209 = vld [vmem:[#allocation15 + $0xa0] sm:$0xff]
          %v1210 = vld [vmem:[#allocation15 + $0xa8] sm:$0xff]
          %v1211 = vld [vmem:[#allocation15 + $0xb0] sm:$0xff]
          %v1212 = vld [vmem:[#allocation15 + $0xb8] sm:$0xff]
          %v1213 = vld [vmem:[#allocation15 + $0xc0] sm:$0xff]
          %v1214 = vld [vmem:[#allocation15 + $0xc8] sm:$0xff]
          %v1215 = vld [vmem:[#allocation15 + $0xd0] sm:$0xff]
          %v1216 = vld [vmem:[#allocation15 + $0xd8] sm:$0xff]
          %v1217 = vld [vmem:[#allocation15 + $0xe0] sm:$0xff]
          %v1218 = vld [vmem:[#allocation15 + $0xe8] sm:$0xff]
          %v1219 = vld [vmem:[#allocation15 + $0xf0] sm:$0xff]
          %v1220 = vld [vmem:[#allocation15 + $0xf8] sm:$0xff]
          %v1221 = vld [vmem:[#allocation15 + $0x100] sm:$0xff]
          %v1222 = vld [vmem:[#allocation15 + $0x108] sm:$0xff]
          %v1223 = vld [vmem:[#allocation15 + $0x110] sm:$0xff]
          %v1224 = vld [vmem:[#allocation15 + $0x118] sm:$0xff]
          %v1225 = vld [vmem:[#allocation15 + $0x120] sm:$0xff]
          %v1226 = vld [vmem:[#allocation15 + $0x128] sm:$0xff]
          %v1227 = vld [vmem:[#allocation15 + $0x130] sm:$0xff]
          %v1228 = vld [vmem:[#allocation15 + $0x138] sm:$0xff]
          %v1229 = vld [vmem:[#allocation15 + $0x140] sm:$0xff]
          %v1230 = vld [vmem:[#allocation15 + $0x148] sm:$0xff]
          %v1231 = vld [vmem:[#allocation15 + $0x150] sm:$0xff]
          %v1232 = vld [vmem:[#allocation15 + $0x158] sm:$0xff]
          %v1233 = vld [vmem:[#allocation15 + $0x160] sm:$0xff]
          %v1234 = vld [vmem:[#allocation15 + $0x168] sm:$0xff]
          %v1235 = vld [vmem:[#allocation15 + $0x170] sm:$0xff]
          %v1236 = vld [vmem:[#allocation15 + $0x178] sm:$0xff]
          %v1237 = vld [vmem:[#allocation15 + $0x180] sm:$0xff]
          %v1238 = vld [vmem:[#allocation15 + $0x188] sm:$0xff]
          %v1239 = vld [vmem:[#allocation15 + $0x190] sm:$0xff]
          %v1240 = vld [vmem:[#allocation15 + $0x198] sm:$0xff]
          %v1241 = vld [vmem:[#allocation15 + $0x1a0] sm:$0xff]
          %v1242 = vld [vmem:[#allocation15 + $0x1a8] sm:$0xff]
          %v1243 = vld [vmem:[#allocation15 + $0x1b0] sm:$0xff]
          %v1244 = vld [vmem:[#allocation15 + $0x1b8] sm:$0xff]
          %v1245 = vld [vmem:[#allocation15 + $0x1c0] sm:$0xff]
          %v1246 = vld [vmem:[#allocation15 + $0x1c8] sm:$0xff]
          %v1247 = vld [vmem:[#allocation15 + $0x1d0] sm:$0xff]
          %v1248 = vld [vmem:[#allocation15 + $0x1d8] sm:$0xff]
          %v1249 = vld [vmem:[#allocation15 + $0x1e0] sm:$0xff]
          %v1250 = vld [vmem:[#allocation15 + $0x1e8] sm:$0xff]
          %v1251 = vld [vmem:[#allocation15 + $0x1f0] sm:$0xff]
          %v1252 = vld [vmem:[#allocation15 + $0x1f8] sm:$0xff]
          %v1253 = vld [vmem:[#allocation15 + $0x200] sm:$0xff]
          %v1254 = vld [vmem:[#allocation15 + $0x208] sm:$0xff]
          %v1255 = vld [vmem:[#allocation15 + $0x210] sm:$0xff]
          %v1256 = vld [vmem:[#allocation15 + $0x218] sm:$0xff]
          %v1257 = vld [vmem:[#allocation15 + $0x220] sm:$0xff]
          %v1258 = vld [vmem:[#allocation15 + $0x228] sm:$0xff]
          %v1259 = vld [vmem:[#allocation15 + $0x230] sm:$0xff]
          %v1260 = vld [vmem:[#allocation15 + $0x238] sm:$0xff]
          %v1261 = vld [vmem:[#allocation15 + $0x240] sm:$0xff]
          %v1262 = vld [vmem:[#allocation15 + $0x248] sm:$0xff]
          %v1263 = vld [vmem:[#allocation15 + $0x250] sm:$0xff]
          %v1264 = vld [vmem:[#allocation15 + $0x258] sm:$0xff]
          %v1265 = vld [vmem:[#allocation15 + $0x260] sm:$0xff]
          %v1266 = vld [vmem:[#allocation15 + $0x268] sm:$0xff]
          %v1267 = vld [vmem:[#allocation15 + $0x270] sm:$0xff]
          %v1268 = vld [vmem:[#allocation15 + $0x278] sm:$0xff]
          %v1269 = vld [vmem:[#allocation15 + $0x280] sm:$0xff]
          %v1270 = vld [vmem:[#allocation15 + $0x288] sm:$0xff]
          %v1271 = vld [vmem:[#allocation15 + $0x290] sm:$0xff]
          %v1272 = vld [vmem:[#allocation15 + $0x298] sm:$0xff]
          %v1273 = vld [vmem:[#allocation15 + $0x2a0] sm:$0xff]
          %v1274 = vld [vmem:[#allocation15 + $0x2a8] sm:$0xff]
          %v1275 = vld [vmem:[#allocation15 + $0x2b0] sm:$0xff]
          %v1276 = vld [vmem:[#allocation15 + $0x2b8] sm:$0xff]
          %v1277 = vld [vmem:[#allocation15 + $0x2c0] sm:$0xff]
          %v1278 = vld [vmem:[#allocation15 + $0x2c8] sm:$0xff]
          %v1279 = vld [vmem:[#allocation15 + $0x2d0] sm:$0xff]
          %v1280 = vld [vmem:[#allocation15 + $0x2d8] sm:$0xff]
          %v1281 = vld [vmem:[#allocation15 + $0x2e0] sm:$0xff]
          %v1282 = vld [vmem:[#allocation15 + $0x2e8] sm:$0xff]
          %v1283 = vld [vmem:[#allocation15 + $0x2f0] sm:$0xff]
          %v1284 = vld [vmem:[#allocation15 + $0x2f8] sm:$0xff]
          %v1285 = vld [vmem:[#allocation15 + $0x300] sm:$0xff]
          %v1286 = vld [vmem:[#allocation15 + $0x308] sm:$0xff]
          %v1287 = vld [vmem:[#allocation15 + $0x310] sm:$0xff]
          %v1288 = vld [vmem:[#allocation15 + $0x318] sm:$0xff]
          %v1289 = vld [vmem:[#allocation15 + $0x320] sm:$0xff]
          %v1290 = vld [vmem:[#allocation15 + $0x328] sm:$0xff]
          %v1291 = vld [vmem:[#allocation15 + $0x330] sm:$0xff]
          %v1292 = vld [vmem:[#allocation15 + $0x338] sm:$0xff]
          %v1293 = vld [vmem:[#allocation15 + $0x340] sm:$0xff]
          %v1294 = vld [vmem:[#allocation15 + $0x348] sm:$0xff]
          %v1295 = vld [vmem:[#allocation15 + $0x350] sm:$0xff]
          %v1296 = vld [vmem:[#allocation15 + $0x358] sm:$0xff]
          %v1297 = vld [vmem:[#allocation15 + $0x360] sm:$0xff]
          %v1298 = vld [vmem:[#allocation15 + $0x368] sm:$0xff]
          %v1299 = vld [vmem:[#allocation15 + $0x370] sm:$0xff]
          %v1300 = vld [vmem:[#allocation15 + $0x378] sm:$0xff]
          %v1301 = vld [vmem:[#allocation15 + $0x380] sm:$0xff]
          %v1302 = vld [vmem:[#allocation15 + $0x388] sm:$0xff]
          %v1303 = vld [vmem:[#allocation15 + $0x390] sm:$0xff]
          %v1304 = vld [vmem:[#allocation15 + $0x398] sm:$0xff]
          %v1305 = vld [vmem:[#allocation15 + $0x3a0] sm:$0xff]
          %v1306 = vld [vmem:[#allocation15 + $0x3a8] sm:$0xff]
          %v1307 = vld [vmem:[#allocation15 + $0x3b0] sm:$0xff]
          %v1308 = vld [vmem:[#allocation15 + $0x3b8] sm:$0xff]
          %v1309 = vld [vmem:[#allocation15 + $0x3c0] sm:$0xff]
          %v1310 = vld [vmem:[#allocation15 + $0x3c8] sm:$0xff]
          %v1311 = vld [vmem:[#allocation15 + $0x3d0] sm:$0xff]
          %v1312 = vld [vmem:[#allocation15 + $0x3d8] sm:$0xff]
          %v1313 = vld [vmem:[#allocation15 + $0x3e0] sm:$0xff]
          %v1314 = vld [vmem:[#allocation15 + $0x3e8] sm:$0xff]
          %v1315 = vld [vmem:[#allocation15 + $0x3f0] sm:$0xff]
          %v1316 = vld [vmem:[#allocation15 + $0x3f8] sm:$0xff]
          %v1317 = vld [vmem:[#allocation15 + $0x400] sm:$0xff]
          %v1318 = vld [vmem:[#allocation15 + $0x408] sm:$0xff]
          %v1319 = vld [vmem:[#allocation15 + $0x410] sm:$0xff]
          %v1320 = vld [vmem:[#allocation15 + $0x418] sm:$0xff]
          %v1321 = vld [vmem:[#allocation15 + $0x420] sm:$0xff]
          %v1322 = vld [vmem:[#allocation15 + $0x428] sm:$0xff]
          %v1323 = vld [vmem:[#allocation15 + $0x430] sm:$0xff]
          %v1324 = vld [vmem:[#allocation15 + $0x438] sm:$0xff]
          %v1325 = vld [vmem:[#allocation15 + $0x440] sm:$0xff]
          %v1326 = vld [vmem:[#allocation15 + $0x448] sm:$0xff]
          %v1327 = vld [vmem:[#allocation15 + $0x450] sm:$0xff]
          %v1328 = vld [vmem:[#allocation15 + $0x458] sm:$0xff]
          %v1329 = vld [vmem:[#allocation15 + $0x460] sm:$0xff]
          %v1330 = vld [vmem:[#allocation15 + $0x468] sm:$0xff]
          %v1331 = vld [vmem:[#allocation15 + $0x470] sm:$0xff]
          %v1332 = vld [vmem:[#allocation15 + $0x478] sm:$0xff]
          %v1333 = vld [vmem:[#allocation15 + $0x480] sm:$0xff]
          %v1334 = vld [vmem:[#allocation15 + $0x488] sm:$0xff]
          %v1335 = vld [vmem:[#allocation15 + $0x490] sm:$0xff]
          %v1336 = vld [vmem:[#allocation15 + $0x498] sm:$0xff]
          %v1337 = vld [vmem:[#allocation15 + $0x4a0] sm:$0xff]
          %v1338 = vld [vmem:[#allocation15 + $0x4a8] sm:$0xff]
          %v1339 = vld [vmem:[#allocation15 + $0x4b0] sm:$0xff]
          %v1340 = vld [vmem:[#allocation15 + $0x4b8] sm:$0xff]
          %v1341 = vld [vmem:[#allocation15 + $0x4c0] sm:$0xff]
          %v1342 = vld [vmem:[#allocation15 + $0x4c8] sm:$0xff]
          %v1343 = vld [vmem:[#allocation15 + $0x4d0] sm:$0xff]
          %v1344 = vld [vmem:[#allocation15 + $0x4d8] sm:$0xff]
          %v1345 = vld [vmem:[#allocation15 + $0x4e0] sm:$0xff]
          %v1346 = vld [vmem:[#allocation15 + $0x4e8] sm:$0xff]
          %v1347 = vld [vmem:[#allocation15 + $0x4f0] sm:$0xff]
          %v1348 = vld [vmem:[#allocation15 + $0x4f8] sm:$0xff]
          %v1349 = vld [vmem:[#allocation15 + $0x500] sm:$0xff]
          %v1350 = vld [vmem:[#allocation15 + $0x508] sm:$0xff]
          %v1351 = vld [vmem:[#allocation15 + $0x510] sm:$0xff]
          %v1352 = vld [vmem:[#allocation15 + $0x518] sm:$0xff]
          %v1353 = vld [vmem:[#allocation15 + $0x520] sm:$0xff]
          %v1354 = vld [vmem:[#allocation15 + $0x528] sm:$0xff]
          %v1355 = vld [vmem:[#allocation15 + $0x530] sm:$0xff]
          %v1356 = vld [vmem:[#allocation15 + $0x538] sm:$0xff]
          %v1357 = vld [vmem:[#allocation15 + $0x540] sm:$0xff]
          %v1358 = vld [vmem:[#allocation15 + $0x548] sm:$0xff]
          %v1359 = vld [vmem:[#allocation15 + $0x550] sm:$0xff]
          %v1360 = vld [vmem:[#allocation15 + $0x558] sm:$0xff]
          %v1361 = vld [vmem:[#allocation15 + $0x560] sm:$0xff]
          %v1362 = vld [vmem:[#allocation15 + $0x568] sm:$0xff]
          %v1363 = vld [vmem:[#allocation15 + $0x570] sm:$0xff]
          %v1364 = vld [vmem:[#allocation15 + $0x578] sm:$0xff]
          %v1365 = vld [vmem:[#allocation15 + $0x580] sm:$0xff]
          %v1366 = vld [vmem:[#allocation15 + $0x588] sm:$0xff]
          %v1367 = vld [vmem:[#allocation15 + $0x590] sm:$0xff]
          %v1368 = vld [vmem:[#allocation15 + $0x598] sm:$0xff]
          %v1369 = vld [vmem:[#allocation15 + $0x5a0] sm:$0xff]
          %v1370 = vld [vmem:[#allocation15 + $0x5a8] sm:$0xff]
          %v1371 = vld [vmem:[#allocation15 + $0x5b0] sm:$0xff]
          %v1372 = vld [vmem:[#allocation15 + $0x5b8] sm:$0xff]
          %v1373 = vld [vmem:[#allocation15 + $0x5c0] sm:$0xff]
          %v1374 = vld [vmem:[#allocation15 + $0x5c8] sm:$0xff]
          %v1375 = vld [vmem:[#allocation15 + $0x5d0] sm:$0xff]
          %v1376 = vld [vmem:[#allocation15 + $0x5d8] sm:$0xff]
          %v1377 = vld [vmem:[#allocation15 + $0x5e0] sm:$0xff]
          %v1378 = vld [vmem:[#allocation15 + $0x5e8] sm:$0xff]
          %v1379 = vld [vmem:[#allocation15 + $0x5f0] sm:$0xff]
          %v1380 = vld [vmem:[#allocation15 + $0x5f8] sm:$0xff]
          %v1381 = vld [vmem:[#allocation15 + $0x600] sm:$0xff]
          %v1382 = vld [vmem:[#allocation15 + $0x608] sm:$0xff]
          %v1383 = vld [vmem:[#allocation15 + $0x610] sm:$0xff]
          %v1384 = vld [vmem:[#allocation15 + $0x618] sm:$0xff]
          %v1385 = vld [vmem:[#allocation15 + $0x620] sm:$0xff]
          %v1386 = vld [vmem:[#allocation15 + $0x628] sm:$0xff]
          %v1387 = vld [vmem:[#allocation15 + $0x630] sm:$0xff]
          %v1388 = vld [vmem:[#allocation15 + $0x638] sm:$0xff]
          %v1389 = vld [vmem:[#allocation15 + $0x640] sm:$0xff]
          %v1390 = vld [vmem:[#allocation15 + $0x648] sm:$0xff]
          %v1391 = vld [vmem:[#allocation15 + $0x650] sm:$0xff]
          %v1392 = vld [vmem:[#allocation15 + $0x658] sm:$0xff]
          %v1393 = vld [vmem:[#allocation15 + $0x660] sm:$0xff]
          %v1394 = vld [vmem:[#allocation15 + $0x668] sm:$0xff]
          %v1395 = vld [vmem:[#allocation15 + $0x670] sm:$0xff]
          %v1396 = vld [vmem:[#allocation15 + $0x678] sm:$0xff]
          %v1397 = vld [vmem:[#allocation15 + $0x680] sm:$0xff]
          %v1398 = vld [vmem:[#allocation15 + $0x688] sm:$0xff]
          %v1399 = vld [vmem:[#allocation15 + $0x690] sm:$0xff]
          %v1400 = vld [vmem:[#allocation15 + $0x698] sm:$0xff]
          %v1401 = vld [vmem:[#allocation15 + $0x6a0] sm:$0xff]
          %v1402 = vld [vmem:[#allocation15 + $0x6a8] sm:$0xff]
          %v1403 = vld [vmem:[#allocation15 + $0x6b0] sm:$0xff]
          %v1404 = vld [vmem:[#allocation15 + $0x6b8] sm:$0xff]
          %v1405 = vld [vmem:[#allocation15 + $0x6c0] sm:$0xff]
          %v1406 = vld [vmem:[#allocation15 + $0x6c8] sm:$0xff]
          %v1407 = vld [vmem:[#allocation15 + $0x6d0] sm:$0xff]
          %v1408 = vld [vmem:[#allocation15 + $0x6d8] sm:$0xff]
          %v1409 = vld [vmem:[#allocation15 + $0x6e0] sm:$0xff]
          %v1410 = vld [vmem:[#allocation15 + $0x6e8] sm:$0xff]
          %v1411 = vld [vmem:[#allocation15 + $0x6f0] sm:$0xff]
          %v1412 = vld [vmem:[#allocation15 + $0x6f8] sm:$0xff]
          %v1413 = vld [vmem:[#allocation15 + $0x700] sm:$0xff]
          %v1414 = vld [vmem:[#allocation15 + $0x708] sm:$0xff]
          %v1415 = vld [vmem:[#allocation15 + $0x710] sm:$0xff]
          %v1416 = vld [vmem:[#allocation15 + $0x718] sm:$0xff]
          %v1417 = vld [vmem:[#allocation15 + $0x720] sm:$0xff]
          %v1418 = vld [vmem:[#allocation15 + $0x728] sm:$0xff]
          %v1419 = vld [vmem:[#allocation15 + $0x730] sm:$0xff]
          %v1420 = vld [vmem:[#allocation15 + $0x738] sm:$0xff]
          %v1421 = vld [vmem:[#allocation15 + $0x740] sm:$0xff]
          %v1422 = vld [vmem:[#allocation15 + $0x748] sm:$0xff]
          %v1423 = vld [vmem:[#allocation15 + $0x750] sm:$0xff]
          %v1424 = vld [vmem:[#allocation15 + $0x758] sm:$0xff]
          %v1425 = vld [vmem:[#allocation15 + $0x760] sm:$0xff]
          %v1426 = vld [vmem:[#allocation15 + $0x768] sm:$0xff]
          %v1427 = vld [vmem:[#allocation15 + $0x770] sm:$0xff]
          %v1428 = vld [vmem:[#allocation15 + $0x778] sm:$0xff]
          %v1429 = vld [vmem:[#allocation15 + $0x780] sm:$0xff]
          %v1430 = vld [vmem:[#allocation15 + $0x788] sm:$0xff]
          %v1431 = vld [vmem:[#allocation15 + $0x790] sm:$0xff]
          %v1432 = vld [vmem:[#allocation15 + $0x798] sm:$0xff]
          %v1433 = vld [vmem:[#allocation15 + $0x7a0] sm:$0xff]
          %v1434 = vld [vmem:[#allocation15 + $0x7a8] sm:$0xff]
          %v1435 = vld [vmem:[#allocation15 + $0x7b0] sm:$0xff]
          %v1436 = vld [vmem:[#allocation15 + $0x7b8] sm:$0xff]
          %v1437 = vld [vmem:[#allocation15 + $0x7c0] sm:$0xff]
          %v1438 = vld [vmem:[#allocation15 + $0x7c8] sm:$0xff]
          %v1439 = vld [vmem:[#allocation15 + $0x7d0] sm:$0xff]
          %v1440 = vld [vmem:[#allocation15 + $0x7d8] sm:$0xff]
          %v1441 = vld [vmem:[#allocation15 + $0x7e0] sm:$0xff]
          %v1442 = vld [vmem:[#allocation15 + $0x7e8] sm:$0xff]
          %v1443 = vld [vmem:[#allocation15 + $0x7f0] sm:$0xff]
          %v1444 = vld [vmem:[#allocation15 + $0x7f8] sm:$0xff]
          %v1701 = vunpack.c.l.b16 %v1189
          %v1702 = vunpack.c.h.b16 %v1189
          %v1703 = vunpack.c.l.b16 %v1190
          %v1704 = vunpack.c.h.b16 %v1190
          %v1705 = vunpack.c.l.b16 %v1191
          %v1706 = vunpack.c.h.b16 %v1191
          %v1707 = vunpack.c.l.b16 %v1192
          %v1708 = vunpack.c.h.b16 %v1192
          %v1709 = vunpack.c.l.b16 %v1193
          %v1710 = vunpack.c.h.b16 %v1193
          %v1711 = vunpack.c.l.b16 %v1194
          %v1712 = vunpack.c.h.b16 %v1194
          %v1713 = vunpack.c.l.b16 %v1195
          %v1714 = vunpack.c.h.b16 %v1195
          %v1715 = vunpack.c.l.b16 %v1196
          %v1716 = vunpack.c.h.b16 %v1196
          %v1717 = vunpack.c.l.b16 %v1197
          %v1718 = vunpack.c.h.b16 %v1197
          %v1719 = vunpack.c.l.b16 %v1198
          %v1720 = vunpack.c.h.b16 %v1198
          %v1721 = vunpack.c.l.b16 %v1199
          %v1722 = vunpack.c.h.b16 %v1199
          %v1723 = vunpack.c.l.b16 %v1200
          %v1724 = vunpack.c.h.b16 %v1200
          %v1725 = vunpack.c.l.b16 %v1201
          %v1726 = vunpack.c.h.b16 %v1201
          %v1727 = vunpack.c.l.b16 %v1202
          %v1728 = vunpack.c.h.b16 %v1202
          %v1729 = vunpack.c.l.b16 %v1203
          %v1730 = vunpack.c.h.b16 %v1203
          %v1731 = vunpack.c.l.b16 %v1204
          %v1732 = vunpack.c.h.b16 %v1204
          %v1733 = vunpack.c.l.b16 %v1205
          %v1734 = vunpack.c.h.b16 %v1205
          %v1735 = vunpack.c.l.b16 %v1206
          %v1736 = vunpack.c.h.b16 %v1206
          %v1737 = vunpack.c.l.b16 %v1207
          %v1738 = vunpack.c.h.b16 %v1207
          %v1739 = vunpack.c.l.b16 %v1208
          %v1740 = vunpack.c.h.b16 %v1208
          %v1741 = vunpack.c.l.b16 %v1209
          %v1742 = vunpack.c.h.b16 %v1209
          %v1743 = vunpack.c.l.b16 %v1210
          %v1744 = vunpack.c.h.b16 %v1210
          %v1745 = vunpack.c.l.b16 %v1211
          %v1746 = vunpack.c.h.b16 %v1211
          %v1747 = vunpack.c.l.b16 %v1212
          %v1748 = vunpack.c.h.b16 %v1212
          %v1749 = vunpack.c.l.b16 %v1213
          %v1750 = vunpack.c.h.b16 %v1213
          %v1751 = vunpack.c.l.b16 %v1214
          %v1752 = vunpack.c.h.b16 %v1214
          %v1753 = vunpack.c.l.b16 %v1215
          %v1754 = vunpack.c.h.b16 %v1215
          %v1755 = vunpack.c.l.b16 %v1216
          %v1756 = vunpack.c.h.b16 %v1216
          %v1757 = vunpack.c.l.b16 %v1217
          %v1758 = vunpack.c.h.b16 %v1217
          %v1759 = vunpack.c.l.b16 %v1218
          %v1760 = vunpack.c.h.b16 %v1218
          %v1761 = vunpack.c.l.b16 %v1219
          %v1762 = vunpack.c.h.b16 %v1219
          %v1763 = vunpack.c.l.b16 %v1220
          %v1764 = vunpack.c.h.b16 %v1220
          %v1765 = vunpack.c.l.b16 %v1221
          %v1766 = vunpack.c.h.b16 %v1221
          %v1767 = vunpack.c.l.b16 %v1222
          %v1768 = vunpack.c.h.b16 %v1222
          %v1769 = vunpack.c.l.b16 %v1223
          %v1770 = vunpack.c.h.b16 %v1223
          %v1771 = vunpack.c.l.b16 %v1224
          %v1772 = vunpack.c.h.b16 %v1224
          %v1773 = vunpack.c.l.b16 %v1225
          %v1774 = vunpack.c.h.b16 %v1225
          %v1775 = vunpack.c.l.b16 %v1226
          %v1776 = vunpack.c.h.b16 %v1226
          %v1777 = vunpack.c.l.b16 %v1227
          %v1778 = vunpack.c.h.b16 %v1227
          %v1779 = vunpack.c.l.b16 %v1228
          %v1780 = vunpack.c.h.b16 %v1228
          %v1781 = vunpack.c.l.b16 %v1229
          %v1782 = vunpack.c.h.b16 %v1229
          %v1783 = vunpack.c.l.b16 %v1230
          %v1784 = vunpack.c.h.b16 %v1230
          %v1785 = vunpack.c.l.b16 %v1231
          %v1786 = vunpack.c.h.b16 %v1231
          %v1787 = vunpack.c.l.b16 %v1232
          %v1788 = vunpack.c.h.b16 %v1232
          %v1789 = vunpack.c.l.b16 %v1233
          %v1790 = vunpack.c.h.b16 %v1233
          %v1791 = vunpack.c.l.b16 %v1234
          %v1792 = vunpack.c.h.b16 %v1234
          %v1793 = vunpack.c.l.b16 %v1235
          %v1794 = vunpack.c.h.b16 %v1235
          %v1795 = vunpack.c.l.b16 %v1236
          %v1796 = vunpack.c.h.b16 %v1236
          %v1797 = vunpack.c.l.b16 %v1237
          %v1798 = vunpack.c.h.b16 %v1237
          %v1799 = vunpack.c.l.b16 %v1238
          %v1800 = vunpack.c.h.b16 %v1238
          %v1801 = vunpack.c.l.b16 %v1239
          %v1802 = vunpack.c.h.b16 %v1239
          %v1803 = vunpack.c.l.b16 %v1240
          %v1804 = vunpack.c.h.b16 %v1240
          %v1805 = vunpack.c.l.b16 %v1241
          %v1806 = vunpack.c.h.b16 %v1241
          %v1807 = vunpack.c.l.b16 %v1242
          %v1808 = vunpack.c.h.b16 %v1242
          %v1809 = vunpack.c.l.b16 %v1243
          %v1810 = vunpack.c.h.b16 %v1243
          %v1811 = vunpack.c.l.b16 %v1244
          %v1812 = vunpack.c.h.b16 %v1244
          %v1813 = vunpack.c.l.b16 %v1245
          %v1814 = vunpack.c.h.b16 %v1245
          %v1815 = vunpack.c.l.b16 %v1246
          %v1816 = vunpack.c.h.b16 %v1246
          %v1817 = vunpack.c.l.b16 %v1247
          %v1818 = vunpack.c.h.b16 %v1247
          %v1819 = vunpack.c.l.b16 %v1248
          %v1820 = vunpack.c.h.b16 %v1248
          %v1821 = vunpack.c.l.b16 %v1249
          %v1822 = vunpack.c.h.b16 %v1249
          %v1823 = vunpack.c.l.b16 %v1250
          %v1824 = vunpack.c.h.b16 %v1250
          %v1825 = vunpack.c.l.b16 %v1251
          %v1826 = vunpack.c.h.b16 %v1251
          %v1827 = vunpack.c.l.b16 %v1252
          %v1828 = vunpack.c.h.b16 %v1252
          %v1829 = vunpack.c.l.b16 %v1253
          %v1830 = vunpack.c.h.b16 %v1253
          %v1831 = vunpack.c.l.b16 %v1254
          %v1832 = vunpack.c.h.b16 %v1254
          %v1833 = vunpack.c.l.b16 %v1255
          %v1834 = vunpack.c.h.b16 %v1255
          %v1835 = vunpack.c.l.b16 %v1256
          %v1836 = vunpack.c.h.b16 %v1256
          %v1837 = vunpack.c.l.b16 %v1257
          %v1838 = vunpack.c.h.b16 %v1257
          %v1839 = vunpack.c.l.b16 %v1258
          %v1840 = vunpack.c.h.b16 %v1258
          %v1841 = vunpack.c.l.b16 %v1259
          %v1842 = vunpack.c.h.b16 %v1259
          %v1843 = vunpack.c.l.b16 %v1260
          %v1844 = vunpack.c.h.b16 %v1260
          %v1845 = vunpack.c.l.b16 %v1261
          %v1846 = vunpack.c.h.b16 %v1261
          %v1847 = vunpack.c.l.b16 %v1262
          %v1848 = vunpack.c.h.b16 %v1262
          %v1849 = vunpack.c.l.b16 %v1263
          %v1850 = vunpack.c.h.b16 %v1263
          %v1851 = vunpack.c.l.b16 %v1264
          %v1852 = vunpack.c.h.b16 %v1264
          %v1853 = vunpack.c.l.b16 %v1265
          %v1854 = vunpack.c.h.b16 %v1265
          %v1855 = vunpack.c.l.b16 %v1266
          %v1856 = vunpack.c.h.b16 %v1266
          %v1857 = vunpack.c.l.b16 %v1267
          %v1858 = vunpack.c.h.b16 %v1267
          %v1859 = vunpack.c.l.b16 %v1268
          %v1860 = vunpack.c.h.b16 %v1268
          %v1861 = vunpack.c.l.b16 %v1269
          %v1862 = vunpack.c.h.b16 %v1269
          %v1863 = vunpack.c.l.b16 %v1270
          %v1864 = vunpack.c.h.b16 %v1270
          %v1865 = vunpack.c.l.b16 %v1271
          %v1866 = vunpack.c.h.b16 %v1271
          %v1867 = vunpack.c.l.b16 %v1272
          %v1868 = vunpack.c.h.b16 %v1272
          %v1869 = vunpack.c.l.b16 %v1273
          %v1870 = vunpack.c.h.b16 %v1273
          %v1871 = vunpack.c.l.b16 %v1274
          %v1872 = vunpack.c.h.b16 %v1274
          %v1873 = vunpack.c.l.b16 %v1275
          %v1874 = vunpack.c.h.b16 %v1275
          %v1875 = vunpack.c.l.b16 %v1276
          %v1876 = vunpack.c.h.b16 %v1276
          %v1877 = vunpack.c.l.b16 %v1277
          %v1878 = vunpack.c.h.b16 %v1277
          %v1879 = vunpack.c.l.b16 %v1278
          %v1880 = vunpack.c.h.b16 %v1278
          %v1881 = vunpack.c.l.b16 %v1279
          %v1882 = vunpack.c.h.b16 %v1279
          %v1883 = vunpack.c.l.b16 %v1280
          %v1884 = vunpack.c.h.b16 %v1280
          %v1885 = vunpack.c.l.b16 %v1281
          %v1886 = vunpack.c.h.b16 %v1281
          %v1887 = vunpack.c.l.b16 %v1282
          %v1888 = vunpack.c.h.b16 %v1282
          %v1889 = vunpack.c.l.b16 %v1283
          %v1890 = vunpack.c.h.b16 %v1283
          %v1891 = vunpack.c.l.b16 %v1284
          %v1892 = vunpack.c.h.b16 %v1284
          %v1893 = vunpack.c.l.b16 %v1285
          %v1894 = vunpack.c.h.b16 %v1285
          %v1895 = vunpack.c.l.b16 %v1286
          %v1896 = vunpack.c.h.b16 %v1286
          %v1897 = vunpack.c.l.b16 %v1287
          %v1898 = vunpack.c.h.b16 %v1287
          %v1899 = vunpack.c.l.b16 %v1288
          %v1900 = vunpack.c.h.b16 %v1288
          %v1901 = vunpack.c.l.b16 %v1289
          %v1902 = vunpack.c.h.b16 %v1289
          %v1903 = vunpack.c.l.b16 %v1290
          %v1904 = vunpack.c.h.b16 %v1290
          %v1905 = vunpack.c.l.b16 %v1291
          %v1906 = vunpack.c.h.b16 %v1291
          %v1907 = vunpack.c.l.b16 %v1292
          %v1908 = vunpack.c.h.b16 %v1292
          %v1909 = vunpack.c.l.b16 %v1293
          %v1910 = vunpack.c.h.b16 %v1293
          %v1911 = vunpack.c.l.b16 %v1294
          %v1912 = vunpack.c.h.b16 %v1294
          %v1913 = vunpack.c.l.b16 %v1295
          %v1914 = vunpack.c.h.b16 %v1295
          %v1915 = vunpack.c.l.b16 %v1296
          %v1916 = vunpack.c.h.b16 %v1296
          %v1917 = vunpack.c.l.b16 %v1297
          %v1918 = vunpack.c.h.b16 %v1297
          %v1919 = vunpack.c.l.b16 %v1298
          %v1920 = vunpack.c.h.b16 %v1298
          %v1921 = vunpack.c.l.b16 %v1299
          %v1922 = vunpack.c.h.b16 %v1299
          %v1923 = vunpack.c.l.b16 %v1300
          %v1924 = vunpack.c.h.b16 %v1300
          %v1925 = vunpack.c.l.b16 %v1301
          %v1926 = vunpack.c.h.b16 %v1301
          %v1927 = vunpack.c.l.b16 %v1302
          %v1928 = vunpack.c.h.b16 %v1302
          %v1929 = vunpack.c.l.b16 %v1303
          %v1930 = vunpack.c.h.b16 %v1303
          %v1931 = vunpack.c.l.b16 %v1304
          %v1932 = vunpack.c.h.b16 %v1304
          %v1933 = vunpack.c.l.b16 %v1305
          %v1934 = vunpack.c.h.b16 %v1305
          %v1935 = vunpack.c.l.b16 %v1306
          %v1936 = vunpack.c.h.b16 %v1306
          %v1937 = vunpack.c.l.b16 %v1307
          %v1938 = vunpack.c.h.b16 %v1307
          %v1939 = vunpack.c.l.b16 %v1308
          %v1940 = vunpack.c.h.b16 %v1308
          %v1941 = vunpack.c.l.b16 %v1309
          %v1942 = vunpack.c.h.b16 %v1309
          %v1943 = vunpack.c.l.b16 %v1310
          %v1944 = vunpack.c.h.b16 %v1310
          %v1945 = vunpack.c.l.b16 %v1311
          %v1946 = vunpack.c.h.b16 %v1311
          %v1947 = vunpack.c.l.b16 %v1312
          %v1948 = vunpack.c.h.b16 %v1312
          %v1949 = vunpack.c.l.b16 %v1313
          %v1950 = vunpack.c.h.b16 %v1313
          %v1951 = vunpack.c.l.b16 %v1314
          %v1952 = vunpack.c.h.b16 %v1314
          %v1953 = vunpack.c.l.b16 %v1315
          %v1954 = vunpack.c.h.b16 %v1315
          %v1955 = vunpack.c.l.b16 %v1316
          %v1956 = vunpack.c.h.b16 %v1316
          %v1957 = vunpack.c.l.b16 %v1317
          %v1958 = vunpack.c.h.b16 %v1317
          %v1959 = vunpack.c.l.b16 %v1318
          %v1960 = vunpack.c.h.b16 %v1318
          %v1961 = vunpack.c.l.b16 %v1319
          %v1962 = vunpack.c.h.b16 %v1319
          %v1963 = vunpack.c.l.b16 %v1320
          %v1964 = vunpack.c.h.b16 %v1320
          %v1965 = vunpack.c.l.b16 %v1321
          %v1966 = vunpack.c.h.b16 %v1321
          %v1967 = vunpack.c.l.b16 %v1322
          %v1968 = vunpack.c.h.b16 %v1322
          %v1969 = vunpack.c.l.b16 %v1323
          %v1970 = vunpack.c.h.b16 %v1323
          %v1971 = vunpack.c.l.b16 %v1324
          %v1972 = vunpack.c.h.b16 %v1324
          %v1973 = vunpack.c.l.b16 %v1325
          %v1974 = vunpack.c.h.b16 %v1325
          %v1975 = vunpack.c.l.b16 %v1326
          %v1976 = vunpack.c.h.b16 %v1326
          %v1977 = vunpack.c.l.b16 %v1327
          %v1978 = vunpack.c.h.b16 %v1327
          %v1979 = vunpack.c.l.b16 %v1328
          %v1980 = vunpack.c.h.b16 %v1328
          %v1981 = vunpack.c.l.b16 %v1329
          %v1982 = vunpack.c.h.b16 %v1329
          %v1983 = vunpack.c.l.b16 %v1330
          %v1984 = vunpack.c.h.b16 %v1330
          %v1985 = vunpack.c.l.b16 %v1331
          %v1986 = vunpack.c.h.b16 %v1331
          %v1987 = vunpack.c.l.b16 %v1332
          %v1988 = vunpack.c.h.b16 %v1332
          %v1989 = vunpack.c.l.b16 %v1333
          %v1990 = vunpack.c.h.b16 %v1333
          %v1991 = vunpack.c.l.b16 %v1334
          %v1992 = vunpack.c.h.b16 %v1334
          %v1993 = vunpack.c.l.b16 %v1335
          %v1994 = vunpack.c.h.b16 %v1335
          %v1995 = vunpack.c.l.b16 %v1336
          %v1996 = vunpack.c.h.b16 %v1336
          %v1997 = vunpack.c.l.b16 %v1337
          %v1998 = vunpack.c.h.b16 %v1337
          %v1999 = vunpack.c.l.b16 %v1338
          %v2000 = vunpack.c.h.b16 %v1338
          %v2001 = vunpack.c.l.b16 %v1339
          %v2002 = vunpack.c.h.b16 %v1339
          %v2003 = vunpack.c.l.b16 %v1340
          %v2004 = vunpack.c.h.b16 %v1340
          %v2005 = vunpack.c.l.b16 %v1341
          %v2006 = vunpack.c.h.b16 %v1341
          %v2007 = vunpack.c.l.b16 %v1342
          %v2008 = vunpack.c.h.b16 %v1342
          %v2009 = vunpack.c.l.b16 %v1343
          %v2010 = vunpack.c.h.b16 %v1343
          %v2011 = vunpack.c.l.b16 %v1344
          %v2012 = vunpack.c.h.b16 %v1344
          %v2013 = vunpack.c.l.b16 %v1345
          %v2014 = vunpack.c.h.b16 %v1345
          %v2015 = vunpack.c.l.b16 %v1346
          %v2016 = vunpack.c.h.b16 %v1346
          %v2017 = vunpack.c.l.b16 %v1347
          %v2018 = vunpack.c.h.b16 %v1347
          %v2019 = vunpack.c.l.b16 %v1348
          %v2020 = vunpack.c.h.b16 %v1348
          %v2021 = vunpack.c.l.b16 %v1349
          %v2022 = vunpack.c.h.b16 %v1349
          %v2023 = vunpack.c.l.b16 %v1350
          %v2024 = vunpack.c.h.b16 %v1350
          %v2025 = vunpack.c.l.b16 %v1351
          %v2026 = vunpack.c.h.b16 %v1351
          %v2027 = vunpack.c.l.b16 %v1352
          %v2028 = vunpack.c.h.b16 %v1352
          %v2029 = vunpack.c.l.b16 %v1353
          %v2030 = vunpack.c.h.b16 %v1353
          %v2031 = vunpack.c.l.b16 %v1354
          %v2032 = vunpack.c.h.b16 %v1354
          %v2033 = vunpack.c.l.b16 %v1355
          %v2034 = vunpack.c.h.b16 %v1355
          %v2035 = vunpack.c.l.b16 %v1356
          %v2036 = vunpack.c.h.b16 %v1356
          %v2037 = vunpack.c.l.b16 %v1357
          %v2038 = vunpack.c.h.b16 %v1357
          %v2039 = vunpack.c.l.b16 %v1358
          %v2040 = vunpack.c.h.b16 %v1358
          %v2041 = vunpack.c.l.b16 %v1359
          %v2042 = vunpack.c.h.b16 %v1359
          %v2043 = vunpack.c.l.b16 %v1360
          %v2044 = vunpack.c.h.b16 %v1360
          %v2045 = vunpack.c.l.b16 %v1361
          %v2046 = vunpack.c.h.b16 %v1361
          %v2047 = vunpack.c.l.b16 %v1362
          %v2048 = vunpack.c.h.b16 %v1362
          %v2049 = vunpack.c.l.b16 %v1363
          %v2050 = vunpack.c.h.b16 %v1363
          %v2051 = vunpack.c.l.b16 %v1364
          %v2052 = vunpack.c.h.b16 %v1364
          %v2053 = vunpack.c.l.b16 %v1365
          %v2054 = vunpack.c.h.b16 %v1365
          %v2055 = vunpack.c.l.b16 %v1366
          %v2056 = vunpack.c.h.b16 %v1366
          %v2057 = vunpack.c.l.b16 %v1367
          %v2058 = vunpack.c.h.b16 %v1367
          %v2059 = vunpack.c.l.b16 %v1368
          %v2060 = vunpack.c.h.b16 %v1368
          %v2061 = vunpack.c.l.b16 %v1369
          %v2062 = vunpack.c.h.b16 %v1369
          %v2063 = vunpack.c.l.b16 %v1370
          %v2064 = vunpack.c.h.b16 %v1370
          %v2065 = vunpack.c.l.b16 %v1371
          %v2066 = vunpack.c.h.b16 %v1371
          %v2067 = vunpack.c.l.b16 %v1372
          %v2068 = vunpack.c.h.b16 %v1372
          %v2069 = vunpack.c.l.b16 %v1373
          %v2070 = vunpack.c.h.b16 %v1373
          %v2071 = vunpack.c.l.b16 %v1374
          %v2072 = vunpack.c.h.b16 %v1374
          %v2073 = vunpack.c.l.b16 %v1375
          %v2074 = vunpack.c.h.b16 %v1375
          %v2075 = vunpack.c.l.b16 %v1376
          %v2076 = vunpack.c.h.b16 %v1376
          %v2077 = vunpack.c.l.b16 %v1377
          %v2078 = vunpack.c.h.b16 %v1377
          %v2079 = vunpack.c.l.b16 %v1378
          %v2080 = vunpack.c.h.b16 %v1378
          %v2081 = vunpack.c.l.b16 %v1379
          %v2082 = vunpack.c.h.b16 %v1379
          %v2083 = vunpack.c.l.b16 %v1380
          %v2084 = vunpack.c.h.b16 %v1380
          %v2085 = vunpack.c.l.b16 %v1381
          %v2086 = vunpack.c.h.b16 %v1381
          %v2087 = vunpack.c.l.b16 %v1382
          %v2088 = vunpack.c.h.b16 %v1382
          %v2089 = vunpack.c.l.b16 %v1383
          %v2090 = vunpack.c.h.b16 %v1383
          %v2091 = vunpack.c.l.b16 %v1384
          %v2092 = vunpack.c.h.b16 %v1384
          %v2093 = vunpack.c.l.b16 %v1385
          %v2094 = vunpack.c.h.b16 %v1385
          %v2095 = vunpack.c.l.b16 %v1386
          %v2096 = vunpack.c.h.b16 %v1386
          %v2097 = vunpack.c.l.b16 %v1387
          %v2098 = vunpack.c.h.b16 %v1387
          %v2099 = vunpack.c.l.b16 %v1388
          %v2100 = vunpack.c.h.b16 %v1388
          %v2101 = vunpack.c.l.b16 %v1389
          %v2102 = vunpack.c.h.b16 %v1389
          %v2103 = vunpack.c.l.b16 %v1390
          %v2104 = vunpack.c.h.b16 %v1390
          %v2105 = vunpack.c.l.b16 %v1391
          %v2106 = vunpack.c.h.b16 %v1391
          %v2107 = vunpack.c.l.b16 %v1392
          %v2108 = vunpack.c.h.b16 %v1392
          %v2109 = vunpack.c.l.b16 %v1393
          %v2110 = vunpack.c.h.b16 %v1393
          %v2111 = vunpack.c.l.b16 %v1394
          %v2112 = vunpack.c.h.b16 %v1394
          %v2113 = vunpack.c.l.b16 %v1395
          %v2114 = vunpack.c.h.b16 %v1395
          %v2115 = vunpack.c.l.b16 %v1396
          %v2116 = vunpack.c.h.b16 %v1396
          %v2117 = vunpack.c.l.b16 %v1397
          %v2118 = vunpack.c.h.b16 %v1397
          %v2119 = vunpack.c.l.b16 %v1398
          %v2120 = vunpack.c.h.b16 %v1398
          %v2121 = vunpack.c.l.b16 %v1399
          %v2122 = vunpack.c.h.b16 %v1399
          %v2123 = vunpack.c.l.b16 %v1400
          %v2124 = vunpack.c.h.b16 %v1400
          %v2125 = vunpack.c.l.b16 %v1401
          %v2126 = vunpack.c.h.b16 %v1401
          %v2127 = vunpack.c.l.b16 %v1402
          %v2128 = vunpack.c.h.b16 %v1402
          %v2129 = vunpack.c.l.b16 %v1403
          %v2130 = vunpack.c.h.b16 %v1403
          %v2131 = vunpack.c.l.b16 %v1404
          %v2132 = vunpack.c.h.b16 %v1404
          %v2133 = vunpack.c.l.b16 %v1405
          %v2134 = vunpack.c.h.b16 %v1405
          %v2135 = vunpack.c.l.b16 %v1406
          %v2136 = vunpack.c.h.b16 %v1406
          %v2137 = vunpack.c.l.b16 %v1407
          %v2138 = vunpack.c.h.b16 %v1407
          %v2139 = vunpack.c.l.b16 %v1408
          %v2140 = vunpack.c.h.b16 %v1408
          %v2141 = vunpack.c.l.b16 %v1409
          %v2142 = vunpack.c.h.b16 %v1409
          %v2143 = vunpack.c.l.b16 %v1410
          %v2144 = vunpack.c.h.b16 %v1410
          %v2145 = vunpack.c.l.b16 %v1411
          %v2146 = vunpack.c.h.b16 %v1411
          %v2147 = vunpack.c.l.b16 %v1412
          %v2148 = vunpack.c.h.b16 %v1412
          %v2149 = vunpack.c.l.b16 %v1413
          %v2150 = vunpack.c.h.b16 %v1413
          %v2151 = vunpack.c.l.b16 %v1414
          %v2152 = vunpack.c.h.b16 %v1414
          %v2153 = vunpack.c.l.b16 %v1415
          %v2154 = vunpack.c.h.b16 %v1415
          %v2155 = vunpack.c.l.b16 %v1416
          %v2156 = vunpack.c.h.b16 %v1416
          %v2157 = vunpack.c.l.b16 %v1417
          %v2158 = vunpack.c.h.b16 %v1417
          %v2159 = vunpack.c.l.b16 %v1418
          %v2160 = vunpack.c.h.b16 %v1418
          %v2161 = vunpack.c.l.b16 %v1419
          %v2162 = vunpack.c.h.b16 %v1419
          %v2163 = vunpack.c.l.b16 %v1420
          %v2164 = vunpack.c.h.b16 %v1420
          %v2165 = vunpack.c.l.b16 %v1421
          %v2166 = vunpack.c.h.b16 %v1421
          %v2167 = vunpack.c.l.b16 %v1422
          %v2168 = vunpack.c.h.b16 %v1422
          %v2169 = vunpack.c.l.b16 %v1423
          %v2170 = vunpack.c.h.b16 %v1423
          %v2171 = vunpack.c.l.b16 %v1424
          %v2172 = vunpack.c.h.b16 %v1424
          %v2173 = vunpack.c.l.b16 %v1425
          %v2174 = vunpack.c.h.b16 %v1425
          %v2175 = vunpack.c.l.b16 %v1426
          %v2176 = vunpack.c.h.b16 %v1426
          %v2177 = vunpack.c.l.b16 %v1427
          %v2178 = vunpack.c.h.b16 %v1427
          %v2179 = vunpack.c.l.b16 %v1428
          %v2180 = vunpack.c.h.b16 %v1428
          %v2181 = vunpack.c.l.b16 %v1429
          %v2182 = vunpack.c.h.b16 %v1429
          %v2183 = vunpack.c.l.b16 %v1430
          %v2184 = vunpack.c.h.b16 %v1430
          %v2185 = vunpack.c.l.b16 %v1431
          %v2186 = vunpack.c.h.b16 %v1431
          %v2187 = vunpack.c.l.b16 %v1432
          %v2188 = vunpack.c.h.b16 %v1432
          %v2189 = vunpack.c.l.b16 %v1433
          %v2190 = vunpack.c.h.b16 %v1433
          %v2191 = vunpack.c.l.b16 %v1434
          %v2192 = vunpack.c.h.b16 %v1434
          %v2193 = vunpack.c.l.b16 %v1435
          %v2194 = vunpack.c.h.b16 %v1435
          %v2195 = vunpack.c.l.b16 %v1436
          %v2196 = vunpack.c.h.b16 %v1436
          %v2197 = vunpack.c.l.b16 %v1437
          %v2198 = vunpack.c.h.b16 %v1437
          %v2199 = vunpack.c.l.b16 %v1438
          %v2200 = vunpack.c.h.b16 %v1438
          %v2201 = vunpack.c.l.b16 %v1439
          %v2202 = vunpack.c.h.b16 %v1439
          %v2203 = vunpack.c.l.b16 %v1440
          %v2204 = vunpack.c.h.b16 %v1440
          %v2205 = vunpack.c.l.b16 %v1441
          %v2206 = vunpack.c.h.b16 %v1441
          %v2207 = vunpack.c.l.b16 %v1442
          %v2208 = vunpack.c.h.b16 %v1442
          %v2209 = vunpack.c.l.b16 %v1443
          %v2210 = vunpack.c.h.b16 %v1443
          %v2211 = vunpack.c.l.b16 %v1444
          %v2212 = vunpack.c.h.b16 %v1444
          %v2213 = vpack.c.b16 %v1703, %v1701
          %v2214 = vpack.c.b16 %v1704, %v1702
          %v2215 = vpack.c.b16 %v1707, %v1705
          %v2216 = vpack.c.b16 %v1708, %v1706
          %v2217 = vpack.c.b16 %v1711, %v1709
          %v2218 = vpack.c.b16 %v1712, %v1710
          %v2219 = vpack.c.b16 %v1715, %v1713
          %v2220 = vpack.c.b16 %v1716, %v1714
          %v2221 = vpack.c.b16 %v1719, %v1717
          %v2222 = vpack.c.b16 %v1720, %v1718
          %v2223 = vpack.c.b16 %v1723, %v1721
          %v2224 = vpack.c.b16 %v1724, %v1722
          %v2225 = vpack.c.b16 %v1727, %v1725
          %v2226 = vpack.c.b16 %v1728, %v1726
          %v2227 = vpack.c.b16 %v1731, %v1729
          %v2228 = vpack.c.b16 %v1732, %v1730
          %v2229 = vpack.c.b16 %v1735, %v1733
          %v2230 = vpack.c.b16 %v1736, %v1734
          %v2231 = vpack.c.b16 %v1739, %v1737
          %v2232 = vpack.c.b16 %v1740, %v1738
          %v2233 = vpack.c.b16 %v1743, %v1741
          %v2234 = vpack.c.b16 %v1744, %v1742
          %v2235 = vpack.c.b16 %v1747, %v1745
          %v2236 = vpack.c.b16 %v1748, %v1746
          %v2237 = vpack.c.b16 %v1751, %v1749
          %v2238 = vpack.c.b16 %v1752, %v1750
          %v2239 = vpack.c.b16 %v1755, %v1753
          %v2240 = vpack.c.b16 %v1756, %v1754
          %v2241 = vpack.c.b16 %v1759, %v1757
          %v2242 = vpack.c.b16 %v1760, %v1758
          %v2243 = vpack.c.b16 %v1763, %v1761
          %v2244 = vpack.c.b16 %v1764, %v1762
          %v2245 = vpack.c.b16 %v1767, %v1765
          %v2246 = vpack.c.b16 %v1768, %v1766
          %v2247 = vpack.c.b16 %v1771, %v1769
          %v2248 = vpack.c.b16 %v1772, %v1770
          %v2249 = vpack.c.b16 %v1775, %v1773
          %v2250 = vpack.c.b16 %v1776, %v1774
          %v2251 = vpack.c.b16 %v1779, %v1777
          %v2252 = vpack.c.b16 %v1780, %v1778
          %v2253 = vpack.c.b16 %v1783, %v1781
          %v2254 = vpack.c.b16 %v1784, %v1782
          %v2255 = vpack.c.b16 %v1787, %v1785
          %v2256 = vpack.c.b16 %v1788, %v1786
          %v2257 = vpack.c.b16 %v1791, %v1789
          %v2258 = vpack.c.b16 %v1792, %v1790
          %v2259 = vpack.c.b16 %v1795, %v1793
          %v2260 = vpack.c.b16 %v1796, %v1794
          %v2261 = vpack.c.b16 %v1799, %v1797
          %v2262 = vpack.c.b16 %v1800, %v1798
          %v2263 = vpack.c.b16 %v1803, %v1801
          %v2264 = vpack.c.b16 %v1804, %v1802
          %v2265 = vpack.c.b16 %v1807, %v1805
          %v2266 = vpack.c.b16 %v1808, %v1806
          %v2267 = vpack.c.b16 %v1811, %v1809
          %v2268 = vpack.c.b16 %v1812, %v1810
          %v2269 = vpack.c.b16 %v1815, %v1813
          %v2270 = vpack.c.b16 %v1816, %v1814
          %v2271 = vpack.c.b16 %v1819, %v1817
          %v2272 = vpack.c.b16 %v1820, %v1818
          %v2273 = vpack.c.b16 %v1823, %v1821
          %v2274 = vpack.c.b16 %v1824, %v1822
          %v2275 = vpack.c.b16 %v1827, %v1825
          %v2276 = vpack.c.b16 %v1828, %v1826
          %v2277 = vpack.c.b16 %v1831, %v1829
          %v2278 = vpack.c.b16 %v1832, %v1830
          %v2279 = vpack.c.b16 %v1835, %v1833
          %v2280 = vpack.c.b16 %v1836, %v1834
          %v2281 = vpack.c.b16 %v1839, %v1837
          %v2282 = vpack.c.b16 %v1840, %v1838
          %v2283 = vpack.c.b16 %v1843, %v1841
          %v2284 = vpack.c.b16 %v1844, %v1842
          %v2285 = vpack.c.b16 %v1847, %v1845
          %v2286 = vpack.c.b16 %v1848, %v1846
          %v2287 = vpack.c.b16 %v1851, %v1849
          %v2288 = vpack.c.b16 %v1852, %v1850
          %v2289 = vpack.c.b16 %v1855, %v1853
          %v2290 = vpack.c.b16 %v1856, %v1854
          %v2291 = vpack.c.b16 %v1859, %v1857
          %v2292 = vpack.c.b16 %v1860, %v1858
          %v2293 = vpack.c.b16 %v1863, %v1861
          %v2294 = vpack.c.b16 %v1864, %v1862
          %v2295 = vpack.c.b16 %v1867, %v1865
          %v2296 = vpack.c.b16 %v1868, %v1866
          %v2297 = vpack.c.b16 %v1871, %v1869
          %v2298 = vpack.c.b16 %v1872, %v1870
          %v2299 = vpack.c.b16 %v1875, %v1873
          %v2300 = vpack.c.b16 %v1876, %v1874
          %v2301 = vpack.c.b16 %v1879, %v1877
          %v2302 = vpack.c.b16 %v1880, %v1878
          %v2303 = vpack.c.b16 %v1883, %v1881
          %v2304 = vpack.c.b16 %v1884, %v1882
          %v2305 = vpack.c.b16 %v1887, %v1885
          %v2306 = vpack.c.b16 %v1888, %v1886
          %v2307 = vpack.c.b16 %v1891, %v1889
          %v2308 = vpack.c.b16 %v1892, %v1890
          %v2309 = vpack.c.b16 %v1895, %v1893
          %v2310 = vpack.c.b16 %v1896, %v1894
          %v2311 = vpack.c.b16 %v1899, %v1897
          %v2312 = vpack.c.b16 %v1900, %v1898
          %v2313 = vpack.c.b16 %v1903, %v1901
          %v2314 = vpack.c.b16 %v1904, %v1902
          %v2315 = vpack.c.b16 %v1907, %v1905
          %v2316 = vpack.c.b16 %v1908, %v1906
          %v2317 = vpack.c.b16 %v1911, %v1909
          %v2318 = vpack.c.b16 %v1912, %v1910
          %v2319 = vpack.c.b16 %v1915, %v1913
          %v2320 = vpack.c.b16 %v1916, %v1914
          %v2321 = vpack.c.b16 %v1919, %v1917
          %v2322 = vpack.c.b16 %v1920, %v1918
          %v2323 = vpack.c.b16 %v1923, %v1921
          %v2324 = vpack.c.b16 %v1924, %v1922
          %v2325 = vpack.c.b16 %v1927, %v1925
          %v2326 = vpack.c.b16 %v1928, %v1926
          %v2327 = vpack.c.b16 %v1931, %v1929
          %v2328 = vpack.c.b16 %v1932, %v1930
          %v2329 = vpack.c.b16 %v1935, %v1933
          %v2330 = vpack.c.b16 %v1936, %v1934
          %v2331 = vpack.c.b16 %v1939, %v1937
          %v2332 = vpack.c.b16 %v1940, %v1938
          %v2333 = vpack.c.b16 %v1943, %v1941
          %v2334 = vpack.c.b16 %v1944, %v1942
          %v2335 = vpack.c.b16 %v1947, %v1945
          %v2336 = vpack.c.b16 %v1948, %v1946
          %v2337 = vpack.c.b16 %v1951, %v1949
          %v2338 = vpack.c.b16 %v1952, %v1950
          %v2339 = vpack.c.b16 %v1955, %v1953
          %v2340 = vpack.c.b16 %v1956, %v1954
          %v2341 = vpack.c.b16 %v1959, %v1957
          %v2342 = vpack.c.b16 %v1960, %v1958
          %v2343 = vpack.c.b16 %v1963, %v1961
          %v2344 = vpack.c.b16 %v1964, %v1962
          %v2345 = vpack.c.b16 %v1967, %v1965
          %v2346 = vpack.c.b16 %v1968, %v1966
          %v2347 = vpack.c.b16 %v1971, %v1969
          %v2348 = vpack.c.b16 %v1972, %v1970
          %v2349 = vpack.c.b16 %v1975, %v1973
          %v2350 = vpack.c.b16 %v1976, %v1974
          %v2351 = vpack.c.b16 %v1979, %v1977
          %v2352 = vpack.c.b16 %v1980, %v1978
          %v2353 = vpack.c.b16 %v1983, %v1981
          %v2354 = vpack.c.b16 %v1984, %v1982
          %v2355 = vpack.c.b16 %v1987, %v1985
          %v2356 = vpack.c.b16 %v1988, %v1986
          %v2357 = vpack.c.b16 %v1991, %v1989
          %v2358 = vpack.c.b16 %v1992, %v1990
          %v2359 = vpack.c.b16 %v1995, %v1993
          %v2360 = vpack.c.b16 %v1996, %v1994
          %v2361 = vpack.c.b16 %v1999, %v1997
          %v2362 = vpack.c.b16 %v2000, %v1998
          %v2363 = vpack.c.b16 %v2003, %v2001
          %v2364 = vpack.c.b16 %v2004, %v2002
          %v2365 = vpack.c.b16 %v2007, %v2005
          %v2366 = vpack.c.b16 %v2008, %v2006
          %v2367 = vpack.c.b16 %v2011, %v2009
          %v2368 = vpack.c.b16 %v2012, %v2010
          %v2369 = vpack.c.b16 %v2015, %v2013
          %v2370 = vpack.c.b16 %v2016, %v2014
          %v2371 = vpack.c.b16 %v2019, %v2017
          %v2372 = vpack.c.b16 %v2020, %v2018
          %v2373 = vpack.c.b16 %v2023, %v2021
          %v2374 = vpack.c.b16 %v2024, %v2022
          %v2375 = vpack.c.b16 %v2027, %v2025
          %v2376 = vpack.c.b16 %v2028, %v2026
          %v2377 = vpack.c.b16 %v2031, %v2029
          %v2378 = vpack.c.b16 %v2032, %v2030
          %v2379 = vpack.c.b16 %v2035, %v2033
          %v2380 = vpack.c.b16 %v2036, %v2034
          %v2381 = vpack.c.b16 %v2039, %v2037
          %v2382 = vpack.c.b16 %v2040, %v2038
          %v2383 = vpack.c.b16 %v2043, %v2041
          %v2384 = vpack.c.b16 %v2044, %v2042
          %v2385 = vpack.c.b16 %v2047, %v2045
          %v2386 = vpack.c.b16 %v2048, %v2046
          %v2387 = vpack.c.b16 %v2051, %v2049
          %v2388 = vpack.c.b16 %v2052, %v2050
          %v2389 = vpack.c.b16 %v2055, %v2053
          %v2390 = vpack.c.b16 %v2056, %v2054
          %v2391 = vpack.c.b16 %v2059, %v2057
          %v2392 = vpack.c.b16 %v2060, %v2058
          %v2393 = vpack.c.b16 %v2063, %v2061
          %v2394 = vpack.c.b16 %v2064, %v2062
          %v2395 = vpack.c.b16 %v2067, %v2065
          %v2396 = vpack.c.b16 %v2068, %v2066
          %v2397 = vpack.c.b16 %v2071, %v2069
          %v2398 = vpack.c.b16 %v2072, %v2070
          %v2399 = vpack.c.b16 %v2075, %v2073
          %v2400 = vpack.c.b16 %v2076, %v2074
          %v2401 = vpack.c.b16 %v2079, %v2077
          %v2402 = vpack.c.b16 %v2080, %v2078
          %v2403 = vpack.c.b16 %v2083, %v2081
          %v2404 = vpack.c.b16 %v2084, %v2082
          %v2405 = vpack.c.b16 %v2087, %v2085
          %v2406 = vpack.c.b16 %v2088, %v2086
          %v2407 = vpack.c.b16 %v2091, %v2089
          %v2408 = vpack.c.b16 %v2092, %v2090
          %v2409 = vpack.c.b16 %v2095, %v2093
          %v2410 = vpack.c.b16 %v2096, %v2094
          %v2411 = vpack.c.b16 %v2099, %v2097
          %v2412 = vpack.c.b16 %v2100, %v2098
          %v2413 = vpack.c.b16 %v2103, %v2101
          %v2414 = vpack.c.b16 %v2104, %v2102
          %v2415 = vpack.c.b16 %v2107, %v2105
          %v2416 = vpack.c.b16 %v2108, %v2106
          %v2417 = vpack.c.b16 %v2111, %v2109
          %v2418 = vpack.c.b16 %v2112, %v2110
          %v2419 = vpack.c.b16 %v2115, %v2113
          %v2420 = vpack.c.b16 %v2116, %v2114
          %v2421 = vpack.c.b16 %v2119, %v2117
          %v2422 = vpack.c.b16 %v2120, %v2118
          %v2423 = vpack.c.b16 %v2123, %v2121
          %v2424 = vpack.c.b16 %v2124, %v2122
          %v2425 = vpack.c.b16 %v2127, %v2125
          %v2426 = vpack.c.b16 %v2128, %v2126
          %v2427 = vpack.c.b16 %v2131, %v2129
          %v2428 = vpack.c.b16 %v2132, %v2130
          %v2429 = vpack.c.b16 %v2135, %v2133
          %v2430 = vpack.c.b16 %v2136, %v2134
          %v2431 = vpack.c.b16 %v2139, %v2137
          %v2432 = vpack.c.b16 %v2140, %v2138
          %v2433 = vpack.c.b16 %v2143, %v2141
          %v2434 = vpack.c.b16 %v2144, %v2142
          %v2435 = vpack.c.b16 %v2147, %v2145
          %v2436 = vpack.c.b16 %v2148, %v2146
          %v2437 = vpack.c.b16 %v2151, %v2149
          %v2438 = vpack.c.b16 %v2152, %v2150
          %v2439 = vpack.c.b16 %v2155, %v2153
          %v2440 = vpack.c.b16 %v2156, %v2154
          %v2441 = vpack.c.b16 %v2159, %v2157
          %v2442 = vpack.c.b16 %v2160, %v2158
          %v2443 = vpack.c.b16 %v2163, %v2161
          %v2444 = vpack.c.b16 %v2164, %v2162
          %v2445 = vpack.c.b16 %v2167, %v2165
          %v2446 = vpack.c.b16 %v2168, %v2166
          %v2447 = vpack.c.b16 %v2171, %v2169
          %v2448 = vpack.c.b16 %v2172, %v2170
          %v2449 = vpack.c.b16 %v2175, %v2173
          %v2450 = vpack.c.b16 %v2176, %v2174
          %v2451 = vpack.c.b16 %v2179, %v2177
          %v2452 = vpack.c.b16 %v2180, %v2178
          %v2453 = vpack.c.b16 %v2183, %v2181
          %v2454 = vpack.c.b16 %v2184, %v2182
          %v2455 = vpack.c.b16 %v2187, %v2185
          %v2456 = vpack.c.b16 %v2188, %v2186
          %v2457 = vpack.c.b16 %v2191, %v2189
          %v2458 = vpack.c.b16 %v2192, %v2190
          %v2459 = vpack.c.b16 %v2195, %v2193
          %v2460 = vpack.c.b16 %v2196, %v2194
          %v2461 = vpack.c.b16 %v2199, %v2197
          %v2462 = vpack.c.b16 %v2200, %v2198
          %v2463 = vpack.c.b16 %v2203, %v2201
          %v2464 = vpack.c.b16 %v2204, %v2202
          %v2465 = vpack.c.b16 %v2207, %v2205
          %v2466 = vpack.c.b16 %v2208, %v2206
          %v2467 = vpack.c.b16 %v2211, %v2209
          %v2468 = vpack.c.b16 %v2212, %v2210
          %2725 = vmatprep.subr.bf16.mxu0 %v2228
          %2726 = vmatpush1.bf16.msra.mxu0 %v2227
          %2727 = vmatprep.subr.bf16.mxu0 %v2226
          %2728 = vmatpush1.bf16.msra.mxu0 %v2225
          %2729 = vmatprep.subr.bf16.mxu0 %v2224
          %2730 = vmatpush1.bf16.msra.mxu0 %v2223
          %2731 = vmatprep.subr.bf16.mxu0 %v2222
          %2732 = vmatpush1.bf16.msra.mxu0 %v2221
          %2733 = vmatprep.subr.bf16.mxu0 %v2220
          %2734 = vmatpush1.bf16.msra.mxu0 %v2219
          %2735 = vmatprep.subr.bf16.mxu0 %v2218
          %2736 = vmatpush1.bf16.msra.mxu0 %v2217
          %2737 = vmatprep.subr.bf16.mxu0 %v2216
          %2738 = vmatpush1.bf16.msra.mxu0 %v2215
          %2739 = vmatprep.subr.bf16.mxu0 %v2214
          %2740 = vmatpush1.bf16.msra.mxu0 %v2213
          %2741 = vmatprep.subr.bf16.mxu0 %v2244
          %2742 = vmatpush2.bf16.msra.mxu0 %v2243
          %2743 = vmatprep.subr.bf16.mxu0 %v2242
          %2744 = vmatpush2.bf16.msra.mxu0 %v2241
          %2745 = vmatprep.subr.bf16.mxu0 %v2240
          %2746 = vmatpush2.bf16.msra.mxu0 %v2239
          %2747 = vmatprep.subr.bf16.mxu0 %v2238
          %2748 = vmatpush2.bf16.msra.mxu0 %v2237
          %2749 = vmatprep.subr.bf16.mxu0 %v2236
          %2750 = vmatpush2.bf16.msra.mxu0 %v2235
          %2751 = vmatprep.subr.bf16.mxu0 %v2234
          %2752 = vmatpush2.bf16.msra.mxu0 %v2233
          %2753 = vmatprep.subr.bf16.mxu0 %v2232
          %2754 = vmatpush2.bf16.msra.mxu0 %v2231
          %2755 = vmatprep.subr.bf16.mxu0 %v2230
          %2756 = vmatpush2.bf16.msra.mxu0 %v2229
          %2757 = vmatprep.mubr.bf16.mxu0 %v934
          %2758 = vmatmul.mubr.bf16.gmra.mxu0 %v933
          %v2759 = vpop.f32.mrf.mxu0
          %v2760 = vadd.f32 0.0, %v2759
          %v2761 = vpop.f32.mrf.mxu0
          %v2762 = vadd.f32 0.0, %v2761
          %v2763 = vpop.f32.mrf.mxu0
          %v2764 = vadd.f32 0.0, %v2763
          %v2765 = vpop.f32.mrf.mxu0
          %v2766 = vadd.f32 0.0, %v2765
          %2767 = vmatprep.mubr.bf16.mxu0 %v950
          %2768 = vmatmul.mubr.bf16.gmra.mxu0 %v949
          %v2769 = vpop.f32.mrf.mxu0
          %v2770 = vadd.f32 0.0, %v2769
          %v2771 = vpop.f32.mrf.mxu0
          %v2772 = vadd.f32 0.0, %v2771
          %v2773 = vpop.f32.mrf.mxu0
          %v2774 = vadd.f32 0.0, %v2773
          %v2775 = vpop.f32.mrf.mxu0
          %v2776 = vadd.f32 0.0, %v2775
          %2777 = vmatprep.mubr.bf16.mxu0 %v966
          %2778 = vmatmul.mubr.bf16.gmra.mxu0 %v965
          %v2779 = vpop.f32.mrf.mxu0
          %v2780 = vadd.f32 0.0, %v2779
          %v2781 = vpop.f32.mrf.mxu0
          %v2782 = vadd.f32 0.0, %v2781
          %v2783 = vpop.f32.mrf.mxu0
          %v2784 = vadd.f32 0.0, %v2783
          %v2785 = vpop.f32.mrf.mxu0
          %v2786 = vadd.f32 0.0, %v2785
          %2787 = vmatprep.mubr.bf16.mxu0 %v982
          %2788 = vmatmul.mubr.bf16.gmra.mxu0 %v981
          %v2789 = vpop.f32.mrf.mxu0
          %v2790 = vadd.f32 0.0, %v2789
          %v2791 = vpop.f32.mrf.mxu0
          %v2792 = vadd.f32 0.0, %v2791
          %v2793 = vpop.f32.mrf.mxu0
          %v2794 = vadd.f32 0.0, %v2793
          %v2795 = vpop.f32.mrf.mxu0
          %v2796 = vadd.f32 0.0, %v2795
          %2797 = vmatprep.mubr.bf16.mxu0 %v998
          %2798 = vmatmul.mubr.bf16.gmra.mxu0 %v997
          %v2799 = vpop.f32.mrf.mxu0
          %v2800 = vadd.f32 0.0, %v2799
          %v2801 = vpop.f32.mrf.mxu0
          %v2802 = vadd.f32 0.0, %v2801
          %v2803 = vpop.f32.mrf.mxu0
          %v2804 = vadd.f32 0.0, %v2803
          %v2805 = vpop.f32.mrf.mxu0
          %v2806 = vadd.f32 0.0, %v2805
          %2807 = vmatprep.mubr.bf16.mxu0 %v1014
          %2808 = vmatmul.mubr.bf16.gmra.mxu0 %v1013
          %v2809 = vpop.f32.mrf.mxu0
          %v2810 = vadd.f32 0.0, %v2809
          %v2811 = vpop.f32.mrf.mxu0
          %v2812 = vadd.f32 0.0, %v2811
          %v2813 = vpop.f32.mrf.mxu0
          %v2814 = vadd.f32 0.0, %v2813
          %v2815 = vpop.f32.mrf.mxu0
          %v2816 = vadd.f32 0.0, %v2815
          %2817 = vmatprep.mubr.bf16.mxu0 %v1030
          %2818 = vmatmul.mubr.bf16.gmra.mxu0 %v1029
          %v2819 = vpop.f32.mrf.mxu0
          %v2820 = vadd.f32 0.0, %v2819
          %v2821 = vpop.f32.mrf.mxu0
          %v2822 = vadd.f32 0.0, %v2821
          %v2823 = vpop.f32.mrf.mxu0
          %v2824 = vadd.f32 0.0, %v2823
          %v2825 = vpop.f32.mrf.mxu0
          %v2826 = vadd.f32 0.0, %v2825
          %2827 = vmatprep.mubr.bf16.mxu0 %v1046
          %2828 = vmatmul.mubr.bf16.gmra.mxu0 %v1045
          %v2829 = vpop.f32.mrf.mxu0
          %v2830 = vadd.f32 0.0, %v2829
          %v2831 = vpop.f32.mrf.mxu0
          %v2832 = vadd.f32 0.0, %v2831
          %v2833 = vpop.f32.mrf.mxu0
          %v2834 = vadd.f32 0.0, %v2833
          %v2835 = vpop.f32.mrf.mxu0
          %v2836 = vadd.f32 0.0, %v2835
          %2837 = vmatprep.mubr.bf16.mxu0 %v1062
          %2838 = vmatmul.mubr.bf16.gmra.mxu0 %v1061
          %v2839 = vpop.f32.mrf.mxu0
          %v2840 = vadd.f32 0.0, %v2839
          %v2841 = vpop.f32.mrf.mxu0
          %v2842 = vadd.f32 0.0, %v2841
          %v2843 = vpop.f32.mrf.mxu0
          %v2844 = vadd.f32 0.0, %v2843
          %v2845 = vpop.f32.mrf.mxu0
          %v2846 = vadd.f32 0.0, %v2845
          %2847 = vmatprep.mubr.bf16.mxu0 %v1078
          %2848 = vmatmul.mubr.bf16.gmra.mxu0 %v1077
          %v2849 = vpop.f32.mrf.mxu0
          %v2850 = vadd.f32 0.0, %v2849
          %v2851 = vpop.f32.mrf.mxu0
          %v2852 = vadd.f32 0.0, %v2851
          %v2853 = vpop.f32.mrf.mxu0
          %v2854 = vadd.f32 0.0, %v2853
          %v2855 = vpop.f32.mrf.mxu0
          %v2856 = vadd.f32 0.0, %v2855
          %2857 = vmatprep.mubr.bf16.mxu0 %v1094
          %2858 = vmatmul.mubr.bf16.gmra.mxu0 %v1093
          %v2859 = vpop.f32.mrf.mxu0
          %v2860 = vadd.f32 0.0, %v2859
          %v2861 = vpop.f32.mrf.mxu0
          %v2862 = vadd.f32 0.0, %v2861
          %v2863 = vpop.f32.mrf.mxu0
          %v2864 = vadd.f32 0.0, %v2863
          %v2865 = vpop.f32.mrf.mxu0
          %v2866 = vadd.f32 0.0, %v2865
          %2867 = vmatprep.mubr.bf16.mxu0 %v1110
          %2868 = vmatmul.mubr.bf16.gmra.mxu0 %v1109
          %v2869 = vpop.f32.mrf.mxu0
          %v2870 = vadd.f32 0.0, %v2869
          %v2871 = vpop.f32.mrf.mxu0
          %v2872 = vadd.f32 0.0, %v2871
          %v2873 = vpop.f32.mrf.mxu0
          %v2874 = vadd.f32 0.0, %v2873
          %v2875 = vpop.f32.mrf.mxu0
          %v2876 = vadd.f32 0.0, %v2875
          %2877 = vmatprep.mubr.bf16.mxu0 %v1126
          %2878 = vmatmul.mubr.bf16.gmra.mxu0 %v1125
          %v2879 = vpop.f32.mrf.mxu0
          %v2880 = vadd.f32 0.0, %v2879
          %v2881 = vpop.f32.mrf.mxu0
          %v2882 = vadd.f32 0.0, %v2881
          %v2883 = vpop.f32.mrf.mxu0
          %v2884 = vadd.f32 0.0, %v2883
          %v2885 = vpop.f32.mrf.mxu0
          %v2886 = vadd.f32 0.0, %v2885
          %2887 = vmatprep.mubr.bf16.mxu0 %v1142
          %2888 = vmatmul.mubr.bf16.gmra.mxu0 %v1141
          %v2889 = vpop.f32.mrf.mxu0
          %v2890 = vadd.f32 0.0, %v2889
          %v2891 = vpop.f32.mrf.mxu0
          %v2892 = vadd.f32 0.0, %v2891
          %v2893 = vpop.f32.mrf.mxu0
          %v2894 = vadd.f32 0.0, %v2893
          %v2895 = vpop.f32.mrf.mxu0
          %v2896 = vadd.f32 0.0, %v2895
          %2897 = vmatprep.mubr.bf16.mxu0 %v1158
          %2898 = vmatmul.mubr.bf16.gmra.mxu0 %v1157
          %v2899 = vpop.f32.mrf.mxu0
          %v2900 = vadd.f32 0.0, %v2899
          %v2901 = vpop.f32.mrf.mxu0
          %v2902 = vadd.f32 0.0, %v2901
          %v2903 = vpop.f32.mrf.mxu0
          %v2904 = vadd.f32 0.0, %v2903
          %v2905 = vpop.f32.mrf.mxu0
          %v2906 = vadd.f32 0.0, %v2905
          %2907 = vmatprep.mubr.bf16.mxu0 %v1174
          %2908 = vmatmul.mubr.bf16.gmra.mxu0 %v1173
          %v2909 = vpop.f32.mrf.mxu0
          %v2910 = vadd.f32 0.0, %v2909
          %v2911 = vpop.f32.mrf.mxu0
          %v2912 = vadd.f32 0.0, %v2911
          %v2913 = vpop.f32.mrf.mxu0
          %v2914 = vadd.f32 0.0, %v2913
          %v2915 = vpop.f32.mrf.mxu0
          %v2916 = vadd.f32 0.0, %v2915
          %2917 = vdwg.mxu0
          %2918 = vmatprep.subr.bf16.mxu0 %v2260
          %2919 = vmatpush1.bf16.msra.mxu0 %v2259
          %2920 = vmatprep.subr.bf16.mxu0 %v2258
          %2921 = vmatpush1.bf16.msra.mxu0 %v2257
          %2922 = vmatprep.subr.bf16.mxu0 %v2256
          %2923 = vmatpush1.bf16.msra.mxu0 %v2255
          %2924 = vmatprep.subr.bf16.mxu0 %v2254
          %2925 = vmatpush1.bf16.msra.mxu0 %v2253
          %2926 = vmatprep.subr.bf16.mxu0 %v2252
          %2927 = vmatpush1.bf16.msra.mxu0 %v2251
          %2928 = vmatprep.subr.bf16.mxu0 %v2250
          %2929 = vmatpush1.bf16.msra.mxu0 %v2249
          %2930 = vmatprep.subr.bf16.mxu0 %v2248
          %2931 = vmatpush1.bf16.msra.mxu0 %v2247
          %2932 = vmatprep.subr.bf16.mxu0 %v2246
          %2933 = vmatpush1.bf16.msra.mxu0 %v2245
          %2934 = vmatprep.subr.bf16.mxu0 %v2276
          %2935 = vmatpush2.bf16.msra.mxu0 %v2275
          %2936 = vmatprep.subr.bf16.mxu0 %v2274
          %2937 = vmatpush2.bf16.msra.mxu0 %v2273
          %2938 = vmatprep.subr.bf16.mxu0 %v2272
          %2939 = vmatpush2.bf16.msra.mxu0 %v2271
          %2940 = vmatprep.subr.bf16.mxu0 %v2270
          %2941 = vmatpush2.bf16.msra.mxu0 %v2269
          %2942 = vmatprep.subr.bf16.mxu0 %v2268
          %2943 = vmatpush2.bf16.msra.mxu0 %v2267
          %2944 = vmatprep.subr.bf16.mxu0 %v2266
          %2945 = vmatpush2.bf16.msra.mxu0 %v2265
          %2946 = vmatprep.subr.bf16.mxu0 %v2264
          %2947 = vmatpush2.bf16.msra.mxu0 %v2263
          %2948 = vmatprep.subr.bf16.mxu0 %v2262
          %2949 = vmatpush2.bf16.msra.mxu0 %v2261
          %2950 = vmatprep.mubr.bf16.mxu0 %v936
          %2951 = vmatmul.mubr.bf16.gmra.mxu0 %v935
          %v2952 = vpop.f32.mrf.mxu0
          %v2953 = vadd.f32 %v2760, %v2952
          %v2954 = vpop.f32.mrf.mxu0
          %v2955 = vadd.f32 %v2762, %v2954
          %v2956 = vpop.f32.mrf.mxu0
          %v2957 = vadd.f32 %v2764, %v2956
          %v2958 = vpop.f32.mrf.mxu0
          %v2959 = vadd.f32 %v2766, %v2958
          %2960 = vmatprep.mubr.bf16.mxu0 %v952
          %2961 = vmatmul.mubr.bf16.gmra.mxu0 %v951
          %v2962 = vpop.f32.mrf.mxu0
          %v2963 = vadd.f32 %v2770, %v2962
          %v2964 = vpop.f32.mrf.mxu0
          %v2965 = vadd.f32 %v2772, %v2964
          %v2966 = vpop.f32.mrf.mxu0
          %v2967 = vadd.f32 %v2774, %v2966
          %v2968 = vpop.f32.mrf.mxu0
          %v2969 = vadd.f32 %v2776, %v2968
          %2970 = vmatprep.mubr.bf16.mxu0 %v968
          %2971 = vmatmul.mubr.bf16.gmra.mxu0 %v967
          %v2972 = vpop.f32.mrf.mxu0
          %v2973 = vadd.f32 %v2780, %v2972
          %v2974 = vpop.f32.mrf.mxu0
          %v2975 = vadd.f32 %v2782, %v2974
          %v2976 = vpop.f32.mrf.mxu0
          %v2977 = vadd.f32 %v2784, %v2976
          %v2978 = vpop.f32.mrf.mxu0
          %v2979 = vadd.f32 %v2786, %v2978
          %2980 = vmatprep.mubr.bf16.mxu0 %v984
          %2981 = vmatmul.mubr.bf16.gmra.mxu0 %v983
          %v2982 = vpop.f32.mrf.mxu0
          %v2983 = vadd.f32 %v2790, %v2982
          %v2984 = vpop.f32.mrf.mxu0
          %v2985 = vadd.f32 %v2792, %v2984
          %v2986 = vpop.f32.mrf.mxu0
          %v2987 = vadd.f32 %v2794, %v2986
          %v2988 = vpop.f32.mrf.mxu0
          %v2989 = vadd.f32 %v2796, %v2988
          %2990 = vmatprep.mubr.bf16.mxu0 %v1000
          %2991 = vmatmul.mubr.bf16.gmra.mxu0 %v999
          %v2992 = vpop.f32.mrf.mxu0
          %v2993 = vadd.f32 %v2800, %v2992
          %v2994 = vpop.f32.mrf.mxu0
          %v2995 = vadd.f32 %v2802, %v2994
          %v2996 = vpop.f32.mrf.mxu0
          %v2997 = vadd.f32 %v2804, %v2996
          %v2998 = vpop.f32.mrf.mxu0
          %v2999 = vadd.f32 %v2806, %v2998
          %3000 = vmatprep.mubr.bf16.mxu0 %v1016
          %3001 = vmatmul.mubr.bf16.gmra.mxu0 %v1015
          %v3002 = vpop.f32.mrf.mxu0
          %v3003 = vadd.f32 %v2810, %v3002
          %v3004 = vpop.f32.mrf.mxu0
          %v3005 = vadd.f32 %v2812, %v3004
          %v3006 = vpop.f32.mrf.mxu0
          %v3007 = vadd.f32 %v2814, %v3006
          %v3008 = vpop.f32.mrf.mxu0
          %v3009 = vadd.f32 %v2816, %v3008
          %3010 = vmatprep.mubr.bf16.mxu0 %v1032
          %3011 = vmatmul.mubr.bf16.gmra.mxu0 %v1031
          %v3012 = vpop.f32.mrf.mxu0
          %v3013 = vadd.f32 %v2820, %v3012
          %v3014 = vpop.f32.mrf.mxu0
          %v3015 = vadd.f32 %v2822, %v3014
          %v3016 = vpop.f32.mrf.mxu0
          %v3017 = vadd.f32 %v2824, %v3016
          %v3018 = vpop.f32.mrf.mxu0
          %v3019 = vadd.f32 %v2826, %v3018
          %3020 = vmatprep.mubr.bf16.mxu0 %v1048
          %3021 = vmatmul.mubr.bf16.gmra.mxu0 %v1047
          %v3022 = vpop.f32.mrf.mxu0
          %v3023 = vadd.f32 %v2830, %v3022
          %v3024 = vpop.f32.mrf.mxu0
          %v3025 = vadd.f32 %v2832, %v3024
          %v3026 = vpop.f32.mrf.mxu0
          %v3027 = vadd.f32 %v2834, %v3026
          %v3028 = vpop.f32.mrf.mxu0
          %v3029 = vadd.f32 %v2836, %v3028
          %3030 = vmatprep.mubr.bf16.mxu0 %v1064
          %3031 = vmatmul.mubr.bf16.gmra.mxu0 %v1063
          %v3032 = vpop.f32.mrf.mxu0
          %v3033 = vadd.f32 %v2840, %v3032
          %v3034 = vpop.f32.mrf.mxu0
          %v3035 = vadd.f32 %v2842, %v3034
          %v3036 = vpop.f32.mrf.mxu0
          %v3037 = vadd.f32 %v2844, %v3036
          %v3038 = vpop.f32.mrf.mxu0
          %v3039 = vadd.f32 %v2846, %v3038
          %3040 = vmatprep.mubr.bf16.mxu0 %v1080
          %3041 = vmatmul.mubr.bf16.gmra.mxu0 %v1079
          %v3042 = vpop.f32.mrf.mxu0
          %v3043 = vadd.f32 %v2850, %v3042
          %v3044 = vpop.f32.mrf.mxu0
          %v3045 = vadd.f32 %v2852, %v3044
          %v3046 = vpop.f32.mrf.mxu0
          %v3047 = vadd.f32 %v2854, %v3046
          %v3048 = vpop.f32.mrf.mxu0
          %v3049 = vadd.f32 %v2856, %v3048
          %3050 = vmatprep.mubr.bf16.mxu0 %v1096
          %3051 = vmatmul.mubr.bf16.gmra.mxu0 %v1095
          %v3052 = vpop.f32.mrf.mxu0
          %v3053 = vadd.f32 %v2860, %v3052
          %v3054 = vpop.f32.mrf.mxu0
          %v3055 = vadd.f32 %v2862, %v3054
          %v3056 = vpop.f32.mrf.mxu0
          %v3057 = vadd.f32 %v2864, %v3056
          %v3058 = vpop.f32.mrf.mxu0
          %v3059 = vadd.f32 %v2866, %v3058
          %3060 = vmatprep.mubr.bf16.mxu0 %v1112
          %3061 = vmatmul.mubr.bf16.gmra.mxu0 %v1111
          %v3062 = vpop.f32.mrf.mxu0
          %v3063 = vadd.f32 %v2870, %v3062
          %v3064 = vpop.f32.mrf.mxu0
          %v3065 = vadd.f32 %v2872, %v3064
          %v3066 = vpop.f32.mrf.mxu0
          %v3067 = vadd.f32 %v2874, %v3066
          %v3068 = vpop.f32.mrf.mxu0
          %v3069 = vadd.f32 %v2876, %v3068
          %3070 = vmatprep.mubr.bf16.mxu0 %v1128
          %3071 = vmatmul.mubr.bf16.gmra.mxu0 %v1127
          %v3072 = vpop.f32.mrf.mxu0
          %v3073 = vadd.f32 %v2880, %v3072
          %v3074 = vpop.f32.mrf.mxu0
          %v3075 = vadd.f32 %v2882, %v3074
          %v3076 = vpop.f32.mrf.mxu0
          %v3077 = vadd.f32 %v2884, %v3076
          %v3078 = vpop.f32.mrf.mxu0
          %v3079 = vadd.f32 %v2886, %v3078
          %3080 = vmatprep.mubr.bf16.mxu0 %v1144
          %3081 = vmatmul.mubr.bf16.gmra.mxu0 %v1143
          %v3082 = vpop.f32.mrf.mxu0
          %v3083 = vadd.f32 %v2890, %v3082
          %v3084 = vpop.f32.mrf.mxu0
          %v3085 = vadd.f32 %v2892, %v3084
          %v3086 = vpop.f32.mrf.mxu0
          %v3087 = vadd.f32 %v2894, %v3086
          %v3088 = vpop.f32.mrf.mxu0
          %v3089 = vadd.f32 %v2896, %v3088
          %3090 = vmatprep.mubr.bf16.mxu0 %v1160
          %3091 = vmatmul.mubr.bf16.gmra.mxu0 %v1159
          %v3092 = vpop.f32.mrf.mxu0
          %v3093 = vadd.f32 %v2900, %v3092
          %v3094 = vpop.f32.mrf.mxu0
          %v3095 = vadd.f32 %v2902, %v3094
          %v3096 = vpop.f32.mrf.mxu0
          %v3097 = vadd.f32 %v2904, %v3096
          %v3098 = vpop.f32.mrf.mxu0
          %v3099 = vadd.f32 %v2906, %v3098
          %3100 = vmatprep.mubr.bf16.mxu0 %v1176
          %3101 = vmatmul.mubr.bf16.gmra.mxu0 %v1175
          %v3102 = vpop.f32.mrf.mxu0
          %v3103 = vadd.f32 %v2910, %v3102
          %v3104 = vpop.f32.mrf.mxu0
          %v3105 = vadd.f32 %v2912, %v3104
          %v3106 = vpop.f32.mrf.mxu0
          %v3107 = vadd.f32 %v2914, %v3106
          %v3108 = vpop.f32.mrf.mxu0
          %v3109 = vadd.f32 %v2916, %v3108
          %3110 = vdwg.mxu0
          %3111 = vmatprep.subr.bf16.mxu0 %v2292
          %3112 = vmatpush1.bf16.msra.mxu0 %v2291
          %3113 = vmatprep.subr.bf16.mxu0 %v2290
          %3114 = vmatpush1.bf16.msra.mxu0 %v2289
          %3115 = vmatprep.subr.bf16.mxu0 %v2288
          %3116 = vmatpush1.bf16.msra.mxu0 %v2287
          %3117 = vmatprep.subr.bf16.mxu0 %v2286
          %3118 = vmatpush1.bf16.msra.mxu0 %v2285
          %3119 = vmatprep.subr.bf16.mxu0 %v2284
          %3120 = vmatpush1.bf16.msra.mxu0 %v2283
          %3121 = vmatprep.subr.bf16.mxu0 %v2282
          %3122 = vmatpush1.bf16.msra.mxu0 %v2281
          %3123 = vmatprep.subr.bf16.mxu0 %v2280
          %3124 = vmatpush1.bf16.msra.mxu0 %v2279
          %3125 = vmatprep.subr.bf16.mxu0 %v2278
          %3126 = vmatpush1.bf16.msra.mxu0 %v2277
          %3127 = vmatprep.subr.bf16.mxu0 %v2308
          %3128 = vmatpush2.bf16.msra.mxu0 %v2307
          %3129 = vmatprep.subr.bf16.mxu0 %v2306
          %3130 = vmatpush2.bf16.msra.mxu0 %v2305
          %3131 = vmatprep.subr.bf16.mxu0 %v2304
          %3132 = vmatpush2.bf16.msra.mxu0 %v2303
          %3133 = vmatprep.subr.bf16.mxu0 %v2302
          %3134 = vmatpush2.bf16.msra.mxu0 %v2301
          %3135 = vmatprep.subr.bf16.mxu0 %v2300
          %3136 = vmatpush2.bf16.msra.mxu0 %v2299
          %3137 = vmatprep.subr.bf16.mxu0 %v2298
          %3138 = vmatpush2.bf16.msra.mxu0 %v2297
          %3139 = vmatprep.subr.bf16.mxu0 %v2296
          %3140 = vmatpush2.bf16.msra.mxu0 %v2295
          %3141 = vmatprep.subr.bf16.mxu0 %v2294
          %3142 = vmatpush2.bf16.msra.mxu0 %v2293
          %3143 = vmatprep.mubr.bf16.mxu0 %v938
          %3144 = vmatmul.mubr.bf16.gmra.mxu0 %v937
          %v3145 = vpop.f32.mrf.mxu0
          %v3146 = vadd.f32 %v2953, %v3145
          %v3147 = vpop.f32.mrf.mxu0
          %v3148 = vadd.f32 %v2955, %v3147
          %v3149 = vpop.f32.mrf.mxu0
          %v3150 = vadd.f32 %v2957, %v3149
          %v3151 = vpop.f32.mrf.mxu0
          %v3152 = vadd.f32 %v2959, %v3151
          %3153 = vmatprep.mubr.bf16.mxu0 %v954
          %3154 = vmatmul.mubr.bf16.gmra.mxu0 %v953
          %v3155 = vpop.f32.mrf.mxu0
          %v3156 = vadd.f32 %v2963, %v3155
          %v3157 = vpop.f32.mrf.mxu0
          %v3158 = vadd.f32 %v2965, %v3157
          %v3159 = vpop.f32.mrf.mxu0
          %v3160 = vadd.f32 %v2967, %v3159
          %v3161 = vpop.f32.mrf.mxu0
          %v3162 = vadd.f32 %v2969, %v3161
          %3163 = vmatprep.mubr.bf16.mxu0 %v970
          %3164 = vmatmul.mubr.bf16.gmra.mxu0 %v969
          %v3165 = vpop.f32.mrf.mxu0
          %v3166 = vadd.f32 %v2973, %v3165
          %v3167 = vpop.f32.mrf.mxu0
          %v3168 = vadd.f32 %v2975, %v3167
          %v3169 = vpop.f32.mrf.mxu0
          %v3170 = vadd.f32 %v2977, %v3169
          %v3171 = vpop.f32.mrf.mxu0
          %v3172 = vadd.f32 %v2979, %v3171
          %3173 = vmatprep.mubr.bf16.mxu0 %v986
          %3174 = vmatmul.mubr.bf16.gmra.mxu0 %v985
          %v3175 = vpop.f32.mrf.mxu0
          %v3176 = vadd.f32 %v2983, %v3175
          %v3177 = vpop.f32.mrf.mxu0
          %v3178 = vadd.f32 %v2985, %v3177
          %v3179 = vpop.f32.mrf.mxu0
          %v3180 = vadd.f32 %v2987, %v3179
          %v3181 = vpop.f32.mrf.mxu0
          %v3182 = vadd.f32 %v2989, %v3181
          %3183 = vmatprep.mubr.bf16.mxu0 %v1002
          %3184 = vmatmul.mubr.bf16.gmra.mxu0 %v1001
          %v3185 = vpop.f32.mrf.mxu0
          %v3186 = vadd.f32 %v2993, %v3185
          %v3187 = vpop.f32.mrf.mxu0
          %v3188 = vadd.f32 %v2995, %v3187
          %v3189 = vpop.f32.mrf.mxu0
          %v3190 = vadd.f32 %v2997, %v3189
          %v3191 = vpop.f32.mrf.mxu0
          %v3192 = vadd.f32 %v2999, %v3191
          %3193 = vmatprep.mubr.bf16.mxu0 %v1018
          %3194 = vmatmul.mubr.bf16.gmra.mxu0 %v1017
          %v3195 = vpop.f32.mrf.mxu0
          %v3196 = vadd.f32 %v3003, %v3195
          %v3197 = vpop.f32.mrf.mxu0
          %v3198 = vadd.f32 %v3005, %v3197
          %v3199 = vpop.f32.mrf.mxu0
          %v3200 = vadd.f32 %v3007, %v3199
          %v3201 = vpop.f32.mrf.mxu0
          %v3202 = vadd.f32 %v3009, %v3201
          %3203 = vmatprep.mubr.bf16.mxu0 %v1034
          %3204 = vmatmul.mubr.bf16.gmra.mxu0 %v1033
          %v3205 = vpop.f32.mrf.mxu0
          %v3206 = vadd.f32 %v3013, %v3205
          %v3207 = vpop.f32.mrf.mxu0
          %v3208 = vadd.f32 %v3015, %v3207
          %v3209 = vpop.f32.mrf.mxu0
          %v3210 = vadd.f32 %v3017, %v3209
          %v3211 = vpop.f32.mrf.mxu0
          %v3212 = vadd.f32 %v3019, %v3211
          %3213 = vmatprep.mubr.bf16.mxu0 %v1050
          %3214 = vmatmul.mubr.bf16.gmra.mxu0 %v1049
          %v3215 = vpop.f32.mrf.mxu0
          %v3216 = vadd.f32 %v3023, %v3215
          %v3217 = vpop.f32.mrf.mxu0
          %v3218 = vadd.f32 %v3025, %v3217
          %v3219 = vpop.f32.mrf.mxu0
          %v3220 = vadd.f32 %v3027, %v3219
          %v3221 = vpop.f32.mrf.mxu0
          %v3222 = vadd.f32 %v3029, %v3221
          %3223 = vmatprep.mubr.bf16.mxu0 %v1066
          %3224 = vmatmul.mubr.bf16.gmra.mxu0 %v1065
          %v3225 = vpop.f32.mrf.mxu0
          %v3226 = vadd.f32 %v3033, %v3225
          %v3227 = vpop.f32.mrf.mxu0
          %v3228 = vadd.f32 %v3035, %v3227
          %v3229 = vpop.f32.mrf.mxu0
          %v3230 = vadd.f32 %v3037, %v3229
          %v3231 = vpop.f32.mrf.mxu0
          %v3232 = vadd.f32 %v3039, %v3231
          %3233 = vmatprep.mubr.bf16.mxu0 %v1082
          %3234 = vmatmul.mubr.bf16.gmra.mxu0 %v1081
          %v3235 = vpop.f32.mrf.mxu0
          %v3236 = vadd.f32 %v3043, %v3235
          %v3237 = vpop.f32.mrf.mxu0
          %v3238 = vadd.f32 %v3045, %v3237
          %v3239 = vpop.f32.mrf.mxu0
          %v3240 = vadd.f32 %v3047, %v3239
          %v3241 = vpop.f32.mrf.mxu0
          %v3242 = vadd.f32 %v3049, %v3241
          %3243 = vmatprep.mubr.bf16.mxu0 %v1098
          %3244 = vmatmul.mubr.bf16.gmra.mxu0 %v1097
          %v3245 = vpop.f32.mrf.mxu0
          %v3246 = vadd.f32 %v3053, %v3245
          %v3247 = vpop.f32.mrf.mxu0
          %v3248 = vadd.f32 %v3055, %v3247
          %v3249 = vpop.f32.mrf.mxu0
          %v3250 = vadd.f32 %v3057, %v3249
          %v3251 = vpop.f32.mrf.mxu0
          %v3252 = vadd.f32 %v3059, %v3251
          %3253 = vmatprep.mubr.bf16.mxu0 %v1114
          %3254 = vmatmul.mubr.bf16.gmra.mxu0 %v1113
          %v3255 = vpop.f32.mrf.mxu0
          %v3256 = vadd.f32 %v3063, %v3255
          %v3257 = vpop.f32.mrf.mxu0
          %v3258 = vadd.f32 %v3065, %v3257
          %v3259 = vpop.f32.mrf.mxu0
          %v3260 = vadd.f32 %v3067, %v3259
          %v3261 = vpop.f32.mrf.mxu0
          %v3262 = vadd.f32 %v3069, %v3261
          %3263 = vmatprep.mubr.bf16.mxu0 %v1130
          %3264 = vmatmul.mubr.bf16.gmra.mxu0 %v1129
          %v3265 = vpop.f32.mrf.mxu0
          %v3266 = vadd.f32 %v3073, %v3265
          %v3267 = vpop.f32.mrf.mxu0
          %v3268 = vadd.f32 %v3075, %v3267
          %v3269 = vpop.f32.mrf.mxu0
          %v3270 = vadd.f32 %v3077, %v3269
          %v3271 = vpop.f32.mrf.mxu0
          %v3272 = vadd.f32 %v3079, %v3271
          %3273 = vmatprep.mubr.bf16.mxu0 %v1146
          %3274 = vmatmul.mubr.bf16.gmra.mxu0 %v1145
          %v3275 = vpop.f32.mrf.mxu0
          %v3276 = vadd.f32 %v3083, %v3275
          %v3277 = vpop.f32.mrf.mxu0
          %v3278 = vadd.f32 %v3085, %v3277
          %v3279 = vpop.f32.mrf.mxu0
          %v3280 = vadd.f32 %v3087, %v3279
          %v3281 = vpop.f32.mrf.mxu0
          %v3282 = vadd.f32 %v3089, %v3281
          %3283 = vmatprep.mubr.bf16.mxu0 %v1162
          %3284 = vmatmul.mubr.bf16.gmra.mxu0 %v1161
          %v3285 = vpop.f32.mrf.mxu0
          %v3286 = vadd.f32 %v3093, %v3285
          %v3287 = vpop.f32.mrf.mxu0
          %v3288 = vadd.f32 %v3095, %v3287
          %v3289 = vpop.f32.mrf.mxu0
          %v3290 = vadd.f32 %v3097, %v3289
          %v3291 = vpop.f32.mrf.mxu0
          %v3292 = vadd.f32 %v3099, %v3291
          %3293 = vmatprep.mubr.bf16.mxu0 %v1178
          %3294 = vmatmul.mubr.bf16.gmra.mxu0 %v1177
          %v3295 = vpop.f32.mrf.mxu0
          %v3296 = vadd.f32 %v3103, %v3295
          %v3297 = vpop.f32.mrf.mxu0
          %v3298 = vadd.f32 %v3105, %v3297
          %v3299 = vpop.f32.mrf.mxu0
          %v3300 = vadd.f32 %v3107, %v3299
          %v3301 = vpop.f32.mrf.mxu0
          %v3302 = vadd.f32 %v3109, %v3301
          %3303 = vdwg.mxu0
          %3304 = vmatprep.subr.bf16.mxu0 %v2324
          %3305 = vmatpush1.bf16.msra.mxu0 %v2323
          %3306 = vmatprep.subr.bf16.mxu0 %v2322
          %3307 = vmatpush1.bf16.msra.mxu0 %v2321
          %3308 = vmatprep.subr.bf16.mxu0 %v2320
          %3309 = vmatpush1.bf16.msra.mxu0 %v2319
          %3310 = vmatprep.subr.bf16.mxu0 %v2318
          %3311 = vmatpush1.bf16.msra.mxu0 %v2317
          %3312 = vmatprep.subr.bf16.mxu0 %v2316
          %3313 = vmatpush1.bf16.msra.mxu0 %v2315
          %3314 = vmatprep.subr.bf16.mxu0 %v2314
          %3315 = vmatpush1.bf16.msra.mxu0 %v2313
          %3316 = vmatprep.subr.bf16.mxu0 %v2312
          %3317 = vmatpush1.bf16.msra.mxu0 %v2311
          %3318 = vmatprep.subr.bf16.mxu0 %v2310
          %3319 = vmatpush1.bf16.msra.mxu0 %v2309
          %3320 = vmatprep.subr.bf16.mxu0 %v2340
          %3321 = vmatpush2.bf16.msra.mxu0 %v2339
          %3322 = vmatprep.subr.bf16.mxu0 %v2338
          %3323 = vmatpush2.bf16.msra.mxu0 %v2337
          %3324 = vmatprep.subr.bf16.mxu0 %v2336
          %3325 = vmatpush2.bf16.msra.mxu0 %v2335
          %3326 = vmatprep.subr.bf16.mxu0 %v2334
          %3327 = vmatpush2.bf16.msra.mxu0 %v2333
          %3328 = vmatprep.subr.bf16.mxu0 %v2332
          %3329 = vmatpush2.bf16.msra.mxu0 %v2331
          %3330 = vmatprep.subr.bf16.mxu0 %v2330
          %3331 = vmatpush2.bf16.msra.mxu0 %v2329
          %3332 = vmatprep.subr.bf16.mxu0 %v2328
          %3333 = vmatpush2.bf16.msra.mxu0 %v2327
          %3334 = vmatprep.subr.bf16.mxu0 %v2326
          %3335 = vmatpush2.bf16.msra.mxu0 %v2325
          %3336 = vmatprep.mubr.bf16.mxu0 %v940
          %3337 = vmatmul.mubr.bf16.gmra.mxu0 %v939
          %v3338 = vpop.f32.mrf.mxu0
          %v3339 = vadd.f32 %v3146, %v3338
          %v3340 = vpop.f32.mrf.mxu0
          %v3341 = vadd.f32 %v3148, %v3340
          %v3342 = vpop.f32.mrf.mxu0
          %v3343 = vadd.f32 %v3150, %v3342
          %v3344 = vpop.f32.mrf.mxu0
          %v3345 = vadd.f32 %v3152, %v3344
          %3346 = vmatprep.mubr.bf16.mxu0 %v956
          %3347 = vmatmul.mubr.bf16.gmra.mxu0 %v955
          %v3348 = vpop.f32.mrf.mxu0
          %v3349 = vadd.f32 %v3156, %v3348
          %v3350 = vpop.f32.mrf.mxu0
          %v3351 = vadd.f32 %v3158, %v3350
          %v3352 = vpop.f32.mrf.mxu0
          %v3353 = vadd.f32 %v3160, %v3352
          %v3354 = vpop.f32.mrf.mxu0
          %v3355 = vadd.f32 %v3162, %v3354
          %3356 = vmatprep.mubr.bf16.mxu0 %v972
          %3357 = vmatmul.mubr.bf16.gmra.mxu0 %v971
          %v3358 = vpop.f32.mrf.mxu0
          %v3359 = vadd.f32 %v3166, %v3358
          %v3360 = vpop.f32.mrf.mxu0
          %v3361 = vadd.f32 %v3168, %v3360
          %v3362 = vpop.f32.mrf.mxu0
          %v3363 = vadd.f32 %v3170, %v3362
          %v3364 = vpop.f32.mrf.mxu0
          %v3365 = vadd.f32 %v3172, %v3364
          %3366 = vmatprep.mubr.bf16.mxu0 %v988
          %3367 = vmatmul.mubr.bf16.gmra.mxu0 %v987
          %v3368 = vpop.f32.mrf.mxu0
          %v3369 = vadd.f32 %v3176, %v3368
          %v3370 = vpop.f32.mrf.mxu0
          %v3371 = vadd.f32 %v3178, %v3370
          %v3372 = vpop.f32.mrf.mxu0
          %v3373 = vadd.f32 %v3180, %v3372
          %v3374 = vpop.f32.mrf.mxu0
          %v3375 = vadd.f32 %v3182, %v3374
          %3376 = vmatprep.mubr.bf16.mxu0 %v1004
          %3377 = vmatmul.mubr.bf16.gmra.mxu0 %v1003
          %v3378 = vpop.f32.mrf.mxu0
          %v3379 = vadd.f32 %v3186, %v3378
          %v3380 = vpop.f32.mrf.mxu0
          %v3381 = vadd.f32 %v3188, %v3380
          %v3382 = vpop.f32.mrf.mxu0
          %v3383 = vadd.f32 %v3190, %v3382
          %v3384 = vpop.f32.mrf.mxu0
          %v3385 = vadd.f32 %v3192, %v3384
          %3386 = vmatprep.mubr.bf16.mxu0 %v1020
          %3387 = vmatmul.mubr.bf16.gmra.mxu0 %v1019
          %v3388 = vpop.f32.mrf.mxu0
          %v3389 = vadd.f32 %v3196, %v3388
          %v3390 = vpop.f32.mrf.mxu0
          %v3391 = vadd.f32 %v3198, %v3390
          %v3392 = vpop.f32.mrf.mxu0
          %v3393 = vadd.f32 %v3200, %v3392
          %v3394 = vpop.f32.mrf.mxu0
          %v3395 = vadd.f32 %v3202, %v3394
          %3396 = vmatprep.mubr.bf16.mxu0 %v1036
          %3397 = vmatmul.mubr.bf16.gmra.mxu0 %v1035
          %v3398 = vpop.f32.mrf.mxu0
          %v3399 = vadd.f32 %v3206, %v3398
          %v3400 = vpop.f32.mrf.mxu0
          %v3401 = vadd.f32 %v3208, %v3400
          %v3402 = vpop.f32.mrf.mxu0
          %v3403 = vadd.f32 %v3210, %v3402
          %v3404 = vpop.f32.mrf.mxu0
          %v3405 = vadd.f32 %v3212, %v3404
          %3406 = vmatprep.mubr.bf16.mxu0 %v1052
          %3407 = vmatmul.mubr.bf16.gmra.mxu0 %v1051
          %v3408 = vpop.f32.mrf.mxu0
          %v3409 = vadd.f32 %v3216, %v3408
          %v3410 = vpop.f32.mrf.mxu0
          %v3411 = vadd.f32 %v3218, %v3410
          %v3412 = vpop.f32.mrf.mxu0
          %v3413 = vadd.f32 %v3220, %v3412
          %v3414 = vpop.f32.mrf.mxu0
          %v3415 = vadd.f32 %v3222, %v3414
          %3416 = vmatprep.mubr.bf16.mxu0 %v1068
          %3417 = vmatmul.mubr.bf16.gmra.mxu0 %v1067
          %v3418 = vpop.f32.mrf.mxu0
          %v3419 = vadd.f32 %v3226, %v3418
          %v3420 = vpop.f32.mrf.mxu0
          %v3421 = vadd.f32 %v3228, %v3420
          %v3422 = vpop.f32.mrf.mxu0
          %v3423 = vadd.f32 %v3230, %v3422
          %v3424 = vpop.f32.mrf.mxu0
          %v3425 = vadd.f32 %v3232, %v3424
          %3426 = vmatprep.mubr.bf16.mxu0 %v1084
          %3427 = vmatmul.mubr.bf16.gmra.mxu0 %v1083
          %v3428 = vpop.f32.mrf.mxu0
          %v3429 = vadd.f32 %v3236, %v3428
          %v3430 = vpop.f32.mrf.mxu0
          %v3431 = vadd.f32 %v3238, %v3430
          %v3432 = vpop.f32.mrf.mxu0
          %v3433 = vadd.f32 %v3240, %v3432
          %v3434 = vpop.f32.mrf.mxu0
          %v3435 = vadd.f32 %v3242, %v3434
          %3436 = vmatprep.mubr.bf16.mxu0 %v1100
          %3437 = vmatmul.mubr.bf16.gmra.mxu0 %v1099
          %v3438 = vpop.f32.mrf.mxu0
          %v3439 = vadd.f32 %v3246, %v3438
          %v3440 = vpop.f32.mrf.mxu0
          %v3441 = vadd.f32 %v3248, %v3440
          %v3442 = vpop.f32.mrf.mxu0
          %v3443 = vadd.f32 %v3250, %v3442
          %v3444 = vpop.f32.mrf.mxu0
          %v3445 = vadd.f32 %v3252, %v3444
          %3446 = vmatprep.mubr.bf16.mxu0 %v1116
          %3447 = vmatmul.mubr.bf16.gmra.mxu0 %v1115
          %v3448 = vpop.f32.mrf.mxu0
          %v3449 = vadd.f32 %v3256, %v3448
          %v3450 = vpop.f32.mrf.mxu0
          %v3451 = vadd.f32 %v3258, %v3450
          %v3452 = vpop.f32.mrf.mxu0
          %v3453 = vadd.f32 %v3260, %v3452
          %v3454 = vpop.f32.mrf.mxu0
          %v3455 = vadd.f32 %v3262, %v3454
          %3456 = vmatprep.mubr.bf16.mxu0 %v1132
          %3457 = vmatmul.mubr.bf16.gmra.mxu0 %v1131
          %v3458 = vpop.f32.mrf.mxu0
          %v3459 = vadd.f32 %v3266, %v3458
          %v3460 = vpop.f32.mrf.mxu0
          %v3461 = vadd.f32 %v3268, %v3460
          %v3462 = vpop.f32.mrf.mxu0
          %v3463 = vadd.f32 %v3270, %v3462
          %v3464 = vpop.f32.mrf.mxu0
          %v3465 = vadd.f32 %v3272, %v3464
          %3466 = vmatprep.mubr.bf16.mxu0 %v1148
          %3467 = vmatmul.mubr.bf16.gmra.mxu0 %v1147
          %v3468 = vpop.f32.mrf.mxu0
          %v3469 = vadd.f32 %v3276, %v3468
          %v3470 = vpop.f32.mrf.mxu0
          %v3471 = vadd.f32 %v3278, %v3470
          %v3472 = vpop.f32.mrf.mxu0
          %v3473 = vadd.f32 %v3280, %v3472
          %v3474 = vpop.f32.mrf.mxu0
          %v3475 = vadd.f32 %v3282, %v3474
          %3476 = vmatprep.mubr.bf16.mxu0 %v1164
          %3477 = vmatmul.mubr.bf16.gmra.mxu0 %v1163
          %v3478 = vpop.f32.mrf.mxu0
          %v3479 = vadd.f32 %v3286, %v3478
          %v3480 = vpop.f32.mrf.mxu0
          %v3481 = vadd.f32 %v3288, %v3480
          %v3482 = vpop.f32.mrf.mxu0
          %v3483 = vadd.f32 %v3290, %v3482
          %v3484 = vpop.f32.mrf.mxu0
          %v3485 = vadd.f32 %v3292, %v3484
          %3486 = vmatprep.mubr.bf16.mxu0 %v1180
          %3487 = vmatmul.mubr.bf16.gmra.mxu0 %v1179
          %v3488 = vpop.f32.mrf.mxu0
          %v3489 = vadd.f32 %v3296, %v3488
          %v3490 = vpop.f32.mrf.mxu0
          %v3491 = vadd.f32 %v3298, %v3490
          %v3492 = vpop.f32.mrf.mxu0
          %v3493 = vadd.f32 %v3300, %v3492
          %v3494 = vpop.f32.mrf.mxu0
          %v3495 = vadd.f32 %v3302, %v3494
          %3496 = vdwg.mxu0
          %3497 = vmatprep.subr.bf16.mxu0 %v2356
          %3498 = vmatpush1.bf16.msra.mxu0 %v2355
          %3499 = vmatprep.subr.bf16.mxu0 %v2354
          %3500 = vmatpush1.bf16.msra.mxu0 %v2353
          %3501 = vmatprep.subr.bf16.mxu0 %v2352
          %3502 = vmatpush1.bf16.msra.mxu0 %v2351
          %3503 = vmatprep.subr.bf16.mxu0 %v2350
          %3504 = vmatpush1.bf16.msra.mxu0 %v2349
          %3505 = vmatprep.subr.bf16.mxu0 %v2348
          %3506 = vmatpush1.bf16.msra.mxu0 %v2347
          %3507 = vmatprep.subr.bf16.mxu0 %v2346
          %3508 = vmatpush1.bf16.msra.mxu0 %v2345
          %3509 = vmatprep.subr.bf16.mxu0 %v2344
          %3510 = vmatpush1.bf16.msra.mxu0 %v2343
          %3511 = vmatprep.subr.bf16.mxu0 %v2342
          %3512 = vmatpush1.bf16.msra.mxu0 %v2341
          %3513 = vmatprep.subr.bf16.mxu0 %v2372
          %3514 = vmatpush2.bf16.msra.mxu0 %v2371
          %3515 = vmatprep.subr.bf16.mxu0 %v2370
          %3516 = vmatpush2.bf16.msra.mxu0 %v2369
          %3517 = vmatprep.subr.bf16.mxu0 %v2368
          %3518 = vmatpush2.bf16.msra.mxu0 %v2367
          %3519 = vmatprep.subr.bf16.mxu0 %v2366
          %3520 = vmatpush2.bf16.msra.mxu0 %v2365
          %3521 = vmatprep.subr.bf16.mxu0 %v2364
          %3522 = vmatpush2.bf16.msra.mxu0 %v2363
          %3523 = vmatprep.subr.bf16.mxu0 %v2362
          %3524 = vmatpush2.bf16.msra.mxu0 %v2361
          %3525 = vmatprep.subr.bf16.mxu0 %v2360
          %3526 = vmatpush2.bf16.msra.mxu0 %v2359
          %3527 = vmatprep.subr.bf16.mxu0 %v2358
          %3528 = vmatpush2.bf16.msra.mxu0 %v2357
          %3529 = vmatprep.mubr.bf16.mxu0 %v942
          %3530 = vmatmul.mubr.bf16.gmra.mxu0 %v941
          %v3531 = vpop.f32.mrf.mxu0
          %v3532 = vadd.f32 %v3339, %v3531
          %v3533 = vpop.f32.mrf.mxu0
          %v3534 = vadd.f32 %v3341, %v3533
          %v3535 = vpop.f32.mrf.mxu0
          %v3536 = vadd.f32 %v3343, %v3535
          %v3537 = vpop.f32.mrf.mxu0
          %v3538 = vadd.f32 %v3345, %v3537
          %3539 = vmatprep.mubr.bf16.mxu0 %v958
          %3540 = vmatmul.mubr.bf16.gmra.mxu0 %v957
          %v3541 = vpop.f32.mrf.mxu0
          %v3542 = vadd.f32 %v3349, %v3541
          %v3543 = vpop.f32.mrf.mxu0
          %v3544 = vadd.f32 %v3351, %v3543
          %v3545 = vpop.f32.mrf.mxu0
          %v3546 = vadd.f32 %v3353, %v3545
          %v3547 = vpop.f32.mrf.mxu0
          %v3548 = vadd.f32 %v3355, %v3547
          %3549 = vmatprep.mubr.bf16.mxu0 %v974
          %3550 = vmatmul.mubr.bf16.gmra.mxu0 %v973
          %v3551 = vpop.f32.mrf.mxu0
          %v3552 = vadd.f32 %v3359, %v3551
          %v3553 = vpop.f32.mrf.mxu0
          %v3554 = vadd.f32 %v3361, %v3553
          %v3555 = vpop.f32.mrf.mxu0
          %v3556 = vadd.f32 %v3363, %v3555
          %v3557 = vpop.f32.mrf.mxu0
          %v3558 = vadd.f32 %v3365, %v3557
          %3559 = vmatprep.mubr.bf16.mxu0 %v990
          %3560 = vmatmul.mubr.bf16.gmra.mxu0 %v989
          %v3561 = vpop.f32.mrf.mxu0
          %v3562 = vadd.f32 %v3369, %v3561
          %v3563 = vpop.f32.mrf.mxu0
          %v3564 = vadd.f32 %v3371, %v3563
          %v3565 = vpop.f32.mrf.mxu0
          %v3566 = vadd.f32 %v3373, %v3565
          %v3567 = vpop.f32.mrf.mxu0
          %v3568 = vadd.f32 %v3375, %v3567
          %3569 = vmatprep.mubr.bf16.mxu0 %v1006
          %3570 = vmatmul.mubr.bf16.gmra.mxu0 %v1005
          %v3571 = vpop.f32.mrf.mxu0
          %v3572 = vadd.f32 %v3379, %v3571
          %v3573 = vpop.f32.mrf.mxu0
          %v3574 = vadd.f32 %v3381, %v3573
          %v3575 = vpop.f32.mrf.mxu0
          %v3576 = vadd.f32 %v3383, %v3575
          %v3577 = vpop.f32.mrf.mxu0
          %v3578 = vadd.f32 %v3385, %v3577
          %3579 = vmatprep.mubr.bf16.mxu0 %v1022
          %3580 = vmatmul.mubr.bf16.gmra.mxu0 %v1021
          %v3581 = vpop.f32.mrf.mxu0
          %v3582 = vadd.f32 %v3389, %v3581
          %v3583 = vpop.f32.mrf.mxu0
          %v3584 = vadd.f32 %v3391, %v3583
          %v3585 = vpop.f32.mrf.mxu0
          %v3586 = vadd.f32 %v3393, %v3585
          %v3587 = vpop.f32.mrf.mxu0
          %v3588 = vadd.f32 %v3395, %v3587
          %3589 = vmatprep.mubr.bf16.mxu0 %v1038
          %3590 = vmatmul.mubr.bf16.gmra.mxu0 %v1037
          %v3591 = vpop.f32.mrf.mxu0
          %v3592 = vadd.f32 %v3399, %v3591
          %v3593 = vpop.f32.mrf.mxu0
          %v3594 = vadd.f32 %v3401, %v3593
          %v3595 = vpop.f32.mrf.mxu0
          %v3596 = vadd.f32 %v3403, %v3595
          %v3597 = vpop.f32.mrf.mxu0
          %v3598 = vadd.f32 %v3405, %v3597
          %3599 = vmatprep.mubr.bf16.mxu0 %v1054
          %3600 = vmatmul.mubr.bf16.gmra.mxu0 %v1053
          %v3601 = vpop.f32.mrf.mxu0
          %v3602 = vadd.f32 %v3409, %v3601
          %v3603 = vpop.f32.mrf.mxu0
          %v3604 = vadd.f32 %v3411, %v3603
          %v3605 = vpop.f32.mrf.mxu0
          %v3606 = vadd.f32 %v3413, %v3605
          %v3607 = vpop.f32.mrf.mxu0
          %v3608 = vadd.f32 %v3415, %v3607
          %3609 = vmatprep.mubr.bf16.mxu0 %v1070
          %3610 = vmatmul.mubr.bf16.gmra.mxu0 %v1069
          %v3611 = vpop.f32.mrf.mxu0
          %v3612 = vadd.f32 %v3419, %v3611
          %v3613 = vpop.f32.mrf.mxu0
          %v3614 = vadd.f32 %v3421, %v3613
          %v3615 = vpop.f32.mrf.mxu0
          %v3616 = vadd.f32 %v3423, %v3615
          %v3617 = vpop.f32.mrf.mxu0
          %v3618 = vadd.f32 %v3425, %v3617
          %3619 = vmatprep.mubr.bf16.mxu0 %v1086
          %3620 = vmatmul.mubr.bf16.gmra.mxu0 %v1085
          %v3621 = vpop.f32.mrf.mxu0
          %v3622 = vadd.f32 %v3429, %v3621
          %v3623 = vpop.f32.mrf.mxu0
          %v3624 = vadd.f32 %v3431, %v3623
          %v3625 = vpop.f32.mrf.mxu0
          %v3626 = vadd.f32 %v3433, %v3625
          %v3627 = vpop.f32.mrf.mxu0
          %v3628 = vadd.f32 %v3435, %v3627
          %3629 = vmatprep.mubr.bf16.mxu0 %v1102
          %3630 = vmatmul.mubr.bf16.gmra.mxu0 %v1101
          %v3631 = vpop.f32.mrf.mxu0
          %v3632 = vadd.f32 %v3439, %v3631
          %v3633 = vpop.f32.mrf.mxu0
          %v3634 = vadd.f32 %v3441, %v3633
          %v3635 = vpop.f32.mrf.mxu0
          %v3636 = vadd.f32 %v3443, %v3635
          %v3637 = vpop.f32.mrf.mxu0
          %v3638 = vadd.f32 %v3445, %v3637
          %3639 = vmatprep.mubr.bf16.mxu0 %v1118
          %3640 = vmatmul.mubr.bf16.gmra.mxu0 %v1117
          %v3641 = vpop.f32.mrf.mxu0
          %v3642 = vadd.f32 %v3449, %v3641
          %v3643 = vpop.f32.mrf.mxu0
          %v3644 = vadd.f32 %v3451, %v3643
          %v3645 = vpop.f32.mrf.mxu0
          %v3646 = vadd.f32 %v3453, %v3645
          %v3647 = vpop.f32.mrf.mxu0
          %v3648 = vadd.f32 %v3455, %v3647
          %3649 = vmatprep.mubr.bf16.mxu0 %v1134
          %3650 = vmatmul.mubr.bf16.gmra.mxu0 %v1133
          %v3651 = vpop.f32.mrf.mxu0
          %v3652 = vadd.f32 %v3459, %v3651
          %v3653 = vpop.f32.mrf.mxu0
          %v3654 = vadd.f32 %v3461, %v3653
          %v3655 = vpop.f32.mrf.mxu0
          %v3656 = vadd.f32 %v3463, %v3655
          %v3657 = vpop.f32.mrf.mxu0
          %v3658 = vadd.f32 %v3465, %v3657
          %3659 = vmatprep.mubr.bf16.mxu0 %v1150
          %3660 = vmatmul.mubr.bf16.gmra.mxu0 %v1149
          %v3661 = vpop.f32.mrf.mxu0
          %v3662 = vadd.f32 %v3469, %v3661
          %v3663 = vpop.f32.mrf.mxu0
          %v3664 = vadd.f32 %v3471, %v3663
          %v3665 = vpop.f32.mrf.mxu0
          %v3666 = vadd.f32 %v3473, %v3665
          %v3667 = vpop.f32.mrf.mxu0
          %v3668 = vadd.f32 %v3475, %v3667
          %3669 = vmatprep.mubr.bf16.mxu0 %v1166
          %3670 = vmatmul.mubr.bf16.gmra.mxu0 %v1165
          %v3671 = vpop.f32.mrf.mxu0
          %v3672 = vadd.f32 %v3479, %v3671
          %v3673 = vpop.f32.mrf.mxu0
          %v3674 = vadd.f32 %v3481, %v3673
          %v3675 = vpop.f32.mrf.mxu0
          %v3676 = vadd.f32 %v3483, %v3675
          %v3677 = vpop.f32.mrf.mxu0
          %v3678 = vadd.f32 %v3485, %v3677
          %3679 = vmatprep.mubr.bf16.mxu0 %v1182
          %3680 = vmatmul.mubr.bf16.gmra.mxu0 %v1181
          %v3681 = vpop.f32.mrf.mxu0
          %v3682 = vadd.f32 %v3489, %v3681
          %v3683 = vpop.f32.mrf.mxu0
          %v3684 = vadd.f32 %v3491, %v3683
          %v3685 = vpop.f32.mrf.mxu0
          %v3686 = vadd.f32 %v3493, %v3685
          %v3687 = vpop.f32.mrf.mxu0
          %v3688 = vadd.f32 %v3495, %v3687
          %3689 = vdwg.mxu0
          %3690 = vmatprep.subr.bf16.mxu0 %v2388
          %3691 = vmatpush1.bf16.msra.mxu0 %v2387
          %3692 = vmatprep.subr.bf16.mxu0 %v2386
          %3693 = vmatpush1.bf16.msra.mxu0 %v2385
          %3694 = vmatprep.subr.bf16.mxu0 %v2384
          %3695 = vmatpush1.bf16.msra.mxu0 %v2383
          %3696 = vmatprep.subr.bf16.mxu0 %v2382
          %3697 = vmatpush1.bf16.msra.mxu0 %v2381
          %3698 = vmatprep.subr.bf16.mxu0 %v2380
          %3699 = vmatpush1.bf16.msra.mxu0 %v2379
          %3700 = vmatprep.subr.bf16.mxu0 %v2378
          %3701 = vmatpush1.bf16.msra.mxu0 %v2377
          %3702 = vmatprep.subr.bf16.mxu0 %v2376
          %3703 = vmatpush1.bf16.msra.mxu0 %v2375
          %3704 = vmatprep.subr.bf16.mxu0 %v2374
          %3705 = vmatpush1.bf16.msra.mxu0 %v2373
          %3706 = vmatprep.subr.bf16.mxu0 %v2404
          %3707 = vmatpush2.bf16.msra.mxu0 %v2403
          %3708 = vmatprep.subr.bf16.mxu0 %v2402
          %3709 = vmatpush2.bf16.msra.mxu0 %v2401
          %3710 = vmatprep.subr.bf16.mxu0 %v2400
          %3711 = vmatpush2.bf16.msra.mxu0 %v2399
          %3712 = vmatprep.subr.bf16.mxu0 %v2398
          %3713 = vmatpush2.bf16.msra.mxu0 %v2397
          %3714 = vmatprep.subr.bf16.mxu0 %v2396
          %3715 = vmatpush2.bf16.msra.mxu0 %v2395
          %3716 = vmatprep.subr.bf16.mxu0 %v2394
          %3717 = vmatpush2.bf16.msra.mxu0 %v2393
          %3718 = vmatprep.subr.bf16.mxu0 %v2392
          %3719 = vmatpush2.bf16.msra.mxu0 %v2391
          %3720 = vmatprep.subr.bf16.mxu0 %v2390
          %3721 = vmatpush2.bf16.msra.mxu0 %v2389
          %3722 = vmatprep.mubr.bf16.mxu0 %v944
          %3723 = vmatmul.mubr.bf16.gmra.mxu0 %v943
          %v3724 = vpop.f32.mrf.mxu0
          %v3725 = vadd.f32 %v3532, %v3724
          %v3726 = vpop.f32.mrf.mxu0
          %v3727 = vadd.f32 %v3534, %v3726
          %v3728 = vpop.f32.mrf.mxu0
          %v3729 = vadd.f32 %v3536, %v3728
          %v3730 = vpop.f32.mrf.mxu0
          %v3731 = vadd.f32 %v3538, %v3730
          %3732 = vmatprep.mubr.bf16.mxu0 %v960
          %3733 = vmatmul.mubr.bf16.gmra.mxu0 %v959
          %v3734 = vpop.f32.mrf.mxu0
          %v3735 = vadd.f32 %v3542, %v3734
          %v3736 = vpop.f32.mrf.mxu0
          %v3737 = vadd.f32 %v3544, %v3736
          %v3738 = vpop.f32.mrf.mxu0
          %v3739 = vadd.f32 %v3546, %v3738
          %v3740 = vpop.f32.mrf.mxu0
          %v3741 = vadd.f32 %v3548, %v3740
          %3742 = vmatprep.mubr.bf16.mxu0 %v976
          %3743 = vmatmul.mubr.bf16.gmra.mxu0 %v975
          %v3744 = vpop.f32.mrf.mxu0
          %v3745 = vadd.f32 %v3552, %v3744
          %v3746 = vpop.f32.mrf.mxu0
          %v3747 = vadd.f32 %v3554, %v3746
          %v3748 = vpop.f32.mrf.mxu0
          %v3749 = vadd.f32 %v3556, %v3748
          %v3750 = vpop.f32.mrf.mxu0
          %v3751 = vadd.f32 %v3558, %v3750
          %3752 = vmatprep.mubr.bf16.mxu0 %v992
          %3753 = vmatmul.mubr.bf16.gmra.mxu0 %v991
          %v3754 = vpop.f32.mrf.mxu0
          %v3755 = vadd.f32 %v3562, %v3754
          %v3756 = vpop.f32.mrf.mxu0
          %v3757 = vadd.f32 %v3564, %v3756
          %v3758 = vpop.f32.mrf.mxu0
          %v3759 = vadd.f32 %v3566, %v3758
          %v3760 = vpop.f32.mrf.mxu0
          %v3761 = vadd.f32 %v3568, %v3760
          %3762 = vmatprep.mubr.bf16.mxu0 %v1008
          %3763 = vmatmul.mubr.bf16.gmra.mxu0 %v1007
          %v3764 = vpop.f32.mrf.mxu0
          %v3765 = vadd.f32 %v3572, %v3764
          %v3766 = vpop.f32.mrf.mxu0
          %v3767 = vadd.f32 %v3574, %v3766
          %v3768 = vpop.f32.mrf.mxu0
          %v3769 = vadd.f32 %v3576, %v3768
          %v3770 = vpop.f32.mrf.mxu0
          %v3771 = vadd.f32 %v3578, %v3770
          %3772 = vmatprep.mubr.bf16.mxu0 %v1024
          %3773 = vmatmul.mubr.bf16.gmra.mxu0 %v1023
          %v3774 = vpop.f32.mrf.mxu0
          %v3775 = vadd.f32 %v3582, %v3774
          %v3776 = vpop.f32.mrf.mxu0
          %v3777 = vadd.f32 %v3584, %v3776
          %v3778 = vpop.f32.mrf.mxu0
          %v3779 = vadd.f32 %v3586, %v3778
          %v3780 = vpop.f32.mrf.mxu0
          %v3781 = vadd.f32 %v3588, %v3780
          %3782 = vmatprep.mubr.bf16.mxu0 %v1040
          %3783 = vmatmul.mubr.bf16.gmra.mxu0 %v1039
          %v3784 = vpop.f32.mrf.mxu0
          %v3785 = vadd.f32 %v3592, %v3784
          %v3786 = vpop.f32.mrf.mxu0
          %v3787 = vadd.f32 %v3594, %v3786
          %v3788 = vpop.f32.mrf.mxu0
          %v3789 = vadd.f32 %v3596, %v3788
          %v3790 = vpop.f32.mrf.mxu0
          %v3791 = vadd.f32 %v3598, %v3790
          %3792 = vmatprep.mubr.bf16.mxu0 %v1056
          %3793 = vmatmul.mubr.bf16.gmra.mxu0 %v1055
          %v3794 = vpop.f32.mrf.mxu0
          %v3795 = vadd.f32 %v3602, %v3794
          %v3796 = vpop.f32.mrf.mxu0
          %v3797 = vadd.f32 %v3604, %v3796
          %v3798 = vpop.f32.mrf.mxu0
          %v3799 = vadd.f32 %v3606, %v3798
          %v3800 = vpop.f32.mrf.mxu0
          %v3801 = vadd.f32 %v3608, %v3800
          %3802 = vmatprep.mubr.bf16.mxu0 %v1072
          %3803 = vmatmul.mubr.bf16.gmra.mxu0 %v1071
          %v3804 = vpop.f32.mrf.mxu0
          %v3805 = vadd.f32 %v3612, %v3804
          %v3806 = vpop.f32.mrf.mxu0
          %v3807 = vadd.f32 %v3614, %v3806
          %v3808 = vpop.f32.mrf.mxu0
          %v3809 = vadd.f32 %v3616, %v3808
          %v3810 = vpop.f32.mrf.mxu0
          %v3811 = vadd.f32 %v3618, %v3810
          %3812 = vmatprep.mubr.bf16.mxu0 %v1088
          %3813 = vmatmul.mubr.bf16.gmra.mxu0 %v1087
          %v3814 = vpop.f32.mrf.mxu0
          %v3815 = vadd.f32 %v3622, %v3814
          %v3816 = vpop.f32.mrf.mxu0
          %v3817 = vadd.f32 %v3624, %v3816
          %v3818 = vpop.f32.mrf.mxu0
          %v3819 = vadd.f32 %v3626, %v3818
          %v3820 = vpop.f32.mrf.mxu0
          %v3821 = vadd.f32 %v3628, %v3820
          %3822 = vmatprep.mubr.bf16.mxu0 %v1104
          %3823 = vmatmul.mubr.bf16.gmra.mxu0 %v1103
          %v3824 = vpop.f32.mrf.mxu0
          %v3825 = vadd.f32 %v3632, %v3824
          %v3826 = vpop.f32.mrf.mxu0
          %v3827 = vadd.f32 %v3634, %v3826
          %v3828 = vpop.f32.mrf.mxu0
          %v3829 = vadd.f32 %v3636, %v3828
          %v3830 = vpop.f32.mrf.mxu0
          %v3831 = vadd.f32 %v3638, %v3830
          %3832 = vmatprep.mubr.bf16.mxu0 %v1120
          %3833 = vmatmul.mubr.bf16.gmra.mxu0 %v1119
          %v3834 = vpop.f32.mrf.mxu0
          %v3835 = vadd.f32 %v3642, %v3834
          %v3836 = vpop.f32.mrf.mxu0
          %v3837 = vadd.f32 %v3644, %v3836
          %v3838 = vpop.f32.mrf.mxu0
          %v3839 = vadd.f32 %v3646, %v3838
          %v3840 = vpop.f32.mrf.mxu0
          %v3841 = vadd.f32 %v3648, %v3840
          %3842 = vmatprep.mubr.bf16.mxu0 %v1136
          %3843 = vmatmul.mubr.bf16.gmra.mxu0 %v1135
          %v3844 = vpop.f32.mrf.mxu0
          %v3845 = vadd.f32 %v3652, %v3844
          %v3846 = vpop.f32.mrf.mxu0
          %v3847 = vadd.f32 %v3654, %v3846
          %v3848 = vpop.f32.mrf.mxu0
          %v3849 = vadd.f32 %v3656, %v3848
          %v3850 = vpop.f32.mrf.mxu0
          %v3851 = vadd.f32 %v3658, %v3850
          %3852 = vmatprep.mubr.bf16.mxu0 %v1152
          %3853 = vmatmul.mubr.bf16.gmra.mxu0 %v1151
          %v3854 = vpop.f32.mrf.mxu0
          %v3855 = vadd.f32 %v3662, %v3854
          %v3856 = vpop.f32.mrf.mxu0
          %v3857 = vadd.f32 %v3664, %v3856
          %v3858 = vpop.f32.mrf.mxu0
          %v3859 = vadd.f32 %v3666, %v3858
          %v3860 = vpop.f32.mrf.mxu0
          %v3861 = vadd.f32 %v3668, %v3860
          %3862 = vmatprep.mubr.bf16.mxu0 %v1168
          %3863 = vmatmul.mubr.bf16.gmra.mxu0 %v1167
          %v3864 = vpop.f32.mrf.mxu0
          %v3865 = vadd.f32 %v3672, %v3864
          %v3866 = vpop.f32.mrf.mxu0
          %v3867 = vadd.f32 %v3674, %v3866
          %v3868 = vpop.f32.mrf.mxu0
          %v3869 = vadd.f32 %v3676, %v3868
          %v3870 = vpop.f32.mrf.mxu0
          %v3871 = vadd.f32 %v3678, %v3870
          %3872 = vmatprep.mubr.bf16.mxu0 %v1184
          %3873 = vmatmul.mubr.bf16.gmra.mxu0 %v1183
          %v3874 = vpop.f32.mrf.mxu0
          %v3875 = vadd.f32 %v3682, %v3874
          %v3876 = vpop.f32.mrf.mxu0
          %v3877 = vadd.f32 %v3684, %v3876
          %v3878 = vpop.f32.mrf.mxu0
          %v3879 = vadd.f32 %v3686, %v3878
          %v3880 = vpop.f32.mrf.mxu0
          %v3881 = vadd.f32 %v3688, %v3880
          %3882 = vdwg.mxu0
          %3883 = vmatprep.subr.bf16.mxu0 %v2420
          %3884 = vmatpush1.bf16.msra.mxu0 %v2419
          %3885 = vmatprep.subr.bf16.mxu0 %v2418
          %3886 = vmatpush1.bf16.msra.mxu0 %v2417
          %3887 = vmatprep.subr.bf16.mxu0 %v2416
          %3888 = vmatpush1.bf16.msra.mxu0 %v2415
          %3889 = vmatprep.subr.bf16.mxu0 %v2414
          %3890 = vmatpush1.bf16.msra.mxu0 %v2413
          %3891 = vmatprep.subr.bf16.mxu0 %v2412
          %3892 = vmatpush1.bf16.msra.mxu0 %v2411
          %3893 = vmatprep.subr.bf16.mxu0 %v2410
          %3894 = vmatpush1.bf16.msra.mxu0 %v2409
          %3895 = vmatprep.subr.bf16.mxu0 %v2408
          %3896 = vmatpush1.bf16.msra.mxu0 %v2407
          %3897 = vmatprep.subr.bf16.mxu0 %v2406
          %3898 = vmatpush1.bf16.msra.mxu0 %v2405
          %3899 = vmatprep.subr.bf16.mxu0 %v2436
          %3900 = vmatpush2.bf16.msra.mxu0 %v2435
          %3901 = vmatprep.subr.bf16.mxu0 %v2434
          %3902 = vmatpush2.bf16.msra.mxu0 %v2433
          %3903 = vmatprep.subr.bf16.mxu0 %v2432
          %3904 = vmatpush2.bf16.msra.mxu0 %v2431
          %3905 = vmatprep.subr.bf16.mxu0 %v2430
          %3906 = vmatpush2.bf16.msra.mxu0 %v2429
          %3907 = vmatprep.subr.bf16.mxu0 %v2428
          %3908 = vmatpush2.bf16.msra.mxu0 %v2427
          %3909 = vmatprep.subr.bf16.mxu0 %v2426
          %3910 = vmatpush2.bf16.msra.mxu0 %v2425
          %3911 = vmatprep.subr.bf16.mxu0 %v2424
          %3912 = vmatpush2.bf16.msra.mxu0 %v2423
          %3913 = vmatprep.subr.bf16.mxu0 %v2422
          %3914 = vmatpush2.bf16.msra.mxu0 %v2421
          %3915 = vmatprep.mubr.bf16.mxu0 %v946
          %3916 = vmatmul.mubr.bf16.gmra.mxu0 %v945
          %v3917 = vpop.f32.mrf.mxu0
          %v3918 = vadd.f32 %v3725, %v3917
          %v3919 = vpop.f32.mrf.mxu0
          %v3920 = vadd.f32 %v3727, %v3919
          %v3921 = vpop.f32.mrf.mxu0
          %v3922 = vadd.f32 %v3729, %v3921
          %v3923 = vpop.f32.mrf.mxu0
          %v3924 = vadd.f32 %v3731, %v3923
          %3925 = vmatprep.mubr.bf16.mxu0 %v962
          %3926 = vmatmul.mubr.bf16.gmra.mxu0 %v961
          %v3927 = vpop.f32.mrf.mxu0
          %v3928 = vadd.f32 %v3735, %v3927
          %v3929 = vpop.f32.mrf.mxu0
          %v3930 = vadd.f32 %v3737, %v3929
          %v3931 = vpop.f32.mrf.mxu0
          %v3932 = vadd.f32 %v3739, %v3931
          %v3933 = vpop.f32.mrf.mxu0
          %v3934 = vadd.f32 %v3741, %v3933
          %3935 = vmatprep.mubr.bf16.mxu0 %v978
          %3936 = vmatmul.mubr.bf16.gmra.mxu0 %v977
          %v3937 = vpop.f32.mrf.mxu0
          %v3938 = vadd.f32 %v3745, %v3937
          %v3939 = vpop.f32.mrf.mxu0
          %v3940 = vadd.f32 %v3747, %v3939
          %v3941 = vpop.f32.mrf.mxu0
          %v3942 = vadd.f32 %v3749, %v3941
          %v3943 = vpop.f32.mrf.mxu0
          %v3944 = vadd.f32 %v3751, %v3943
          %3945 = vmatprep.mubr.bf16.mxu0 %v994
          %3946 = vmatmul.mubr.bf16.gmra.mxu0 %v993
          %v3947 = vpop.f32.mrf.mxu0
          %v3948 = vadd.f32 %v3755, %v3947
          %v3949 = vpop.f32.mrf.mxu0
          %v3950 = vadd.f32 %v3757, %v3949
          %v3951 = vpop.f32.mrf.mxu0
          %v3952 = vadd.f32 %v3759, %v3951
          %v3953 = vpop.f32.mrf.mxu0
          %v3954 = vadd.f32 %v3761, %v3953
          %3955 = vmatprep.mubr.bf16.mxu0 %v1010
          %3956 = vmatmul.mubr.bf16.gmra.mxu0 %v1009
          %v3957 = vpop.f32.mrf.mxu0
          %v3958 = vadd.f32 %v3765, %v3957
          %v3959 = vpop.f32.mrf.mxu0
          %v3960 = vadd.f32 %v3767, %v3959
          %v3961 = vpop.f32.mrf.mxu0
          %v3962 = vadd.f32 %v3769, %v3961
          %v3963 = vpop.f32.mrf.mxu0
          %v3964 = vadd.f32 %v3771, %v3963
          %3965 = vmatprep.mubr.bf16.mxu0 %v1026
          %3966 = vmatmul.mubr.bf16.gmra.mxu0 %v1025
          %v3967 = vpop.f32.mrf.mxu0
          %v3968 = vadd.f32 %v3775, %v3967
          %v3969 = vpop.f32.mrf.mxu0
          %v3970 = vadd.f32 %v3777, %v3969
          %v3971 = vpop.f32.mrf.mxu0
          %v3972 = vadd.f32 %v3779, %v3971
          %v3973 = vpop.f32.mrf.mxu0
          %v3974 = vadd.f32 %v3781, %v3973
          %3975 = vmatprep.mubr.bf16.mxu0 %v1042
          %3976 = vmatmul.mubr.bf16.gmra.mxu0 %v1041
          %v3977 = vpop.f32.mrf.mxu0
          %v3978 = vadd.f32 %v3785, %v3977
          %v3979 = vpop.f32.mrf.mxu0
          %v3980 = vadd.f32 %v3787, %v3979
          %v3981 = vpop.f32.mrf.mxu0
          %v3982 = vadd.f32 %v3789, %v3981
          %v3983 = vpop.f32.mrf.mxu0
          %v3984 = vadd.f32 %v3791, %v3983
          %3985 = vmatprep.mubr.bf16.mxu0 %v1058
          %3986 = vmatmul.mubr.bf16.gmra.mxu0 %v1057
          %v3987 = vpop.f32.mrf.mxu0
          %v3988 = vadd.f32 %v3795, %v3987
          %v3989 = vpop.f32.mrf.mxu0
          %v3990 = vadd.f32 %v3797, %v3989
          %v3991 = vpop.f32.mrf.mxu0
          %v3992 = vadd.f32 %v3799, %v3991
          %v3993 = vpop.f32.mrf.mxu0
          %v3994 = vadd.f32 %v3801, %v3993
          %3995 = vmatprep.mubr.bf16.mxu0 %v1074
          %3996 = vmatmul.mubr.bf16.gmra.mxu0 %v1073
          %v3997 = vpop.f32.mrf.mxu0
          %v3998 = vadd.f32 %v3805, %v3997
          %v3999 = vpop.f32.mrf.mxu0
          %v4000 = vadd.f32 %v3807, %v3999
          %v4001 = vpop.f32.mrf.mxu0
          %v4002 = vadd.f32 %v3809, %v4001
          %v4003 = vpop.f32.mrf.mxu0
          %v4004 = vadd.f32 %v3811, %v4003
          %4005 = vmatprep.mubr.bf16.mxu0 %v1090
          %4006 = vmatmul.mubr.bf16.gmra.mxu0 %v1089
          %v4007 = vpop.f32.mrf.mxu0
          %v4008 = vadd.f32 %v3815, %v4007
          %v4009 = vpop.f32.mrf.mxu0
          %v4010 = vadd.f32 %v3817, %v4009
          %v4011 = vpop.f32.mrf.mxu0
          %v4012 = vadd.f32 %v3819, %v4011
          %v4013 = vpop.f32.mrf.mxu0
          %v4014 = vadd.f32 %v3821, %v4013
          %4015 = vmatprep.mubr.bf16.mxu0 %v1106
          %4016 = vmatmul.mubr.bf16.gmra.mxu0 %v1105
          %v4017 = vpop.f32.mrf.mxu0
          %v4018 = vadd.f32 %v3825, %v4017
          %v4019 = vpop.f32.mrf.mxu0
          %v4020 = vadd.f32 %v3827, %v4019
          %v4021 = vpop.f32.mrf.mxu0
          %v4022 = vadd.f32 %v3829, %v4021
          %v4023 = vpop.f32.mrf.mxu0
          %v4024 = vadd.f32 %v3831, %v4023
          %4025 = vmatprep.mubr.bf16.mxu0 %v1122
          %4026 = vmatmul.mubr.bf16.gmra.mxu0 %v1121
          %v4027 = vpop.f32.mrf.mxu0
          %v4028 = vadd.f32 %v3835, %v4027
          %v4029 = vpop.f32.mrf.mxu0
          %v4030 = vadd.f32 %v3837, %v4029
          %v4031 = vpop.f32.mrf.mxu0
          %v4032 = vadd.f32 %v3839, %v4031
          %v4033 = vpop.f32.mrf.mxu0
          %v4034 = vadd.f32 %v3841, %v4033
          %4035 = vmatprep.mubr.bf16.mxu0 %v1138
          %4036 = vmatmul.mubr.bf16.gmra.mxu0 %v1137
          %v4037 = vpop.f32.mrf.mxu0
          %v4038 = vadd.f32 %v3845, %v4037
          %v4039 = vpop.f32.mrf.mxu0
          %v4040 = vadd.f32 %v3847, %v4039
          %v4041 = vpop.f32.mrf.mxu0
          %v4042 = vadd.f32 %v3849, %v4041
          %v4043 = vpop.f32.mrf.mxu0
          %v4044 = vadd.f32 %v3851, %v4043
          %4045 = vmatprep.mubr.bf16.mxu0 %v1154
          %4046 = vmatmul.mubr.bf16.gmra.mxu0 %v1153
          %v4047 = vpop.f32.mrf.mxu0
          %v4048 = vadd.f32 %v3855, %v4047
          %v4049 = vpop.f32.mrf.mxu0
          %v4050 = vadd.f32 %v3857, %v4049
          %v4051 = vpop.f32.mrf.mxu0
          %v4052 = vadd.f32 %v3859, %v4051
          %v4053 = vpop.f32.mrf.mxu0
          %v4054 = vadd.f32 %v3861, %v4053
          %4055 = vmatprep.mubr.bf16.mxu0 %v1170
          %4056 = vmatmul.mubr.bf16.gmra.mxu0 %v1169
          %v4057 = vpop.f32.mrf.mxu0
          %v4058 = vadd.f32 %v3865, %v4057
          %v4059 = vpop.f32.mrf.mxu0
          %v4060 = vadd.f32 %v3867, %v4059
          %v4061 = vpop.f32.mrf.mxu0
          %v4062 = vadd.f32 %v3869, %v4061
          %v4063 = vpop.f32.mrf.mxu0
          %v4064 = vadd.f32 %v3871, %v4063
          %4065 = vmatprep.mubr.bf16.mxu0 %v1186
          %4066 = vmatmul.mubr.bf16.gmra.mxu0 %v1185
          %v4067 = vpop.f32.mrf.mxu0
          %v4068 = vadd.f32 %v3875, %v4067
          %v4069 = vpop.f32.mrf.mxu0
          %v4070 = vadd.f32 %v3877, %v4069
          %v4071 = vpop.f32.mrf.mxu0
          %v4072 = vadd.f32 %v3879, %v4071
          %v4073 = vpop.f32.mrf.mxu0
          %v4074 = vadd.f32 %v3881, %v4073
          %4075 = vdwg.mxu0
          %4076 = vmatprep.subr.bf16.mxu0 %v2452
          %4077 = vmatpush1.bf16.msra.mxu0 %v2451
          %4078 = vmatprep.subr.bf16.mxu0 %v2450
          %4079 = vmatpush1.bf16.msra.mxu0 %v2449
          %4080 = vmatprep.subr.bf16.mxu0 %v2448
          %4081 = vmatpush1.bf16.msra.mxu0 %v2447
          %4082 = vmatprep.subr.bf16.mxu0 %v2446
          %4083 = vmatpush1.bf16.msra.mxu0 %v2445
          %4084 = vmatprep.subr.bf16.mxu0 %v2444
          %4085 = vmatpush1.bf16.msra.mxu0 %v2443
          %4086 = vmatprep.subr.bf16.mxu0 %v2442
          %4087 = vmatpush1.bf16.msra.mxu0 %v2441
          %4088 = vmatprep.subr.bf16.mxu0 %v2440
          %4089 = vmatpush1.bf16.msra.mxu0 %v2439
          %4090 = vmatprep.subr.bf16.mxu0 %v2438
          %4091 = vmatpush1.bf16.msra.mxu0 %v2437
          %4092 = vmatprep.subr.bf16.mxu0 %v2468
          %4093 = vmatpush2.bf16.msra.mxu0 %v2467
          %4094 = vmatprep.subr.bf16.mxu0 %v2466
          %4095 = vmatpush2.bf16.msra.mxu0 %v2465
          %4096 = vmatprep.subr.bf16.mxu0 %v2464
          %4097 = vmatpush2.bf16.msra.mxu0 %v2463
          %4098 = vmatprep.subr.bf16.mxu0 %v2462
          %4099 = vmatpush2.bf16.msra.mxu0 %v2461
          %4100 = vmatprep.subr.bf16.mxu0 %v2460
          %4101 = vmatpush2.bf16.msra.mxu0 %v2459
          %4102 = vmatprep.subr.bf16.mxu0 %v2458
          %4103 = vmatpush2.bf16.msra.mxu0 %v2457
          %4104 = vmatprep.subr.bf16.mxu0 %v2456
          %4105 = vmatpush2.bf16.msra.mxu0 %v2455
          %4106 = vmatprep.subr.bf16.mxu0 %v2454
          %4107 = vmatpush2.bf16.msra.mxu0 %v2453
          %4108 = vmatprep.mubr.bf16.mxu0 %v948
          %4109 = vmatmul.mubr.bf16.gmra.mxu0 %v947
          %v4110 = vpop.f32.mrf.mxu0
          %v4111 = vadd.f32 %v3918, %v4110
          %v4112 = vpop.f32.mrf.mxu0
          %v4113 = vadd.f32 %v3920, %v4112
          %v4114 = vpop.f32.mrf.mxu0
          %v4115 = vadd.f32 %v3922, %v4114
          %v4116 = vpop.f32.mrf.mxu0
          %v4117 = vadd.f32 %v3924, %v4116
          %4118 = vmatprep.mubr.bf16.mxu0 %v964
          %4119 = vmatmul.mubr.bf16.gmra.mxu0 %v963
          %v4120 = vpop.f32.mrf.mxu0
          %v4121 = vadd.f32 %v3928, %v4120
          %v4122 = vpop.f32.mrf.mxu0
          %v4123 = vadd.f32 %v3930, %v4122
          %v4124 = vpop.f32.mrf.mxu0
          %v4125 = vadd.f32 %v3932, %v4124
          %v4126 = vpop.f32.mrf.mxu0
          %v4127 = vadd.f32 %v3934, %v4126
          %4128 = vmatprep.mubr.bf16.mxu0 %v980
          %4129 = vmatmul.mubr.bf16.gmra.mxu0 %v979
          %v4130 = vpop.f32.mrf.mxu0
          %v4131 = vadd.f32 %v3938, %v4130
          %v4132 = vpop.f32.mrf.mxu0
          %v4133 = vadd.f32 %v3940, %v4132
          %v4134 = vpop.f32.mrf.mxu0
          %v4135 = vadd.f32 %v3942, %v4134
          %v4136 = vpop.f32.mrf.mxu0
          %v4137 = vadd.f32 %v3944, %v4136
          %4138 = vmatprep.mubr.bf16.mxu0 %v996
          %4139 = vmatmul.mubr.bf16.gmra.mxu0 %v995
          %v4140 = vpop.f32.mrf.mxu0
          %v4141 = vadd.f32 %v3948, %v4140
          %v4142 = vpop.f32.mrf.mxu0
          %v4143 = vadd.f32 %v3950, %v4142
          %v4144 = vpop.f32.mrf.mxu0
          %v4145 = vadd.f32 %v3952, %v4144
          %v4146 = vpop.f32.mrf.mxu0
          %v4147 = vadd.f32 %v3954, %v4146
          %4148 = vmatprep.mubr.bf16.mxu0 %v1012
          %4149 = vmatmul.mubr.bf16.gmra.mxu0 %v1011
          %v4150 = vpop.f32.mrf.mxu0
          %v4151 = vadd.f32 %v3958, %v4150
          %v4152 = vpop.f32.mrf.mxu0
          %v4153 = vadd.f32 %v3960, %v4152
          %v4154 = vpop.f32.mrf.mxu0
          %v4155 = vadd.f32 %v3962, %v4154
          %v4156 = vpop.f32.mrf.mxu0
          %v4157 = vadd.f32 %v3964, %v4156
          %4158 = vmatprep.mubr.bf16.mxu0 %v1028
          %4159 = vmatmul.mubr.bf16.gmra.mxu0 %v1027
          %v4160 = vpop.f32.mrf.mxu0
          %v4161 = vadd.f32 %v3968, %v4160
          %v4162 = vpop.f32.mrf.mxu0
          %v4163 = vadd.f32 %v3970, %v4162
          %v4164 = vpop.f32.mrf.mxu0
          %v4165 = vadd.f32 %v3972, %v4164
          %v4166 = vpop.f32.mrf.mxu0
          %v4167 = vadd.f32 %v3974, %v4166
          %4168 = vmatprep.mubr.bf16.mxu0 %v1044
          %4169 = vmatmul.mubr.bf16.gmra.mxu0 %v1043
          %v4170 = vpop.f32.mrf.mxu0
          %v4171 = vadd.f32 %v3978, %v4170
          %v4172 = vpop.f32.mrf.mxu0
          %v4173 = vadd.f32 %v3980, %v4172
          %v4174 = vpop.f32.mrf.mxu0
          %v4175 = vadd.f32 %v3982, %v4174
          %v4176 = vpop.f32.mrf.mxu0
          %v4177 = vadd.f32 %v3984, %v4176
          %4178 = vmatprep.mubr.bf16.mxu0 %v1060
          %4179 = vmatmul.mubr.bf16.gmra.mxu0 %v1059
          %v4180 = vpop.f32.mrf.mxu0
          %v4181 = vadd.f32 %v3988, %v4180
          %v4182 = vpop.f32.mrf.mxu0
          %v4183 = vadd.f32 %v3990, %v4182
          %v4184 = vpop.f32.mrf.mxu0
          %v4185 = vadd.f32 %v3992, %v4184
          %v4186 = vpop.f32.mrf.mxu0
          %v4187 = vadd.f32 %v3994, %v4186
          %4188 = vmatprep.mubr.bf16.mxu0 %v1076
          %4189 = vmatmul.mubr.bf16.gmra.mxu0 %v1075
          %v4190 = vpop.f32.mrf.mxu0
          %v4191 = vadd.f32 %v3998, %v4190
          %v4192 = vpop.f32.mrf.mxu0
          %v4193 = vadd.f32 %v4000, %v4192
          %v4194 = vpop.f32.mrf.mxu0
          %v4195 = vadd.f32 %v4002, %v4194
          %v4196 = vpop.f32.mrf.mxu0
          %v4197 = vadd.f32 %v4004, %v4196
          %4198 = vmatprep.mubr.bf16.mxu0 %v1092
          %4199 = vmatmul.mubr.bf16.gmra.mxu0 %v1091
          %v4200 = vpop.f32.mrf.mxu0
          %v4201 = vadd.f32 %v4008, %v4200
          %v4202 = vpop.f32.mrf.mxu0
          %v4203 = vadd.f32 %v4010, %v4202
          %v4204 = vpop.f32.mrf.mxu0
          %v4205 = vadd.f32 %v4012, %v4204
          %v4206 = vpop.f32.mrf.mxu0
          %v4207 = vadd.f32 %v4014, %v4206
          %4208 = vmatprep.mubr.bf16.mxu0 %v1108
          %4209 = vmatmul.mubr.bf16.gmra.mxu0 %v1107
          %v4210 = vpop.f32.mrf.mxu0
          %v4211 = vadd.f32 %v4018, %v4210
          %v4212 = vpop.f32.mrf.mxu0
          %v4213 = vadd.f32 %v4020, %v4212
          %v4214 = vpop.f32.mrf.mxu0
          %v4215 = vadd.f32 %v4022, %v4214
          %v4216 = vpop.f32.mrf.mxu0
          %v4217 = vadd.f32 %v4024, %v4216
          %4218 = vmatprep.mubr.bf16.mxu0 %v1124
          %4219 = vmatmul.mubr.bf16.gmra.mxu0 %v1123
          %v4220 = vpop.f32.mrf.mxu0
          %v4221 = vadd.f32 %v4028, %v4220
          %v4222 = vpop.f32.mrf.mxu0
          %v4223 = vadd.f32 %v4030, %v4222
          %v4224 = vpop.f32.mrf.mxu0
          %v4225 = vadd.f32 %v4032, %v4224
          %v4226 = vpop.f32.mrf.mxu0
          %v4227 = vadd.f32 %v4034, %v4226
          %4228 = vmatprep.mubr.bf16.mxu0 %v1140
          %4229 = vmatmul.mubr.bf16.gmra.mxu0 %v1139
          %v4230 = vpop.f32.mrf.mxu0
          %v4231 = vadd.f32 %v4038, %v4230
          %v4232 = vpop.f32.mrf.mxu0
          %v4233 = vadd.f32 %v4040, %v4232
          %v4234 = vpop.f32.mrf.mxu0
          %v4235 = vadd.f32 %v4042, %v4234
          %v4236 = vpop.f32.mrf.mxu0
          %v4237 = vadd.f32 %v4044, %v4236
          %4238 = vmatprep.mubr.bf16.mxu0 %v1156
          %4239 = vmatmul.mubr.bf16.gmra.mxu0 %v1155
          %v4240 = vpop.f32.mrf.mxu0
          %v4241 = vadd.f32 %v4048, %v4240
          %v4242 = vpop.f32.mrf.mxu0
          %v4243 = vadd.f32 %v4050, %v4242
          %v4244 = vpop.f32.mrf.mxu0
          %v4245 = vadd.f32 %v4052, %v4244
          %v4246 = vpop.f32.mrf.mxu0
          %v4247 = vadd.f32 %v4054, %v4246
          %4248 = vmatprep.mubr.bf16.mxu0 %v1172
          %4249 = vmatmul.mubr.bf16.gmra.mxu0 %v1171
          %v4250 = vpop.f32.mrf.mxu0
          %v4251 = vadd.f32 %v4058, %v4250
          %v4252 = vpop.f32.mrf.mxu0
          %v4253 = vadd.f32 %v4060, %v4252
          %v4254 = vpop.f32.mrf.mxu0
          %v4255 = vadd.f32 %v4062, %v4254
          %v4256 = vpop.f32.mrf.mxu0
          %v4257 = vadd.f32 %v4064, %v4256
          %4258 = vmatprep.mubr.bf16.mxu0 %v1188
          %4259 = vmatmul.mubr.bf16.gmra.mxu0 %v1187
          %v4260 = vpop.f32.mrf.mxu0
          %v4261 = vadd.f32 %v4068, %v4260
          %v4262 = vpop.f32.mrf.mxu0
          %v4263 = vadd.f32 %v4070, %v4262
          %v4264 = vpop.f32.mrf.mxu0
          %v4265 = vadd.f32 %v4072, %v4264
          %v4266 = vpop.f32.mrf.mxu0
          %v4267 = vadd.f32 %v4074, %v4266
          %4268 = vdwg.mxu0
          %s4269 = sshra.s32 %s406, 3
          %s4270 = sand.u32 %s406, 7
          %s4271 = smul.u32 %s4269, 2
          %s4272 = smul.addr %s4271, 8
          %s4273 = scalar_lea.vmem [#allocation2], %s4272
          %4274 = vst [vmem:[%s4273] sm:$0xff] %v4111
          %4275 = vst [vmem:[%s4273 + $0x8] sm:$0xff] %v4113
          %4276 = vst [vmem:[%s4273 + $0x10] sm:$0xff] %v4115
          %4277 = vst [vmem:[%s4273 + $0x18] sm:$0xff] %v4117
          %4278 = vst [vmem:[%s4273 + $0x20] sm:$0xff] %v4121
          %4279 = vst [vmem:[%s4273 + $0x28] sm:$0xff] %v4123
          %4280 = vst [vmem:[%s4273 + $0x30] sm:$0xff] %v4125
          %4281 = vst [vmem:[%s4273 + $0x38] sm:$0xff] %v4127
          %4282 = vst [vmem:[%s4273 + $0x40] sm:$0xff] %v4131
          %4283 = vst [vmem:[%s4273 + $0x48] sm:$0xff] %v4133
          %4284 = vst [vmem:[%s4273 + $0x50] sm:$0xff] %v4135
          %4285 = vst [vmem:[%s4273 + $0x58] sm:$0xff] %v4137
          %4286 = vst [vmem:[%s4273 + $0x60] sm:$0xff] %v4141
          %4287 = vst [vmem:[%s4273 + $0x68] sm:$0xff] %v4143
          %4288 = vst [vmem:[%s4273 + $0x70] sm:$0xff] %v4145
          %4289 = vst [vmem:[%s4273 + $0x78] sm:$0xff] %v4147
          %4290 = vst [vmem:[%s4273 + $0x80] sm:$0xff] %v4151
          %4291 = vst [vmem:[%s4273 + $0x88] sm:$0xff] %v4153
          %4292 = vst [vmem:[%s4273 + $0x90] sm:$0xff] %v4155
          %4293 = vst [vmem:[%s4273 + $0x98] sm:$0xff] %v4157
          %4294 = vst [vmem:[%s4273 + $0xa0] sm:$0xff] %v4161
          %4295 = vst [vmem:[%s4273 + $0xa8] sm:$0xff] %v4163
          %4296 = vst [vmem:[%s4273 + $0xb0] sm:$0xff] %v4165
          %4297 = vst [vmem:[%s4273 + $0xb8] sm:$0xff] %v4167
          %4298 = vst [vmem:[%s4273 + $0xc0] sm:$0xff] %v4171
          %4299 = vst [vmem:[%s4273 + $0xc8] sm:$0xff] %v4173
          %4300 = vst [vmem:[%s4273 + $0xd0] sm:$0xff] %v4175
          %4301 = vst [vmem:[%s4273 + $0xd8] sm:$0xff] %v4177
          %4302 = vst [vmem:[%s4273 + $0xe0] sm:$0xff] %v4181
          %4303 = vst [vmem:[%s4273 + $0xe8] sm:$0xff] %v4183
          %4304 = vst [vmem:[%s4273 + $0xf0] sm:$0xff] %v4185
          %4305 = vst [vmem:[%s4273 + $0xf8] sm:$0xff] %v4187
          %4306 = vst [vmem:[%s4273 + $0x100] sm:$0xff] %v4191
          %4307 = vst [vmem:[%s4273 + $0x108] sm:$0xff] %v4193
          %4308 = vst [vmem:[%s4273 + $0x110] sm:$0xff] %v4195
          %4309 = vst [vmem:[%s4273 + $0x118] sm:$0xff] %v4197
          %4310 = vst [vmem:[%s4273 + $0x120] sm:$0xff] %v4201
          %4311 = vst [vmem:[%s4273 + $0x128] sm:$0xff] %v4203
          %4312 = vst [vmem:[%s4273 + $0x130] sm:$0xff] %v4205
          %4313 = vst [vmem:[%s4273 + $0x138] sm:$0xff] %v4207
          %4314 = vst [vmem:[%s4273 + $0x140] sm:$0xff] %v4211
          %4315 = vst [vmem:[%s4273 + $0x148] sm:$0xff] %v4213
          %4316 = vst [vmem:[%s4273 + $0x150] sm:$0xff] %v4215
          %4317 = vst [vmem:[%s4273 + $0x158] sm:$0xff] %v4217
          %4318 = vst [vmem:[%s4273 + $0x160] sm:$0xff] %v4221
          %4319 = vst [vmem:[%s4273 + $0x168] sm:$0xff] %v4223
          %4320 = vst [vmem:[%s4273 + $0x170] sm:$0xff] %v4225
          %4321 = vst [vmem:[%s4273 + $0x178] sm:$0xff] %v4227
          %4322 = vst [vmem:[%s4273 + $0x180] sm:$0xff] %v4231
          %4323 = vst [vmem:[%s4273 + $0x188] sm:$0xff] %v4233
          %4324 = vst [vmem:[%s4273 + $0x190] sm:$0xff] %v4235
          %4325 = vst [vmem:[%s4273 + $0x198] sm:$0xff] %v4237
          %4326 = vst [vmem:[%s4273 + $0x1a0] sm:$0xff] %v4241
          %4327 = vst [vmem:[%s4273 + $0x1a8] sm:$0xff] %v4243
          %4328 = vst [vmem:[%s4273 + $0x1b0] sm:$0xff] %v4245
          %4329 = vst [vmem:[%s4273 + $0x1b8] sm:$0xff] %v4247
          %4330 = vst [vmem:[%s4273 + $0x1c0] sm:$0xff] %v4251
          %4331 = vst [vmem:[%s4273 + $0x1c8] sm:$0xff] %v4253
          %4332 = vst [vmem:[%s4273 + $0x1d0] sm:$0xff] %v4255
          %4333 = vst [vmem:[%s4273 + $0x1d8] sm:$0xff] %v4257
          %4334 = vst [vmem:[%s4273 + $0x1e0] sm:$0xff] %v4261
          %4335 = vst [vmem:[%s4273 + $0x1e8] sm:$0xff] %v4263
          %4336 = vst [vmem:[%s4273 + $0x1f0] sm:$0xff] %v4265
          %4337 = vst [vmem:[%s4273 + $0x1f8] sm:$0xff] %v4267
          %v4338 = vld [vmem:[#allocation4] sm:$0x3]
          %v4339 = vadd.f32 %v4111, %v4115
          %v4340 = vadd.f32 %v4339, %v4121
          %v4341 = vadd.f32 %v4340, %v4125
          %v4342 = vadd.f32 %v4341, %v4131
          %v4343 = vadd.f32 %v4342, %v4135
          %v4344 = vadd.f32 %v4343, %v4141
          %v4345 = vadd.f32 %v4344, %v4145
          %v4346 = vadd.f32 %v4345, %v4151
          %v4347 = vadd.f32 %v4346, %v4155
          %v4348 = vadd.f32 %v4347, %v4161
          %v4349 = vadd.f32 %v4348, %v4165
          %v4350 = vadd.f32 %v4349, %v4171
          %v4351 = vadd.f32 %v4350, %v4175
          %v4352 = vadd.f32 %v4351, %v4181
          %v4353 = vadd.f32 %v4352, %v4185
          %v4354 = vadd.f32 %v4353, %v4191
          %v4355 = vadd.f32 %v4354, %v4195
          %v4356 = vadd.f32 %v4355, %v4201
          %v4357 = vadd.f32 %v4356, %v4205
          %v4358 = vadd.f32 %v4357, %v4211
          %v4359 = vadd.f32 %v4358, %v4215
          %v4360 = vadd.f32 %v4359, %v4221
          %v4361 = vadd.f32 %v4360, %v4225
          %v4362 = vadd.f32 %v4361, %v4231
          %v4363 = vadd.f32 %v4362, %v4235
          %v4364 = vadd.f32 %v4363, %v4241
          %v4365 = vadd.f32 %v4364, %v4245
          %v4366 = vadd.f32 %v4365, %v4251
          %v4367 = vadd.f32 %v4366, %v4255
          %v4368 = vadd.f32 %v4367, %v4261
          %v4369 = vadd.f32 %v4368, %v4265
          %v4370 = vrot.slane %v4369, 4
          %v4371 = vadd.f32 %v4369, %v4370
          %v4372 = vrot.slane %v4371, 2
          %v4373 = vadd.f32 %v4371, %v4372
          %v4374 = vrot.slane %v4373, 1
          %v4375 = vadd.f32 %v4373, %v4374
          %v4376 = vadd.f32 %v4113, %v4117
          %v4377 = vadd.f32 %v4376, %v4123
          %v4378 = vadd.f32 %v4377, %v4127
          %v4379 = vadd.f32 %v4378, %v4133
          %v4380 = vadd.f32 %v4379, %v4137
          %v4381 = vadd.f32 %v4380, %v4143
          %v4382 = vadd.f32 %v4381, %v4147
          %v4383 = vadd.f32 %v4382, %v4153
          %v4384 = vadd.f32 %v4383, %v4157
          %v4385 = vadd.f32 %v4384, %v4163
          %v4386 = vadd.f32 %v4385, %v4167
          %v4387 = vadd.f32 %v4386, %v4173
          %v4388 = vadd.f32 %v4387, %v4177
          %v4389 = vadd.f32 %v4388, %v4183
          %v4390 = vadd.f32 %v4389, %v4187
          %v4391 = vadd.f32 %v4390, %v4193
          %v4392 = vadd.f32 %v4391, %v4197
          %v4393 = vadd.f32 %v4392, %v4203
          %v4394 = vadd.f32 %v4393, %v4207
          %v4395 = vadd.f32 %v4394, %v4213
          %v4396 = vadd.f32 %v4395, %v4217
          %v4397 = vadd.f32 %v4396, %v4223
          %v4398 = vadd.f32 %v4397, %v4227
          %v4399 = vadd.f32 %v4398, %v4233
          %v4400 = vadd.f32 %v4399, %v4237
          %v4401 = vadd.f32 %v4400, %v4243
          %v4402 = vadd.f32 %v4401, %v4247
          %v4403 = vadd.f32 %v4402, %v4253
          %v4404 = vadd.f32 %v4403, %v4257
          %v4405 = vadd.f32 %v4404, %v4263
          %v4406 = vadd.f32 %v4405, %v4267
          %v4407 = vrot.slane %v4406, 4
          %v4408 = vadd.f32 %v4406, %v4407
          %v4409 = vrot.slane %v4408, 2
          %v4410 = vadd.f32 %v4408, %v4409
          %v4411 = vrot.slane %v4410, 1
          %v4412 = vadd.f32 %v4410, %v4411
          %v4415 = vcombine.low %v4375, %v4412
          %v4417 = vunpack.c.l.s4 1966171168
          %v4418 = vunpack.c.0.s8 %v4417
          %v4419 = vlaneseq
          %v4420 = vshrl.u32 %v4419, 7
          %v4421 = vsub.s32 %v4418, %v4420
          %v4422 = vrot.slane %v4415, %v4421
          %v4424 = vunpack.c.l.s4 1966171168
          %v4425 = vunpack.c.0.s8 %v4424
          %v4426 = vlaneseq
          %v4427 = vshrl.u32 %v4426, 7
          %v4428 = vsub.s32 %v4425, %v4427
          %v4429 = vrot.slane %v4422, %v4428
          %v4431 = vadd.f32 %v4338, %v4429
          %v4432 = vlaneseq
          %vm4433 = vcmp.ge.s32.totalorder %v4432, 0
          %vm4434 = vcmp.lt.s32.totalorder %v4432, 256
          %vm4435 = vmand %vm4433, %vm4434
          %4436 = vst.msk [vmem:[#allocation4] sm:$0x3] %vm4435, %v4431
          %v4437 = vld [vmem:[#allocation5] sm:$0x3]
          %v4438 = vmul.f32 %v4111, %v4111
          %v4439 = vmul.f32 %v4113, %v4113
          %v4440 = vmul.f32 %v4115, %v4115
          %v4441 = vmul.f32 %v4117, %v4117
          %v4442 = vmul.f32 %v4121, %v4121
          %v4443 = vmul.f32 %v4123, %v4123
          %v4444 = vmul.f32 %v4125, %v4125
          %v4445 = vmul.f32 %v4127, %v4127
          %v4446 = vmul.f32 %v4131, %v4131
          %v4447 = vmul.f32 %v4133, %v4133
          %v4448 = vmul.f32 %v4135, %v4135
          %v4449 = vmul.f32 %v4137, %v4137
          %v4450 = vmul.f32 %v4141, %v4141
          %v4451 = vmul.f32 %v4143, %v4143
          %v4452 = vmul.f32 %v4145, %v4145
          %v4453 = vmul.f32 %v4147, %v4147
          %v4454 = vmul.f32 %v4151, %v4151
          %v4455 = vmul.f32 %v4153, %v4153
          %v4456 = vmul.f32 %v4155, %v4155
          %v4457 = vmul.f32 %v4157, %v4157
          %v4458 = vmul.f32 %v4161, %v4161
          %v4459 = vmul.f32 %v4163, %v4163
          %v4460 = vmul.f32 %v4165, %v4165
          %v4461 = vmul.f32 %v4167, %v4167
          %v4462 = vmul.f32 %v4171, %v4171
          %v4463 = vmul.f32 %v4173, %v4173
          %v4464 = vmul.f32 %v4175, %v4175
          %v4465 = vmul.f32 %v4177, %v4177
          %v4466 = vmul.f32 %v4181, %v4181
          %v4467 = vmul.f32 %v4183, %v4183
          %v4468 = vmul.f32 %v4185, %v4185
          %v4469 = vmul.f32 %v4187, %v4187
          %v4470 = vmul.f32 %v4191, %v4191
          %v4471 = vmul.f32 %v4193, %v4193
          %v4472 = vmul.f32 %v4195, %v4195
          %v4473 = vmul.f32 %v4197, %v4197
          %v4474 = vmul.f32 %v4201, %v4201
          %v4475 = vmul.f32 %v4203, %v4203
          %v4476 = vmul.f32 %v4205, %v4205
          %v4477 = vmul.f32 %v4207, %v4207
          %v4478 = vmul.f32 %v4211, %v4211
          %v4479 = vmul.f32 %v4213, %v4213
          %v4480 = vmul.f32 %v4215, %v4215
          %v4481 = vmul.f32 %v4217, %v4217
          %v4482 = vmul.f32 %v4221, %v4221
          %v4483 = vmul.f32 %v4223, %v4223
          %v4484 = vmul.f32 %v4225, %v4225
          %v4485 = vmul.f32 %v4227, %v4227
          %v4486 = vmul.f32 %v4231, %v4231
          %v4487 = vmul.f32 %v4233, %v4233
          %v4488 = vmul.f32 %v4235, %v4235
          %v4489 = vmul.f32 %v4237, %v4237
          %v4490 = vmul.f32 %v4241, %v4241
          %v4491 = vmul.f32 %v4243, %v4243
          %v4492 = vmul.f32 %v4245, %v4245
          %v4493 = vmul.f32 %v4247, %v4247
          %v4494 = vmul.f32 %v4251, %v4251
          %v4495 = vmul.f32 %v4253, %v4253
          %v4496 = vmul.f32 %v4255, %v4255
          %v4497 = vmul.f32 %v4257, %v4257
          %v4498 = vmul.f32 %v4261, %v4261
          %v4499 = vmul.f32 %v4263, %v4263
          %v4500 = vmul.f32 %v4265, %v4265
          %v4501 = vmul.f32 %v4267, %v4267
          %v4502 = vadd.f32 %v4438, %v4440
          %v4503 = vadd.f32 %v4502, %v4442
          %v4504 = vadd.f32 %v4503, %v4444
          %v4505 = vadd.f32 %v4504, %v4446
          %v4506 = vadd.f32 %v4505, %v4448
          %v4507 = vadd.f32 %v4506, %v4450
          %v4508 = vadd.f32 %v4507, %v4452
          %v4509 = vadd.f32 %v4508, %v4454
          %v4510 = vadd.f32 %v4509, %v4456
          %v4511 = vadd.f32 %v4510, %v4458
          %v4512 = vadd.f32 %v4511, %v4460
          %v4513 = vadd.f32 %v4512, %v4462
          %v4514 = vadd.f32 %v4513, %v4464
          %v4515 = vadd.f32 %v4514, %v4466
          %v4516 = vadd.f32 %v4515, %v4468
          %v4517 = vadd.f32 %v4516, %v4470
          %v4518 = vadd.f32 %v4517, %v4472
          %v4519 = vadd.f32 %v4518, %v4474
          %v4520 = vadd.f32 %v4519, %v4476
          %v4521 = vadd.f32 %v4520, %v4478
          %v4522 = vadd.f32 %v4521, %v4480
          %v4523 = vadd.f32 %v4522, %v4482
          %v4524 = vadd.f32 %v4523, %v4484
          %v4525 = vadd.f32 %v4524, %v4486
          %v4526 = vadd.f32 %v4525, %v4488
          %v4527 = vadd.f32 %v4526, %v4490
          %v4528 = vadd.f32 %v4527, %v4492
          %v4529 = vadd.f32 %v4528, %v4494
          %v4530 = vadd.f32 %v4529, %v4496
          %v4531 = vadd.f32 %v4530, %v4498
          %v4532 = vadd.f32 %v4531, %v4500
          %v4533 = vrot.slane %v4532, 4
          %v4534 = vadd.f32 %v4532, %v4533
          %v4535 = vrot.slane %v4534, 2
          %v4536 = vadd.f32 %v4534, %v4535
          %v4537 = vrot.slane %v4536, 1
          %v4538 = vadd.f32 %v4536, %v4537
          %v4539 = vadd.f32 %v4439, %v4441
          %v4540 = vadd.f32 %v4539, %v4443
          %v4541 = vadd.f32 %v4540, %v4445
          %v4542 = vadd.f32 %v4541, %v4447
          %v4543 = vadd.f32 %v4542, %v4449
          %v4544 = vadd.f32 %v4543, %v4451
          %v4545 = vadd.f32 %v4544, %v4453
          %v4546 = vadd.f32 %v4545, %v4455
          %v4547 = vadd.f32 %v4546, %v4457
          %v4548 = vadd.f32 %v4547, %v4459
          %v4549 = vadd.f32 %v4548, %v4461
          %v4550 = vadd.f32 %v4549, %v4463
          %v4551 = vadd.f32 %v4550, %v4465
          %v4552 = vadd.f32 %v4551, %v4467
          %v4553 = vadd.f32 %v4552, %v4469
          %v4554 = vadd.f32 %v4553, %v4471
          %v4555 = vadd.f32 %v4554, %v4473
          %v4556 = vadd.f32 %v4555, %v4475
          %v4557 = vadd.f32 %v4556, %v4477
          %v4558 = vadd.f32 %v4557, %v4479
          %v4559 = vadd.f32 %v4558, %v4481
          %v4560 = vadd.f32 %v4559, %v4483
          %v4561 = vadd.f32 %v4560, %v4485
          %v4562 = vadd.f32 %v4561, %v4487
          %v4563 = vadd.f32 %v4562, %v4489
          %v4564 = vadd.f32 %v4563, %v4491
          %v4565 = vadd.f32 %v4564, %v4493
          %v4566 = vadd.f32 %v4565, %v4495
          %v4567 = vadd.f32 %v4566, %v4497
          %v4568 = vadd.f32 %v4567, %v4499
          %v4569 = vadd.f32 %v4568, %v4501
          %v4570 = vrot.slane %v4569, 4
          %v4571 = vadd.f32 %v4569, %v4570
          %v4572 = vrot.slane %v4571, 2
          %v4573 = vadd.f32 %v4571, %v4572
          %v4574 = vrot.slane %v4573, 1
          %v4575 = vadd.f32 %v4573, %v4574
          %v4578 = vcombine.low %v4538, %v4575
          %v4580 = vunpack.c.l.s4 1966171168
          %v4581 = vunpack.c.0.s8 %v4580
          %v4582 = vlaneseq
          %v4583 = vshrl.u32 %v4582, 7
          %v4584 = vsub.s32 %v4581, %v4583
          %v4585 = vrot.slane %v4578, %v4584
          %v4587 = vunpack.c.l.s4 1966171168
          %v4588 = vunpack.c.0.s8 %v4587
          %v4589 = vlaneseq
          %v4590 = vshrl.u32 %v4589, 7
          %v4591 = vsub.s32 %v4588, %v4590
          %v4592 = vrot.slane %v4585, %v4591
          %v4594 = vadd.f32 %v4437, %v4592
          %4595 = vst.msk [vmem:[#allocation5] sm:$0x3] %vm4435, %v4594
        $region80: #{tpu_custom_call.1} parent=47 // pred_fallthru
          _
        %p4596 = scmp.eq.s32.totalorder %s31, 1
        // Predicated region
        $region85: #{tpu_custom_call.1} parent=47 // pred_check
          %p4597 = pneg %p4596
        $region86: #{tpu_custom_call.1} parent=47 // pred_check_branch
          %4599 = sbr.rel (%p4597) target = $region88
        $region87: #{tpu_custom_call.1} parent=47 // pred_region
          %p4600 = scmp.eq.s32.totalorder %s32, 0
          // Predicated region
          $region89: #{tpu_custom_call.1} parent=87 // pred_check
            %p4601 = pneg %p4600
          $region90: #{tpu_custom_call.1} parent=87 // pred_check_branch
            %4603 = sbr.rel (%p4601) target = $region92
          $region91: #{tpu_custom_call.1} parent=87 // pred_region
            %v4604 = vld [vmem:[#allocation4] sm:$0x3]
            %v4605 = vmul.f32 %v4604, 0.001953125
            %v4606 = vld [vmem:[#allocation5] sm:$0x3]
            %v4607 = vmul.f32 %v4606, 0.001953125
            %v4608 = vmul.f32 %v4605, %v4605
            %v4609 = vsub.f32 %v4607, %v4608
            %v4610 = vld [vmem:[#allocation17] sm:$0x3]
            %v4611 = vadd.f32 %v4609, 1e-05
            %v4612 = vrsqrt.pop %v4611
            %v4613 = vmul.f32 %v4610, %v4612
            %v4614 = vlaneseq
            %vm4615 = vcmp.ge.s32.totalorder %v4614, 0
            %vm4616 = vcmp.lt.s32.totalorder %v4614, 256
            %vm4617 = vmand %vm4615, %vm4616
            %4618 = vst.msk [vmem:[#allocation8] sm:$0x3] %vm4617, %v4613
            %v4619 = vld [vmem:[#allocation18] sm:$0x3]
            %v4620 = vmul.f32 %v4605, %v4613
            %v4621 = vsub.f32 %v4619, %v4620
            %4622 = vst.msk [vmem:[#allocation9] sm:$0x3] %vm4617, %v4621
            %4623 = vst [vmem:[#allocation6] sm:$0x1] 0.0
            %4624 = vst [vmem:[#allocation7] sm:$0x1] 0.0
          $region92: #{tpu_custom_call.1} parent=87 // pred_fallthru
            _
          %s4625 = sshra.s32 %s406, 3
          %s4626 = sand.u32 %s406, 7
          %s4627 = smul.u32 %s4625, 2
          %s4628 = smul.addr %s4627, 8
          %s4629 = scalar_lea.vmem [#allocation2], %s4628
          %v4630 = vld [vmem:[%s4629] sm:$0xff]
          %v4631 = vld [vmem:[%s4629 + $0x8] sm:$0xff]
          %v4632 = vld [vmem:[%s4629 + $0x10] sm:$0xff]
          %v4633 = vld [vmem:[%s4629 + $0x18] sm:$0xff]
          %v4634 = vld [vmem:[%s4629 + $0x20] sm:$0xff]
          %v4635 = vld [vmem:[%s4629 + $0x28] sm:$0xff]
          %v4636 = vld [vmem:[%s4629 + $0x30] sm:$0xff]
          %v4637 = vld [vmem:[%s4629 + $0x38] sm:$0xff]
          %v4638 = vld [vmem:[%s4629 + $0x40] sm:$0xff]
          %v4639 = vld [vmem:[%s4629 + $0x48] sm:$0xff]
          %v4640 = vld [vmem:[%s4629 + $0x50] sm:$0xff]
          %v4641 = vld [vmem:[%s4629 + $0x58] sm:$0xff]
          %v4642 = vld [vmem:[%s4629 + $0x60] sm:$0xff]
          %v4643 = vld [vmem:[%s4629 + $0x68] sm:$0xff]
          %v4644 = vld [vmem:[%s4629 + $0x70] sm:$0xff]
          %v4645 = vld [vmem:[%s4629 + $0x78] sm:$0xff]
          %v4646 = vld [vmem:[%s4629 + $0x80] sm:$0xff]
          %v4647 = vld [vmem:[%s4629 + $0x88] sm:$0xff]
          %v4648 = vld [vmem:[%s4629 + $0x90] sm:$0xff]
          %v4649 = vld [vmem:[%s4629 + $0x98] sm:$0xff]
          %v4650 = vld [vmem:[%s4629 + $0xa0] sm:$0xff]
          %v4651 = vld [vmem:[%s4629 + $0xa8] sm:$0xff]
          %v4652 = vld [vmem:[%s4629 + $0xb0] sm:$0xff]
          %v4653 = vld [vmem:[%s4629 + $0xb8] sm:$0xff]
          %v4654 = vld [vmem:[%s4629 + $0xc0] sm:$0xff]
          %v4655 = vld [vmem:[%s4629 + $0xc8] sm:$0xff]
          %v4656 = vld [vmem:[%s4629 + $0xd0] sm:$0xff]
          %v4657 = vld [vmem:[%s4629 + $0xd8] sm:$0xff]
          %v4658 = vld [vmem:[%s4629 + $0xe0] sm:$0xff]
          %v4659 = vld [vmem:[%s4629 + $0xe8] sm:$0xff]
          %v4660 = vld [vmem:[%s4629 + $0xf0] sm:$0xff]
          %v4661 = vld [vmem:[%s4629 + $0xf8] sm:$0xff]
          %v4662 = vld [vmem:[%s4629 + $0x100] sm:$0xff]
          %v4663 = vld [vmem:[%s4629 + $0x108] sm:$0xff]
          %v4664 = vld [vmem:[%s4629 + $0x110] sm:$0xff]
          %v4665 = vld [vmem:[%s4629 + $0x118] sm:$0xff]
          %v4666 = vld [vmem:[%s4629 + $0x120] sm:$0xff]
          %v4667 = vld [vmem:[%s4629 + $0x128] sm:$0xff]
          %v4668 = vld [vmem:[%s4629 + $0x130] sm:$0xff]
          %v4669 = vld [vmem:[%s4629 + $0x138] sm:$0xff]
          %v4670 = vld [vmem:[%s4629 + $0x140] sm:$0xff]
          %v4671 = vld [vmem:[%s4629 + $0x148] sm:$0xff]
          %v4672 = vld [vmem:[%s4629 + $0x150] sm:$0xff]
          %v4673 = vld [vmem:[%s4629 + $0x158] sm:$0xff]
          %v4674 = vld [vmem:[%s4629 + $0x160] sm:$0xff]
          %v4675 = vld [vmem:[%s4629 + $0x168] sm:$0xff]
          %v4676 = vld [vmem:[%s4629 + $0x170] sm:$0xff]
          %v4677 = vld [vmem:[%s4629 + $0x178] sm:$0xff]
          %v4678 = vld [vmem:[%s4629 + $0x180] sm:$0xff]
          %v4679 = vld [vmem:[%s4629 + $0x188] sm:$0xff]
          %v4680 = vld [vmem:[%s4629 + $0x190] sm:$0xff]
          %v4681 = vld [vmem:[%s4629 + $0x198] sm:$0xff]
          %v4682 = vld [vmem:[%s4629 + $0x1a0] sm:$0xff]
          %v4683 = vld [vmem:[%s4629 + $0x1a8] sm:$0xff]
          %v4684 = vld [vmem:[%s4629 + $0x1b0] sm:$0xff]
          %v4685 = vld [vmem:[%s4629 + $0x1b8] sm:$0xff]
          %v4686 = vld [vmem:[%s4629 + $0x1c0] sm:$0xff]
          %v4687 = vld [vmem:[%s4629 + $0x1c8] sm:$0xff]
          %v4688 = vld [vmem:[%s4629 + $0x1d0] sm:$0xff]
          %v4689 = vld [vmem:[%s4629 + $0x1d8] sm:$0xff]
          %v4690 = vld [vmem:[%s4629 + $0x1e0] sm:$0xff]
          %v4691 = vld [vmem:[%s4629 + $0x1e8] sm:$0xff]
          %v4692 = vld [vmem:[%s4629 + $0x1f0] sm:$0xff]
          %v4693 = vld [vmem:[%s4629 + $0x1f8] sm:$0xff]
          %v4694 = vld [vmem:[#allocation8] sm:$0x3]
          %v4696 = vlaneseq
          %v4697 = vshrl.u32 %v4696, 7
          %v4698 = vsub.s32 0, %v4697
          %v4699 = vrot.slane %v4694, %v4698
          %v4700 = vlaneseq
          %v4701 = vshrl.u32 %v4700, 7
          %v4702 = vsub.s32 1, %v4701
          %v4703 = vrot.slane %v4694, %v4702
          %v4706 = vmul.f32 %v4630, %v4699
          %v4707 = vmul.f32 %v4631, %v4703
          %v4708 = vmul.f32 %v4632, %v4699
          %v4709 = vmul.f32 %v4633, %v4703
          %v4710 = vmul.f32 %v4634, %v4699
          %v4711 = vmul.f32 %v4635, %v4703
          %v4712 = vmul.f32 %v4636, %v4699
          %v4713 = vmul.f32 %v4637, %v4703
          %v4714 = vmul.f32 %v4638, %v4699
          %v4715 = vmul.f32 %v4639, %v4703
          %v4716 = vmul.f32 %v4640, %v4699
          %v4717 = vmul.f32 %v4641, %v4703
          %v4718 = vmul.f32 %v4642, %v4699
          %v4719 = vmul.f32 %v4643, %v4703
          %v4720 = vmul.f32 %v4644, %v4699
          %v4721 = vmul.f32 %v4645, %v4703
          %v4722 = vmul.f32 %v4646, %v4699
          %v4723 = vmul.f32 %v4647, %v4703
          %v4724 = vmul.f32 %v4648, %v4699
          %v4725 = vmul.f32 %v4649, %v4703
          %v4726 = vmul.f32 %v4650, %v4699
          %v4727 = vmul.f32 %v4651, %v4703
          %v4728 = vmul.f32 %v4652, %v4699
          %v4729 = vmul.f32 %v4653, %v4703
          %v4730 = vmul.f32 %v4654, %v4699
          %v4731 = vmul.f32 %v4655, %v4703
          %v4732 = vmul.f32 %v4656, %v4699
          %v4733 = vmul.f32 %v4657, %v4703
          %v4734 = vmul.f32 %v4658, %v4699
          %v4735 = vmul.f32 %v4659, %v4703
          %v4736 = vmul.f32 %v4660, %v4699
          %v4737 = vmul.f32 %v4661, %v4703
          %v4738 = vmul.f32 %v4662, %v4699
          %v4739 = vmul.f32 %v4663, %v4703
          %v4740 = vmul.f32 %v4664, %v4699
          %v4741 = vmul.f32 %v4665, %v4703
          %v4742 = vmul.f32 %v4666, %v4699
          %v4743 = vmul.f32 %v4667, %v4703
          %v4744 = vmul.f32 %v4668, %v4699
          %v4745 = vmul.f32 %v4669, %v4703
          %v4746 = vmul.f32 %v4670, %v4699
          %v4747 = vmul.f32 %v4671, %v4703
          %v4748 = vmul.f32 %v4672, %v4699
          %v4749 = vmul.f32 %v4673, %v4703
          %v4750 = vmul.f32 %v4674, %v4699
          %v4751 = vmul.f32 %v4675, %v4703
          %v4752 = vmul.f32 %v4676, %v4699
          %v4753 = vmul.f32 %v4677, %v4703
          %v4754 = vmul.f32 %v4678, %v4699
          %v4755 = vmul.f32 %v4679, %v4703
          %v4756 = vmul.f32 %v4680, %v4699
          %v4757 = vmul.f32 %v4681, %v4703
          %v4758 = vmul.f32 %v4682, %v4699
          %v4759 = vmul.f32 %v4683, %v4703
          %v4760 = vmul.f32 %v4684, %v4699
          %v4761 = vmul.f32 %v4685, %v4703
          %v4762 = vmul.f32 %v4686, %v4699
          %v4763 = vmul.f32 %v4687, %v4703
          %v4764 = vmul.f32 %v4688, %v4699
          %v4765 = vmul.f32 %v4689, %v4703
          %v4766 = vmul.f32 %v4690, %v4699
          %v4767 = vmul.f32 %v4691, %v4703
          %v4768 = vmul.f32 %v4692, %v4699
          %v4769 = vmul.f32 %v4693, %v4703
          %v4770 = vld [vmem:[#allocation9] sm:$0x3]
          %v4772 = vlaneseq
          %v4773 = vshrl.u32 %v4772, 7
          %v4774 = vsub.s32 0, %v4773
          %v4775 = vrot.slane %v4770, %v4774
          %v4776 = vlaneseq
          %v4777 = vshrl.u32 %v4776, 7
          %v4778 = vsub.s32 1, %v4777
          %v4779 = vrot.slane %v4770, %v4778
          %v4782 = vadd.f32 %v4706, %v4775
          %v4783 = vadd.f32 %v4707, %v4779
          %v4784 = vadd.f32 %v4708, %v4775
          %v4785 = vadd.f32 %v4709, %v4779
          %v4786 = vadd.f32 %v4710, %v4775
          %v4787 = vadd.f32 %v4711, %v4779
          %v4788 = vadd.f32 %v4712, %v4775
          %v4789 = vadd.f32 %v4713, %v4779
          %v4790 = vadd.f32 %v4714, %v4775
          %v4791 = vadd.f32 %v4715, %v4779
          %v4792 = vadd.f32 %v4716, %v4775
          %v4793 = vadd.f32 %v4717, %v4779
          %v4794 = vadd.f32 %v4718, %v4775
          %v4795 = vadd.f32 %v4719, %v4779
          %v4796 = vadd.f32 %v4720, %v4775
          %v4797 = vadd.f32 %v4721, %v4779
          %v4798 = vadd.f32 %v4722, %v4775
          %v4799 = vadd.f32 %v4723, %v4779
          %v4800 = vadd.f32 %v4724, %v4775
          %v4801 = vadd.f32 %v4725, %v4779
          %v4802 = vadd.f32 %v4726, %v4775
          %v4803 = vadd.f32 %v4727, %v4779
          %v4804 = vadd.f32 %v4728, %v4775
          %v4805 = vadd.f32 %v4729, %v4779
          %v4806 = vadd.f32 %v4730, %v4775
          %v4807 = vadd.f32 %v4731, %v4779
          %v4808 = vadd.f32 %v4732, %v4775
          %v4809 = vadd.f32 %v4733, %v4779
          %v4810 = vadd.f32 %v4734, %v4775
          %v4811 = vadd.f32 %v4735, %v4779
          %v4812 = vadd.f32 %v4736, %v4775
          %v4813 = vadd.f32 %v4737, %v4779
          %v4814 = vadd.f32 %v4738, %v4775
          %v4815 = vadd.f32 %v4739, %v4779
          %v4816 = vadd.f32 %v4740, %v4775
          %v4817 = vadd.f32 %v4741, %v4779
          %v4818 = vadd.f32 %v4742, %v4775
          %v4819 = vadd.f32 %v4743, %v4779
          %v4820 = vadd.f32 %v4744, %v4775
          %v4821 = vadd.f32 %v4745, %v4779
          %v4822 = vadd.f32 %v4746, %v4775
          %v4823 = vadd.f32 %v4747, %v4779
          %v4824 = vadd.f32 %v4748, %v4775
          %v4825 = vadd.f32 %v4749, %v4779
          %v4826 = vadd.f32 %v4750, %v4775
          %v4827 = vadd.f32 %v4751, %v4779
          %v4828 = vadd.f32 %v4752, %v4775
          %v4829 = vadd.f32 %v4753, %v4779
          %v4830 = vadd.f32 %v4754, %v4775
          %v4831 = vadd.f32 %v4755, %v4779
          %v4832 = vadd.f32 %v4756, %v4775
          %v4833 = vadd.f32 %v4757, %v4779
          %v4834 = vadd.f32 %v4758, %v4775
          %v4835 = vadd.f32 %v4759, %v4779
          %v4836 = vadd.f32 %v4760, %v4775
          %v4837 = vadd.f32 %v4761, %v4779
          %v4838 = vadd.f32 %v4762, %v4775
          %v4839 = vadd.f32 %v4763, %v4779
          %v4840 = vadd.f32 %v4764, %v4775
          %v4841 = vadd.f32 %v4765, %v4779
          %v4842 = vadd.f32 %v4766, %v4775
          %v4843 = vadd.f32 %v4767, %v4779
          %v4844 = vadd.f32 %v4768, %v4775
          %v4845 = vadd.f32 %v4769, %v4779
          %vm4846 = vcmp.gt.f32.partialorder %v4782, 0.0
          %vm4847 = vcmp.gt.f32.partialorder %v4783, 0.0
          %vm4848 = vcmp.gt.f32.partialorder %v4784, 0.0
          %vm4849 = vcmp.gt.f32.partialorder %v4785, 0.0
          %vm4850 = vcmp.gt.f32.partialorder %v4786, 0.0
          %vm4851 = vcmp.gt.f32.partialorder %v4787, 0.0
          %vm4852 = vcmp.gt.f32.partialorder %v4788, 0.0
          %vm4853 = vcmp.gt.f32.partialorder %v4789, 0.0
          %vm4854 = vcmp.gt.f32.partialorder %v4790, 0.0
          %vm4855 = vcmp.gt.f32.partialorder %v4791, 0.0
          %vm4856 = vcmp.gt.f32.partialorder %v4792, 0.0
          %vm4857 = vcmp.gt.f32.partialorder %v4793, 0.0
          %vm4858 = vcmp.gt.f32.partialorder %v4794, 0.0
          %vm4859 = vcmp.gt.f32.partialorder %v4795, 0.0
          %vm4860 = vcmp.gt.f32.partialorder %v4796, 0.0
          %vm4861 = vcmp.gt.f32.partialorder %v4797, 0.0
          %vm4862 = vcmp.gt.f32.partialorder %v4798, 0.0
          %vm4863 = vcmp.gt.f32.partialorder %v4799, 0.0
          %vm4864 = vcmp.gt.f32.partialorder %v4800, 0.0
          %vm4865 = vcmp.gt.f32.partialorder %v4801, 0.0
          %vm4866 = vcmp.gt.f32.partialorder %v4802, 0.0
          %vm4867 = vcmp.gt.f32.partialorder %v4803, 0.0
          %vm4868 = vcmp.gt.f32.partialorder %v4804, 0.0
          %vm4869 = vcmp.gt.f32.partialorder %v4805, 0.0
          %vm4870 = vcmp.gt.f32.partialorder %v4806, 0.0
          %vm4871 = vcmp.gt.f32.partialorder %v4807, 0.0
          %vm4872 = vcmp.gt.f32.partialorder %v4808, 0.0
          %vm4873 = vcmp.gt.f32.partialorder %v4809, 0.0
          %vm4874 = vcmp.gt.f32.partialorder %v4810, 0.0
          %vm4875 = vcmp.gt.f32.partialorder %v4811, 0.0
          %vm4876 = vcmp.gt.f32.partialorder %v4812, 0.0
          %vm4877 = vcmp.gt.f32.partialorder %v4813, 0.0
          %vm4878 = vcmp.gt.f32.partialorder %v4814, 0.0
          %vm4879 = vcmp.gt.f32.partialorder %v4815, 0.0
          %vm4880 = vcmp.gt.f32.partialorder %v4816, 0.0
          %vm4881 = vcmp.gt.f32.partialorder %v4817, 0.0
          %vm4882 = vcmp.gt.f32.partialorder %v4818, 0.0
          %vm4883 = vcmp.gt.f32.partialorder %v4819, 0.0
          %vm4884 = vcmp.gt.f32.partialorder %v4820, 0.0
          %vm4885 = vcmp.gt.f32.partialorder %v4821, 0.0
          %vm4886 = vcmp.gt.f32.partialorder %v4822, 0.0
          %vm4887 = vcmp.gt.f32.partialorder %v4823, 0.0
          %vm4888 = vcmp.gt.f32.partialorder %v4824, 0.0
          %vm4889 = vcmp.gt.f32.partialorder %v4825, 0.0
          %vm4890 = vcmp.gt.f32.partialorder %v4826, 0.0
          %vm4891 = vcmp.gt.f32.partialorder %v4827, 0.0
          %vm4892 = vcmp.gt.f32.partialorder %v4828, 0.0
          %vm4893 = vcmp.gt.f32.partialorder %v4829, 0.0
          %vm4894 = vcmp.gt.f32.partialorder %v4830, 0.0
          %vm4895 = vcmp.gt.f32.partialorder %v4831, 0.0
          %vm4896 = vcmp.gt.f32.partialorder %v4832, 0.0
          %vm4897 = vcmp.gt.f32.partialorder %v4833, 0.0
          %vm4898 = vcmp.gt.f32.partialorder %v4834, 0.0
          %vm4899 = vcmp.gt.f32.partialorder %v4835, 0.0
          %vm4900 = vcmp.gt.f32.partialorder %v4836, 0.0
          %vm4901 = vcmp.gt.f32.partialorder %v4837, 0.0
          %vm4902 = vcmp.gt.f32.partialorder %v4838, 0.0
          %vm4903 = vcmp.gt.f32.partialorder %v4839, 0.0
          %vm4904 = vcmp.gt.f32.partialorder %v4840, 0.0
          %vm4905 = vcmp.gt.f32.partialorder %v4841, 0.0
          %vm4906 = vcmp.gt.f32.partialorder %v4842, 0.0
          %vm4907 = vcmp.gt.f32.partialorder %v4843, 0.0
          %vm4908 = vcmp.gt.f32.partialorder %v4844, 0.0
          %vm4909 = vcmp.gt.f32.partialorder %v4845, 0.0
          %v4910 = vmul.f32 %v4782, 0.2
          %v4911 = vmul.f32 %v4783, 0.2
          %v4912 = vmul.f32 %v4784, 0.2
          %v4913 = vmul.f32 %v4785, 0.2
          %v4914 = vmul.f32 %v4786, 0.2
          %v4915 = vmul.f32 %v4787, 0.2
          %v4916 = vmul.f32 %v4788, 0.2
          %v4917 = vmul.f32 %v4789, 0.2
          %v4918 = vmul.f32 %v4790, 0.2
          %v4919 = vmul.f32 %v4791, 0.2
          %v4920 = vmul.f32 %v4792, 0.2
          %v4921 = vmul.f32 %v4793, 0.2
          %v4922 = vmul.f32 %v4794, 0.2
          %v4923 = vmul.f32 %v4795, 0.2
          %v4924 = vmul.f32 %v4796, 0.2
          %v4925 = vmul.f32 %v4797, 0.2
          %v4926 = vmul.f32 %v4798, 0.2
          %v4927 = vmul.f32 %v4799, 0.2
          %v4928 = vmul.f32 %v4800, 0.2
          %v4929 = vmul.f32 %v4801, 0.2
          %v4930 = vmul.f32 %v4802, 0.2
          %v4931 = vmul.f32 %v4803, 0.2
          %v4932 = vmul.f32 %v4804, 0.2
          %v4933 = vmul.f32 %v4805, 0.2
          %v4934 = vmul.f32 %v4806, 0.2
          %v4935 = vmul.f32 %v4807, 0.2
          %v4936 = vmul.f32 %v4808, 0.2
          %v4937 = vmul.f32 %v4809, 0.2
          %v4938 = vmul.f32 %v4810, 0.2
          %v4939 = vmul.f32 %v4811, 0.2
          %v4940 = vmul.f32 %v4812, 0.2
          %v4941 = vmul.f32 %v4813, 0.2
          %v4942 = vmul.f32 %v4814, 0.2
          %v4943 = vmul.f32 %v4815, 0.2
          %v4944 = vmul.f32 %v4816, 0.2
          %v4945 = vmul.f32 %v4817, 0.2
          %v4946 = vmul.f32 %v4818, 0.2
          %v4947 = vmul.f32 %v4819, 0.2
          %v4948 = vmul.f32 %v4820, 0.2
          %v4949 = vmul.f32 %v4821, 0.2
          %v4950 = vmul.f32 %v4822, 0.2
          %v4951 = vmul.f32 %v4823, 0.2
          %v4952 = vmul.f32 %v4824, 0.2
          %v4953 = vmul.f32 %v4825, 0.2
          %v4954 = vmul.f32 %v4826, 0.2
          %v4955 = vmul.f32 %v4827, 0.2
          %v4956 = vmul.f32 %v4828, 0.2
          %v4957 = vmul.f32 %v4829, 0.2
          %v4958 = vmul.f32 %v4830, 0.2
          %v4959 = vmul.f32 %v4831, 0.2
          %v4960 = vmul.f32 %v4832, 0.2
          %v4961 = vmul.f32 %v4833, 0.2
          %v4962 = vmul.f32 %v4834, 0.2
          %v4963 = vmul.f32 %v4835, 0.2
          %v4964 = vmul.f32 %v4836, 0.2
          %v4965 = vmul.f32 %v4837, 0.2
          %v4966 = vmul.f32 %v4838, 0.2
          %v4967 = vmul.f32 %v4839, 0.2
          %v4968 = vmul.f32 %v4840, 0.2
          %v4969 = vmul.f32 %v4841, 0.2
          %v4970 = vmul.f32 %v4842, 0.2
          %v4971 = vmul.f32 %v4843, 0.2
          %v4972 = vmul.f32 %v4844, 0.2
          %v4973 = vmul.f32 %v4845, 0.2
          %v4974 = vsel %vm4846, %v4782, %v4910
          %v4975 = vsel %vm4847, %v4783, %v4911
          %v4976 = vsel %vm4848, %v4784, %v4912
          %v4977 = vsel %vm4849, %v4785, %v4913
          %v4978 = vsel %vm4850, %v4786, %v4914
          %v4979 = vsel %vm4851, %v4787, %v4915
          %v4980 = vsel %vm4852, %v4788, %v4916
          %v4981 = vsel %vm4853, %v4789, %v4917
          %v4982 = vsel %vm4854, %v4790, %v4918
          %v4983 = vsel %vm4855, %v4791, %v4919
          %v4984 = vsel %vm4856, %v4792, %v4920
          %v4985 = vsel %vm4857, %v4793, %v4921
          %v4986 = vsel %vm4858, %v4794, %v4922
          %v4987 = vsel %vm4859, %v4795, %v4923
          %v4988 = vsel %vm4860, %v4796, %v4924
          %v4989 = vsel %vm4861, %v4797, %v4925
          %v4990 = vsel %vm4862, %v4798, %v4926
          %v4991 = vsel %vm4863, %v4799, %v4927
          %v4992 = vsel %vm4864, %v4800, %v4928
          %v4993 = vsel %vm4865, %v4801, %v4929
          %v4994 = vsel %vm4866, %v4802, %v4930
          %v4995 = vsel %vm4867, %v4803, %v4931
          %v4996 = vsel %vm4868, %v4804, %v4932
          %v4997 = vsel %vm4869, %v4805, %v4933
          %v4998 = vsel %vm4870, %v4806, %v4934
          %v4999 = vsel %vm4871, %v4807, %v4935
          %v5000 = vsel %vm4872, %v4808, %v4936
          %v5001 = vsel %vm4873, %v4809, %v4937
          %v5002 = vsel %vm4874, %v4810, %v4938
          %v5003 = vsel %vm4875, %v4811, %v4939
          %v5004 = vsel %vm4876, %v4812, %v4940
          %v5005 = vsel %vm4877, %v4813, %v4941
          %v5006 = vsel %vm4878, %v4814, %v4942
          %v5007 = vsel %vm4879, %v4815, %v4943
          %v5008 = vsel %vm4880, %v4816, %v4944
          %v5009 = vsel %vm4881, %v4817, %v4945
          %v5010 = vsel %vm4882, %v4818, %v4946
          %v5011 = vsel %vm4883, %v4819, %v4947
          %v5012 = vsel %vm4884, %v4820, %v4948
          %v5013 = vsel %vm4885, %v4821, %v4949
          %v5014 = vsel %vm4886, %v4822, %v4950
          %v5015 = vsel %vm4887, %v4823, %v4951
          %v5016 = vsel %vm4888, %v4824, %v4952
          %v5017 = vsel %vm4889, %v4825, %v4953
          %v5018 = vsel %vm4890, %v4826, %v4954
          %v5019 = vsel %vm4891, %v4827, %v4955
          %v5020 = vsel %vm4892, %v4828, %v4956
          %v5021 = vsel %vm4893, %v4829, %v4957
          %v5022 = vsel %vm4894, %v4830, %v4958
          %v5023 = vsel %vm4895, %v4831, %v4959
          %v5024 = vsel %vm4896, %v4832, %v4960
          %v5025 = vsel %vm4897, %v4833, %v4961
          %v5026 = vsel %vm4898, %v4834, %v4962
          %v5027 = vsel %vm4899, %v4835, %v4963
          %v5028 = vsel %vm4900, %v4836, %v4964
          %v5029 = vsel %vm4901, %v4837, %v4965
          %v5030 = vsel %vm4902, %v4838, %v4966
          %v5031 = vsel %vm4903, %v4839, %v4967
          %v5032 = vsel %vm4904, %v4840, %v4968
          %v5033 = vsel %vm4905, %v4841, %v4969
          %v5034 = vsel %vm4906, %v4842, %v4970
          %v5035 = vsel %vm4907, %v4843, %v4971
          %v5036 = vsel %vm4908, %v4844, %v4972
          %v5037 = vsel %vm4909, %v4845, %v4973
          %v5038 = vpack.c.bf16 %v4976, %v4974
          %v5039 = vpack.c.bf16 %v4977, %v4975
          %v5040 = vpack.c.bf16 %v4980, %v4978
          %v5041 = vpack.c.bf16 %v4981, %v4979
          %v5042 = vpack.c.bf16 %v4984, %v4982
          %v5043 = vpack.c.bf16 %v4985, %v4983
          %v5044 = vpack.c.bf16 %v4988, %v4986
          %v5045 = vpack.c.bf16 %v4989, %v4987
          %v5046 = vpack.c.bf16 %v4992, %v4990
          %v5047 = vpack.c.bf16 %v4993, %v4991
          %v5048 = vpack.c.bf16 %v4996, %v4994
          %v5049 = vpack.c.bf16 %v4997, %v4995
          %v5050 = vpack.c.bf16 %v5000, %v4998
          %v5051 = vpack.c.bf16 %v5001, %v4999
          %v5052 = vpack.c.bf16 %v5004, %v5002
          %v5053 = vpack.c.bf16 %v5005, %v5003
          %v5054 = vpack.c.bf16 %v5008, %v5006
          %v5055 = vpack.c.bf16 %v5009, %v5007
          %v5056 = vpack.c.bf16 %v5012, %v5010
          %v5057 = vpack.c.bf16 %v5013, %v5011
          %v5058 = vpack.c.bf16 %v5016, %v5014
          %v5059 = vpack.c.bf16 %v5017, %v5015
          %v5060 = vpack.c.bf16 %v5020, %v5018
          %v5061 = vpack.c.bf16 %v5021, %v5019
          %v5062 = vpack.c.bf16 %v5024, %v5022
          %v5063 = vpack.c.bf16 %v5025, %v5023
          %v5064 = vpack.c.bf16 %v5028, %v5026
          %v5065 = vpack.c.bf16 %v5029, %v5027
          %v5066 = vpack.c.bf16 %v5032, %v5030
          %v5067 = vpack.c.bf16 %v5033, %v5031
          %v5068 = vpack.c.bf16 %v5036, %v5034
          %v5069 = vpack.c.bf16 %v5037, %v5035
          %v5070 = vld [vmem:[#allocation20] sm:$0xf]
          %v5071 = vld [vmem:[#allocation20 + $0x4] sm:$0xf]
          %v5072 = vld [vmem:[#allocation20 + $0x8] sm:$0xf]
          %v5073 = vld [vmem:[#allocation20 + $0xc] sm:$0xf]
          %v5074 = vld [vmem:[#allocation20 + $0x10] sm:$0xf]
          %v5075 = vld [vmem:[#allocation20 + $0x14] sm:$0xf]
          %v5076 = vld [vmem:[#allocation20 + $0x18] sm:$0xf]
          %v5077 = vld [vmem:[#allocation20 + $0x1c] sm:$0xf]
          %v5078 = vld [vmem:[#allocation20 + $0x20] sm:$0xf]
          %v5079 = vld [vmem:[#allocation20 + $0x24] sm:$0xf]
          %v5080 = vld [vmem:[#allocation20 + $0x28] sm:$0xf]
          %v5081 = vld [vmem:[#allocation20 + $0x2c] sm:$0xf]
          %v5082 = vld [vmem:[#allocation20 + $0x30] sm:$0xf]
          %v5083 = vld [vmem:[#allocation20 + $0x34] sm:$0xf]
          %v5084 = vld [vmem:[#allocation20 + $0x38] sm:$0xf]
          %v5085 = vld [vmem:[#allocation20 + $0x3c] sm:$0xf]
          %v5086 = vld [vmem:[#allocation20 + $0x40] sm:$0xf]
          %v5087 = vld [vmem:[#allocation20 + $0x44] sm:$0xf]
          %v5088 = vld [vmem:[#allocation20 + $0x48] sm:$0xf]
          %v5089 = vld [vmem:[#allocation20 + $0x4c] sm:$0xf]
          %v5090 = vld [vmem:[#allocation20 + $0x50] sm:$0xf]
          %v5091 = vld [vmem:[#allocation20 + $0x54] sm:$0xf]
          %v5092 = vld [vmem:[#allocation20 + $0x58] sm:$0xf]
          %v5093 = vld [vmem:[#allocation20 + $0x5c] sm:$0xf]
          %v5094 = vld [vmem:[#allocation20 + $0x60] sm:$0xf]
          %v5095 = vld [vmem:[#allocation20 + $0x64] sm:$0xf]
          %v5096 = vld [vmem:[#allocation20 + $0x68] sm:$0xf]
          %v5097 = vld [vmem:[#allocation20 + $0x6c] sm:$0xf]
          %v5098 = vld [vmem:[#allocation20 + $0x70] sm:$0xf]
          %v5099 = vld [vmem:[#allocation20 + $0x74] sm:$0xf]
          %v5100 = vld [vmem:[#allocation20 + $0x78] sm:$0xf]
          %v5101 = vld [vmem:[#allocation20 + $0x7c] sm:$0xf]
          %v5134 = vunpack.c.l.b16 %v5070
          %v5135 = vunpack.c.l.b16 %v5071
          %v5136 = vunpack.c.l.b16 %v5072
          %v5137 = vunpack.c.l.b16 %v5073
          %v5138 = vunpack.c.l.b16 %v5074
          %v5139 = vunpack.c.l.b16 %v5075
          %v5140 = vunpack.c.l.b16 %v5076
          %v5141 = vunpack.c.l.b16 %v5077
          %v5142 = vunpack.c.l.b16 %v5078
          %v5143 = vunpack.c.l.b16 %v5079
          %v5144 = vunpack.c.l.b16 %v5080
          %v5145 = vunpack.c.l.b16 %v5081
          %v5146 = vunpack.c.l.b16 %v5082
          %v5147 = vunpack.c.l.b16 %v5083
          %v5148 = vunpack.c.l.b16 %v5084
          %v5149 = vunpack.c.l.b16 %v5085
          %v5150 = vunpack.c.l.b16 %v5086
          %v5151 = vunpack.c.l.b16 %v5087
          %v5152 = vunpack.c.l.b16 %v5088
          %v5153 = vunpack.c.l.b16 %v5089
          %v5154 = vunpack.c.l.b16 %v5090
          %v5155 = vunpack.c.l.b16 %v5091
          %v5156 = vunpack.c.l.b16 %v5092
          %v5157 = vunpack.c.l.b16 %v5093
          %v5158 = vunpack.c.l.b16 %v5094
          %v5159 = vunpack.c.l.b16 %v5095
          %v5160 = vunpack.c.l.b16 %v5096
          %v5161 = vunpack.c.l.b16 %v5097
          %v5162 = vunpack.c.l.b16 %v5098
          %v5163 = vunpack.c.l.b16 %v5099
          %v5164 = vunpack.c.l.b16 %v5100
          %v5165 = vunpack.c.l.b16 %v5101
          %v5166 = vpack.c.b16 %v5135, %v5134
          %v5167 = vpack.c.b16 %v5137, %v5136
          %v5168 = vpack.c.b16 %v5139, %v5138
          %v5169 = vpack.c.b16 %v5141, %v5140
          %v5170 = vpack.c.b16 %v5143, %v5142
          %v5171 = vpack.c.b16 %v5145, %v5144
          %v5172 = vpack.c.b16 %v5147, %v5146
          %v5173 = vpack.c.b16 %v5149, %v5148
          %v5174 = vpack.c.b16 %v5151, %v5150
          %v5175 = vpack.c.b16 %v5153, %v5152
          %v5176 = vpack.c.b16 %v5155, %v5154
          %v5177 = vpack.c.b16 %v5157, %v5156
          %v5178 = vpack.c.b16 %v5159, %v5158
          %v5179 = vpack.c.b16 %v5161, %v5160
          %v5180 = vpack.c.b16 %v5163, %v5162
          %v5181 = vpack.c.b16 %v5165, %v5164
          %5198 = vmatprep.subr.bf16.mxu0 0
          %5199 = vmatpush1.bf16.msra.mxu0 %v5173
          %5200 = vmatprep.subr.bf16.mxu0 0
          %5201 = vmatpush1.bf16.msra.mxu0 %v5172
          %5202 = vmatprep.subr.bf16.mxu0 0
          %5203 = vmatpush1.bf16.msra.mxu0 %v5171
          %5204 = vmatprep.subr.bf16.mxu0 0
          %5205 = vmatpush1.bf16.msra.mxu0 %v5170
          %5206 = vmatprep.subr.bf16.mxu0 0
          %5207 = vmatpush1.bf16.msra.mxu0 %v5169
          %5208 = vmatprep.subr.bf16.mxu0 0
          %5209 = vmatpush1.bf16.msra.mxu0 %v5168
          %5210 = vmatprep.subr.bf16.mxu0 0
          %5211 = vmatpush1.bf16.msra.mxu0 %v5167
          %5212 = vmatprep.subr.bf16.mxu0 0
          %5213 = vmatpush1.bf16.msra.mxu0 %v5166
          %5214 = vmatprep.subr.bf16.mxu0 0
          %5215 = vmatpush2.bf16.msra.mxu0 %v5181
          %5216 = vmatprep.subr.bf16.mxu0 0
          %5217 = vmatpush2.bf16.msra.mxu0 %v5180
          %5218 = vmatprep.subr.bf16.mxu0 0
          %5219 = vmatpush2.bf16.msra.mxu0 %v5179
          %5220 = vmatprep.subr.bf16.mxu0 0
          %5221 = vmatpush2.bf16.msra.mxu0 %v5178
          %5222 = vmatprep.subr.bf16.mxu0 0
          %5223 = vmatpush2.bf16.msra.mxu0 %v5177
          %5224 = vmatprep.subr.bf16.mxu0 0
          %5225 = vmatpush2.bf16.msra.mxu0 %v5176
          %5226 = vmatprep.subr.bf16.mxu0 0
          %5227 = vmatpush2.bf16.msra.mxu0 %v5175
          %5228 = vmatprep.subr.bf16.mxu0 0
          %5229 = vmatpush2.bf16.msra.mxu0 %v5174
          %5230 = vmatprep.mubr.bf16.mxu0 %v5039
          %5231 = vmatmul.mubr.bf16.gmra.mxu0 %v5038
          %v5232 = vpop.f32.mrf.mxu0
          %v5233 = vadd.f32 0.0, %v5232
          %v5234 = vpop.f32.mrf.mxu0
          %v5235 = vpop.f32.mrf.mxu0
          %v5236 = vadd.f32 0.0, %v5235
          %v5237 = vpop.f32.mrf.mxu0
          %5238 = vmatprep.mubr.bf16.mxu0 %v5041
          %5239 = vmatmul.mubr.bf16.gmra.mxu0 %v5040
          %v5240 = vpop.f32.mrf.mxu0
          %v5241 = vadd.f32 0.0, %v5240
          %v5242 = vpop.f32.mrf.mxu0
          %v5243 = vpop.f32.mrf.mxu0
          %v5244 = vadd.f32 0.0, %v5243
          %v5245 = vpop.f32.mrf.mxu0
          %5246 = vmatprep.mubr.bf16.mxu0 %v5043
          %5247 = vmatmul.mubr.bf16.gmra.mxu0 %v5042
          %v5248 = vpop.f32.mrf.mxu0
          %v5249 = vadd.f32 0.0, %v5248
          %v5250 = vpop.f32.mrf.mxu0
          %v5251 = vpop.f32.mrf.mxu0
          %v5252 = vadd.f32 0.0, %v5251
          %v5253 = vpop.f32.mrf.mxu0
          %5254 = vmatprep.mubr.bf16.mxu0 %v5045
          %5255 = vmatmul.mubr.bf16.gmra.mxu0 %v5044
          %v5256 = vpop.f32.mrf.mxu0
          %v5257 = vadd.f32 0.0, %v5256
          %v5258 = vpop.f32.mrf.mxu0
          %v5259 = vpop.f32.mrf.mxu0
          %v5260 = vadd.f32 0.0, %v5259
          %v5261 = vpop.f32.mrf.mxu0
          %5262 = vmatprep.mubr.bf16.mxu0 %v5047
          %5263 = vmatmul.mubr.bf16.gmra.mxu0 %v5046
          %v5264 = vpop.f32.mrf.mxu0
          %v5265 = vadd.f32 0.0, %v5264
          %v5266 = vpop.f32.mrf.mxu0
          %v5267 = vpop.f32.mrf.mxu0
          %v5268 = vadd.f32 0.0, %v5267
          %v5269 = vpop.f32.mrf.mxu0
          %5270 = vmatprep.mubr.bf16.mxu0 %v5049
          %5271 = vmatmul.mubr.bf16.gmra.mxu0 %v5048
          %v5272 = vpop.f32.mrf.mxu0
          %v5273 = vadd.f32 0.0, %v5272
          %v5274 = vpop.f32.mrf.mxu0
          %v5275 = vpop.f32.mrf.mxu0
          %v5276 = vadd.f32 0.0, %v5275
          %v5277 = vpop.f32.mrf.mxu0
          %5278 = vmatprep.mubr.bf16.mxu0 %v5051
          %5279 = vmatmul.mubr.bf16.gmra.mxu0 %v5050
          %v5280 = vpop.f32.mrf.mxu0
          %v5281 = vadd.f32 0.0, %v5280
          %v5282 = vpop.f32.mrf.mxu0
          %v5283 = vpop.f32.mrf.mxu0
          %v5284 = vadd.f32 0.0, %v5283
          %v5285 = vpop.f32.mrf.mxu0
          %5286 = vmatprep.mubr.bf16.mxu0 %v5053
          %5287 = vmatmul.mubr.bf16.gmra.mxu0 %v5052
          %v5288 = vpop.f32.mrf.mxu0
          %v5289 = vadd.f32 0.0, %v5288
          %v5290 = vpop.f32.mrf.mxu0
          %v5291 = vpop.f32.mrf.mxu0
          %v5292 = vadd.f32 0.0, %v5291
          %v5293 = vpop.f32.mrf.mxu0
          %5294 = vmatprep.mubr.bf16.mxu0 %v5055
          %5295 = vmatmul.mubr.bf16.gmra.mxu0 %v5054
          %v5296 = vpop.f32.mrf.mxu0
          %v5297 = vadd.f32 0.0, %v5296
          %v5298 = vpop.f32.mrf.mxu0
          %v5299 = vpop.f32.mrf.mxu0
          %v5300 = vadd.f32 0.0, %v5299
          %v5301 = vpop.f32.mrf.mxu0
          %5302 = vmatprep.mubr.bf16.mxu0 %v5057
          %5303 = vmatmul.mubr.bf16.gmra.mxu0 %v5056
          %v5304 = vpop.f32.mrf.mxu0
          %v5305 = vadd.f32 0.0, %v5304
          %v5306 = vpop.f32.mrf.mxu0
          %v5307 = vpop.f32.mrf.mxu0
          %v5308 = vadd.f32 0.0, %v5307
          %v5309 = vpop.f32.mrf.mxu0
          %5310 = vmatprep.mubr.bf16.mxu0 %v5059
          %5311 = vmatmul.mubr.bf16.gmra.mxu0 %v5058
          %v5312 = vpop.f32.mrf.mxu0
          %v5313 = vadd.f32 0.0, %v5312
          %v5314 = vpop.f32.mrf.mxu0
          %v5315 = vpop.f32.mrf.mxu0
          %v5316 = vadd.f32 0.0, %v5315
          %v5317 = vpop.f32.mrf.mxu0
          %5318 = vmatprep.mubr.bf16.mxu0 %v5061
          %5319 = vmatmul.mubr.bf16.gmra.mxu0 %v5060
          %v5320 = vpop.f32.mrf.mxu0
          %v5321 = vadd.f32 0.0, %v5320
          %v5322 = vpop.f32.mrf.mxu0
          %v5323 = vpop.f32.mrf.mxu0
          %v5324 = vadd.f32 0.0, %v5323
          %v5325 = vpop.f32.mrf.mxu0
          %5326 = vmatprep.mubr.bf16.mxu0 %v5063
          %5327 = vmatmul.mubr.bf16.gmra.mxu0 %v5062
          %v5328 = vpop.f32.mrf.mxu0
          %v5329 = vadd.f32 0.0, %v5328
          %v5330 = vpop.f32.mrf.mxu0
          %v5331 = vpop.f32.mrf.mxu0
          %v5332 = vadd.f32 0.0, %v5331
          %v5333 = vpop.f32.mrf.mxu0
          %5334 = vmatprep.mubr.bf16.mxu0 %v5065
          %5335 = vmatmul.mubr.bf16.gmra.mxu0 %v5064
          %v5336 = vpop.f32.mrf.mxu0
          %v5337 = vadd.f32 0.0, %v5336
          %v5338 = vpop.f32.mrf.mxu0
          %v5339 = vpop.f32.mrf.mxu0
          %v5340 = vadd.f32 0.0, %v5339
          %v5341 = vpop.f32.mrf.mxu0
          %5342 = vmatprep.mubr.bf16.mxu0 %v5067
          %5343 = vmatmul.mubr.bf16.gmra.mxu0 %v5066
          %v5344 = vpop.f32.mrf.mxu0
          %v5345 = vadd.f32 0.0, %v5344
          %v5346 = vpop.f32.mrf.mxu0
          %v5347 = vpop.f32.mrf.mxu0
          %v5348 = vadd.f32 0.0, %v5347
          %v5349 = vpop.f32.mrf.mxu0
          %5350 = vmatprep.mubr.bf16.mxu0 %v5069
          %5351 = vmatmul.mubr.bf16.gmra.mxu0 %v5068
          %v5352 = vpop.f32.mrf.mxu0
          %v5353 = vadd.f32 0.0, %v5352
          %v5354 = vpop.f32.mrf.mxu0
          %v5355 = vpop.f32.mrf.mxu0
          %v5356 = vadd.f32 0.0, %v5355
          %v5357 = vpop.f32.mrf.mxu0
          %5358 = vdwg.mxu0
          %s5359 = scalar_lea.vmem [#allocation3], %s406
          %5360 = vst [vmem:[%s5359] sm:$0xff] %v5233
          %5361 = vst [vmem:[%s5359 + $0x8] sm:$0xff] %v5236
          %5362 = vst [vmem:[%s5359 + $0x10] sm:$0xff] %v5241
          %5363 = vst [vmem:[%s5359 + $0x18] sm:$0xff] %v5244
          %5364 = vst [vmem:[%s5359 + $0x20] sm:$0xff] %v5249
          %5365 = vst [vmem:[%s5359 + $0x28] sm:$0xff] %v5252
          %5366 = vst [vmem:[%s5359 + $0x30] sm:$0xff] %v5257
          %5367 = vst [vmem:[%s5359 + $0x38] sm:$0xff] %v5260
          %5368 = vst [vmem:[%s5359 + $0x40] sm:$0xff] %v5265
          %5369 = vst [vmem:[%s5359 + $0x48] sm:$0xff] %v5268
          %5370 = vst [vmem:[%s5359 + $0x50] sm:$0xff] %v5273
          %5371 = vst [vmem:[%s5359 + $0x58] sm:$0xff] %v5276
          %5372 = vst [vmem:[%s5359 + $0x60] sm:$0xff] %v5281
          %5373 = vst [vmem:[%s5359 + $0x68] sm:$0xff] %v5284
          %5374 = vst [vmem:[%s5359 + $0x70] sm:$0xff] %v5289
          %5375 = vst [vmem:[%s5359 + $0x78] sm:$0xff] %v5292
          %5376 = vst [vmem:[%s5359 + $0x80] sm:$0xff] %v5297
          %5377 = vst [vmem:[%s5359 + $0x88] sm:$0xff] %v5300
          %5378 = vst [vmem:[%s5359 + $0x90] sm:$0xff] %v5305
          %5379 = vst [vmem:[%s5359 + $0x98] sm:$0xff] %v5308
          %5380 = vst [vmem:[%s5359 + $0xa0] sm:$0xff] %v5313
          %5381 = vst [vmem:[%s5359 + $0xa8] sm:$0xff] %v5316
          %5382 = vst [vmem:[%s5359 + $0xb0] sm:$0xff] %v5321
          %5383 = vst [vmem:[%s5359 + $0xb8] sm:$0xff] %v5324
          %5384 = vst [vmem:[%s5359 + $0xc0] sm:$0xff] %v5329
          %5385 = vst [vmem:[%s5359 + $0xc8] sm:$0xff] %v5332
          %5386 = vst [vmem:[%s5359 + $0xd0] sm:$0xff] %v5337
          %5387 = vst [vmem:[%s5359 + $0xd8] sm:$0xff] %v5340
          %5388 = vst [vmem:[%s5359 + $0xe0] sm:$0xff] %v5345
          %5389 = vst [vmem:[%s5359 + $0xe8] sm:$0xff] %v5348
          %5390 = vst [vmem:[%s5359 + $0xf0] sm:$0xff] %v5353
          %5391 = vst [vmem:[%s5359 + $0xf8] sm:$0xff] %v5356
          %v5392 = vld [vmem:[#allocation6] sm:$0x1]
          %v5393 = vadd.f32 %v5233, %v5236
          %v5394 = vadd.f32 %v5393, %v5241
          %v5395 = vadd.f32 %v5394, %v5244
          %v5396 = vadd.f32 %v5395, %v5249
          %v5397 = vadd.f32 %v5396, %v5252
          %v5398 = vadd.f32 %v5397, %v5257
          %v5399 = vadd.f32 %v5398, %v5260
          %v5400 = vadd.f32 %v5399, %v5265
          %v5401 = vadd.f32 %v5400, %v5268
          %v5402 = vadd.f32 %v5401, %v5273
          %v5403 = vadd.f32 %v5402, %v5276
          %v5404 = vadd.f32 %v5403, %v5281
          %v5405 = vadd.f32 %v5404, %v5284
          %v5406 = vadd.f32 %v5405, %v5289
          %v5407 = vadd.f32 %v5406, %v5292
          %v5408 = vadd.f32 %v5407, %v5297
          %v5409 = vadd.f32 %v5408, %v5300
          %v5410 = vadd.f32 %v5409, %v5305
          %v5411 = vadd.f32 %v5410, %v5308
          %v5412 = vadd.f32 %v5411, %v5313
          %v5413 = vadd.f32 %v5412, %v5316
          %v5414 = vadd.f32 %v5413, %v5321
          %v5415 = vadd.f32 %v5414, %v5324
          %v5416 = vadd.f32 %v5415, %v5329
          %v5417 = vadd.f32 %v5416, %v5332
          %v5418 = vadd.f32 %v5417, %v5337
          %v5419 = vadd.f32 %v5418, %v5340
          %v5420 = vadd.f32 %v5419, %v5345
          %v5421 = vadd.f32 %v5420, %v5348
          %v5422 = vadd.f32 %v5421, %v5353
          %v5423 = vadd.f32 %v5422, %v5356
          %v5424 = vrot.slane %v5423, 4
          %v5425 = vadd.f32 %v5423, %v5424
          %v5426 = vrot.slane %v5425, 2
          %v5427 = vadd.f32 %v5425, %v5426
          %v5428 = vrot.slane %v5427, 1
          %v5429 = vadd.f32 %v5427, %v5428
          %v5430 = vadd.f32 %v5392, %v5429
          %5431 = vst [vmem:[#allocation6] sm:$0x1] %v5430
          %v5432 = vld [vmem:[#allocation7] sm:$0x1]
          %v5433 = vmul.f32 %v5233, %v5233
          %v5434 = vmul.f32 %v5236, %v5236
          %v5435 = vmul.f32 %v5241, %v5241
          %v5436 = vmul.f32 %v5244, %v5244
          %v5437 = vmul.f32 %v5249, %v5249
          %v5438 = vmul.f32 %v5252, %v5252
          %v5439 = vmul.f32 %v5257, %v5257
          %v5440 = vmul.f32 %v5260, %v5260
          %v5441 = vmul.f32 %v5265, %v5265
          %v5442 = vmul.f32 %v5268, %v5268
          %v5443 = vmul.f32 %v5273, %v5273
          %v5444 = vmul.f32 %v5276, %v5276
          %v5445 = vmul.f32 %v5281, %v5281
          %v5446 = vmul.f32 %v5284, %v5284
          %v5447 = vmul.f32 %v5289, %v5289
          %v5448 = vmul.f32 %v5292, %v5292
          %v5449 = vmul.f32 %v5297, %v5297
          %v5450 = vmul.f32 %v5300, %v5300
          %v5451 = vmul.f32 %v5305, %v5305
          %v5452 = vmul.f32 %v5308, %v5308
          %v5453 = vmul.f32 %v5313, %v5313
          %v5454 = vmul.f32 %v5316, %v5316
          %v5455 = vmul.f32 %v5321, %v5321
          %v5456 = vmul.f32 %v5324, %v5324
          %v5457 = vmul.f32 %v5329, %v5329
          %v5458 = vmul.f32 %v5332, %v5332
          %v5459 = vmul.f32 %v5337, %v5337
          %v5460 = vmul.f32 %v5340, %v5340
          %v5461 = vmul.f32 %v5345, %v5345
          %v5462 = vmul.f32 %v5348, %v5348
          %v5463 = vmul.f32 %v5353, %v5353
          %v5464 = vmul.f32 %v5356, %v5356
          %v5465 = vadd.f32 %v5433, %v5434
          %v5466 = vadd.f32 %v5465, %v5435
          %v5467 = vadd.f32 %v5466, %v5436
          %v5468 = vadd.f32 %v5467, %v5437
          %v5469 = vadd.f32 %v5468, %v5438
          %v5470 = vadd.f32 %v5469, %v5439
          %v5471 = vadd.f32 %v5470, %v5440
          %v5472 = vadd.f32 %v5471, %v5441
          %v5473 = vadd.f32 %v5472, %v5442
          %v5474 = vadd.f32 %v5473, %v5443
          %v5475 = vadd.f32 %v5474, %v5444
          %v5476 = vadd.f32 %v5475, %v5445
          %v5477 = vadd.f32 %v5476, %v5446
          %v5478 = vadd.f32 %v5477, %v5447
          %v5479 = vadd.f32 %v5478, %v5448
          %v5480 = vadd.f32 %v5479, %v5449
          %v5481 = vadd.f32 %v5480, %v5450
          %v5482 = vadd.f32 %v5481, %v5451
          %v5483 = vadd.f32 %v5482, %v5452
          %v5484 = vadd.f32 %v5483, %v5453
          %v5485 = vadd.f32 %v5484, %v5454
          %v5486 = vadd.f32 %v5485, %v5455
          %v5487 = vadd.f32 %v5486, %v5456
          %v5488 = vadd.f32 %v5487, %v5457
          %v5489 = vadd.f32 %v5488, %v5458
          %v5490 = vadd.f32 %v5489, %v5459
          %v5491 = vadd.f32 %v5490, %v5460
          %v5492 = vadd.f32 %v5491, %v5461
          %v5493 = vadd.f32 %v5492, %v5462
          %v5494 = vadd.f32 %v5493, %v5463
          %v5495 = vadd.f32 %v5494, %v5464
          %v5496 = vrot.slane %v5495, 4
          %v5497 = vadd.f32 %v5495, %v5496
          %v5498 = vrot.slane %v5497, 2
          %v5499 = vadd.f32 %v5497, %v5498
          %v5500 = vrot.slane %v5499, 1
          %v5501 = vadd.f32 %v5499, %v5500
          %v5502 = vadd.f32 %v5432, %v5501
          %5503 = vst [vmem:[#allocation7] sm:$0x1] %v5502
        $region88: #{tpu_custom_call.1} parent=47 // pred_fallthru
          _
        %p5504 = scmp.eq.s32.totalorder %s31, 2
        // Predicated region
        $region93: #{tpu_custom_call.1} parent=47 // pred_check
          %p5505 = pneg %p5504
        $region94: #{tpu_custom_call.1} parent=47 // pred_check_branch
          %5507 = sbr.rel (%p5505) target = $region96
        $region95: #{tpu_custom_call.1} parent=47 // pred_region
          %p5508 = scmp.eq.s32.totalorder %s32, 0
          // Predicated region
          $region97: #{tpu_custom_call.1} parent=95 // pred_check
            %p5509 = pneg %p5508
          $region98: #{tpu_custom_call.1} parent=95 // pred_check_branch
            %5511 = sbr.rel (%p5509) target = $region100
          $region99: #{tpu_custom_call.1} parent=95 // pred_region
            %v5512 = vld [vmem:[#allocation6] sm:$0x1]
            %v5513 = vmul.f32 %v5512, 0.001953125
            %v5514 = vld [vmem:[#allocation7] sm:$0x1]
            %v5515 = vmul.f32 %v5514, 0.001953125
            %v5516 = vmul.f32 %v5513, %v5513
            %v5517 = vsub.f32 %v5515, %v5516
            %v5518 = vld [vmem:[#allocation21] sm:$0x1]
            %v5519 = vadd.f32 %v5517, 1e-05
            %v5520 = vrsqrt.pop %v5519
            %v5521 = vmul.f32 %v5518, %v5520
            %5522 = vst [vmem:[#allocation10] sm:$0x1] %v5521
            %v5523 = vld [vmem:[#allocation23] sm:$0x1]
            %v5524 = vmul.f32 %v5513, %v5521
            %v5525 = vsub.f32 %v5523, %v5524
            %5526 = vst [vmem:[#allocation11] sm:$0x1] %v5525
          $region100: #{tpu_custom_call.1} parent=95 // pred_fallthru
            _
          %s5527 = scalar_lea.vmem [#allocation3], %s406
          %v5528 = vld [vmem:[%s5527] sm:$0xff]
          %v5529 = vld [vmem:[%s5527 + $0x8] sm:$0xff]
          %v5530 = vld [vmem:[%s5527 + $0x10] sm:$0xff]
          %v5531 = vld [vmem:[%s5527 + $0x18] sm:$0xff]
          %v5532 = vld [vmem:[%s5527 + $0x20] sm:$0xff]
          %v5533 = vld [vmem:[%s5527 + $0x28] sm:$0xff]
          %v5534 = vld [vmem:[%s5527 + $0x30] sm:$0xff]
          %v5535 = vld [vmem:[%s5527 + $0x38] sm:$0xff]
          %v5536 = vld [vmem:[%s5527 + $0x40] sm:$0xff]
          %v5537 = vld [vmem:[%s5527 + $0x48] sm:$0xff]
          %v5538 = vld [vmem:[%s5527 + $0x50] sm:$0xff]
          %v5539 = vld [vmem:[%s5527 + $0x58] sm:$0xff]
          %v5540 = vld [vmem:[%s5527 + $0x60] sm:$0xff]
          %v5541 = vld [vmem:[%s5527 + $0x68] sm:$0xff]
          %v5542 = vld [vmem:[%s5527 + $0x70] sm:$0xff]
          %v5543 = vld [vmem:[%s5527 + $0x78] sm:$0xff]
          %v5544 = vld [vmem:[%s5527 + $0x80] sm:$0xff]
          %v5545 = vld [vmem:[%s5527 + $0x88] sm:$0xff]
          %v5546 = vld [vmem:[%s5527 + $0x90] sm:$0xff]
          %v5547 = vld [vmem:[%s5527 + $0x98] sm:$0xff]
          %v5548 = vld [vmem:[%s5527 + $0xa0] sm:$0xff]
          %v5549 = vld [vmem:[%s5527 + $0xa8] sm:$0xff]
          %v5550 = vld [vmem:[%s5527 + $0xb0] sm:$0xff]
          %v5551 = vld [vmem:[%s5527 + $0xb8] sm:$0xff]
          %v5552 = vld [vmem:[%s5527 + $0xc0] sm:$0xff]
          %v5553 = vld [vmem:[%s5527 + $0xc8] sm:$0xff]
          %v5554 = vld [vmem:[%s5527 + $0xd0] sm:$0xff]
          %v5555 = vld [vmem:[%s5527 + $0xd8] sm:$0xff]
          %v5556 = vld [vmem:[%s5527 + $0xe0] sm:$0xff]
          %v5557 = vld [vmem:[%s5527 + $0xe8] sm:$0xff]
          %v5558 = vld [vmem:[%s5527 + $0xf0] sm:$0xff]
          %v5559 = vld [vmem:[%s5527 + $0xf8] sm:$0xff]
          %v5560 = vld [vmem:[#allocation10] sm:$0x1]
          %v5562 = vlaneseq
          %v5563 = vshrl.u32 %v5562, 7
          %v5564 = vsub.s32 0, %v5563
          %v5565 = vrot.slane %v5560, %v5564
          %v5567 = vmul.f32 %v5528, %v5565
          %v5568 = vmul.f32 %v5529, %v5565
          %v5569 = vmul.f32 %v5530, %v5565
          %v5570 = vmul.f32 %v5531, %v5565
          %v5571 = vmul.f32 %v5532, %v5565
          %v5572 = vmul.f32 %v5533, %v5565
          %v5573 = vmul.f32 %v5534, %v5565
          %v5574 = vmul.f32 %v5535, %v5565
          %v5575 = vmul.f32 %v5536, %v5565
          %v5576 = vmul.f32 %v5537, %v5565
          %v5577 = vmul.f32 %v5538, %v5565
          %v5578 = vmul.f32 %v5539, %v5565
          %v5579 = vmul.f32 %v5540, %v5565
          %v5580 = vmul.f32 %v5541, %v5565
          %v5581 = vmul.f32 %v5542, %v5565
          %v5582 = vmul.f32 %v5543, %v5565
          %v5583 = vmul.f32 %v5544, %v5565
          %v5584 = vmul.f32 %v5545, %v5565
          %v5585 = vmul.f32 %v5546, %v5565
          %v5586 = vmul.f32 %v5547, %v5565
          %v5587 = vmul.f32 %v5548, %v5565
          %v5588 = vmul.f32 %v5549, %v5565
          %v5589 = vmul.f32 %v5550, %v5565
          %v5590 = vmul.f32 %v5551, %v5565
          %v5591 = vmul.f32 %v5552, %v5565
          %v5592 = vmul.f32 %v5553, %v5565
          %v5593 = vmul.f32 %v5554, %v5565
          %v5594 = vmul.f32 %v5555, %v5565
          %v5595 = vmul.f32 %v5556, %v5565
          %v5596 = vmul.f32 %v5557, %v5565
          %v5597 = vmul.f32 %v5558, %v5565
          %v5598 = vmul.f32 %v5559, %v5565
          %v5599 = vld [vmem:[#allocation11] sm:$0x1]
          %v5601 = vlaneseq
          %v5602 = vshrl.u32 %v5601, 7
          %v5603 = vsub.s32 0, %v5602
          %v5604 = vrot.slane %v5599, %v5603
          %v5606 = vadd.f32 %v5567, %v5604
          %v5607 = vadd.f32 %v5568, %v5604
          %v5608 = vadd.f32 %v5569, %v5604
          %v5609 = vadd.f32 %v5570, %v5604
          %v5610 = vadd.f32 %v5571, %v5604
          %v5611 = vadd.f32 %v5572, %v5604
          %v5612 = vadd.f32 %v5573, %v5604
          %v5613 = vadd.f32 %v5574, %v5604
          %v5614 = vadd.f32 %v5575, %v5604
          %v5615 = vadd.f32 %v5576, %v5604
          %v5616 = vadd.f32 %v5577, %v5604
          %v5617 = vadd.f32 %v5578, %v5604
          %v5618 = vadd.f32 %v5579, %v5604
          %v5619 = vadd.f32 %v5580, %v5604
          %v5620 = vadd.f32 %v5581, %v5604
          %v5621 = vadd.f32 %v5582, %v5604
          %v5622 = vadd.f32 %v5583, %v5604
          %v5623 = vadd.f32 %v5584, %v5604
          %v5624 = vadd.f32 %v5585, %v5604
          %v5625 = vadd.f32 %v5586, %v5604
          %v5626 = vadd.f32 %v5587, %v5604
          %v5627 = vadd.f32 %v5588, %v5604
          %v5628 = vadd.f32 %v5589, %v5604
          %v5629 = vadd.f32 %v5590, %v5604
          %v5630 = vadd.f32 %v5591, %v5604
          %v5631 = vadd.f32 %v5592, %v5604
          %v5632 = vadd.f32 %v5593, %v5604
          %v5633 = vadd.f32 %v5594, %v5604
          %v5634 = vadd.f32 %v5595, %v5604
          %v5635 = vadd.f32 %v5596, %v5604
          %v5636 = vadd.f32 %v5597, %v5604
          %v5637 = vadd.f32 %v5598, %v5604
          %v5638 = vtanh.pop %v5606
          %v5639 = vtanh.pop %v5607
          %v5640 = vtanh.pop %v5608
          %v5641 = vtanh.pop %v5609
          %v5642 = vtanh.pop %v5610
          %v5643 = vtanh.pop %v5611
          %v5644 = vtanh.pop %v5612
          %v5645 = vtanh.pop %v5613
          %v5646 = vtanh.pop %v5614
          %v5647 = vtanh.pop %v5615
          %v5648 = vtanh.pop %v5616
          %v5649 = vtanh.pop %v5617
          %v5650 = vtanh.pop %v5618
          %v5651 = vtanh.pop %v5619
          %v5652 = vtanh.pop %v5620
          %v5653 = vtanh.pop %v5621
          %v5654 = vtanh.pop %v5622
          %v5655 = vtanh.pop %v5623
          %v5656 = vtanh.pop %v5624
          %v5657 = vtanh.pop %v5625
          %v5658 = vtanh.pop %v5626
          %v5659 = vtanh.pop %v5627
          %v5660 = vtanh.pop %v5628
          %v5661 = vtanh.pop %v5629
          %v5662 = vtanh.pop %v5630
          %v5663 = vtanh.pop %v5631
          %v5664 = vtanh.pop %v5632
          %v5665 = vtanh.pop %v5633
          %v5666 = vtanh.pop %v5634
          %v5667 = vtanh.pop %v5635
          %v5668 = vtanh.pop %v5636
          %v5669 = vtanh.pop %v5637
          %5670 = vst [vmem:[%s398] sm:$0xff] %v5638
          %5671 = vst [vmem:[%s398 + $0x8] sm:$0xff] %v5639
          %5672 = vst [vmem:[%s398 + $0x10] sm:$0xff] %v5640
          %5673 = vst [vmem:[%s398 + $0x18] sm:$0xff] %v5641
          %5674 = vst [vmem:[%s398 + $0x20] sm:$0xff] %v5642
          %5675 = vst [vmem:[%s398 + $0x28] sm:$0xff] %v5643
          %5676 = vst [vmem:[%s398 + $0x30] sm:$0xff] %v5644
          %5677 = vst [vmem:[%s398 + $0x38] sm:$0xff] %v5645
          %5678 = vst [vmem:[%s398 + $0x40] sm:$0xff] %v5646
          %5679 = vst [vmem:[%s398 + $0x48] sm:$0xff] %v5647
          %5680 = vst [vmem:[%s398 + $0x50] sm:$0xff] %v5648
          %5681 = vst [vmem:[%s398 + $0x58] sm:$0xff] %v5649
          %5682 = vst [vmem:[%s398 + $0x60] sm:$0xff] %v5650
          %5683 = vst [vmem:[%s398 + $0x68] sm:$0xff] %v5651
          %5684 = vst [vmem:[%s398 + $0x70] sm:$0xff] %v5652
          %5685 = vst [vmem:[%s398 + $0x78] sm:$0xff] %v5653
          %5686 = vst [vmem:[%s398 + $0x80] sm:$0xff] %v5654
          %5687 = vst [vmem:[%s398 + $0x88] sm:$0xff] %v5655
          %5688 = vst [vmem:[%s398 + $0x90] sm:$0xff] %v5656
          %5689 = vst [vmem:[%s398 + $0x98] sm:$0xff] %v5657
          %5690 = vst [vmem:[%s398 + $0xa0] sm:$0xff] %v5658
          %5691 = vst [vmem:[%s398 + $0xa8] sm:$0xff] %v5659
          %5692 = vst [vmem:[%s398 + $0xb0] sm:$0xff] %v5660
          %5693 = vst [vmem:[%s398 + $0xb8] sm:$0xff] %v5661
          %5694 = vst [vmem:[%s398 + $0xc0] sm:$0xff] %v5662
          %5695 = vst [vmem:[%s398 + $0xc8] sm:$0xff] %v5663
          %5696 = vst [vmem:[%s398 + $0xd0] sm:$0xff] %v5664
          %5697 = vst [vmem:[%s398 + $0xd8] sm:$0xff] %v5665
          %5698 = vst [vmem:[%s398 + $0xe0] sm:$0xff] %v5666
          %5699 = vst [vmem:[%s398 + $0xe8] sm:$0xff] %v5667
          %5700 = vst [vmem:[%s398 + $0xf0] sm:$0xff] %v5668
          %5701 = vst [vmem:[%s398 + $0xf8] sm:$0xff] %v5669
        $region96: #{tpu_custom_call.1} parent=47 // pred_fallthru
          _
        %s5702 = sand.u32 %s207, 1
        %s5703 = scalar_lea.sflag [#allocation14], %s5702
        %s5704 = sand.u32 %s207, 1
        %s5705 = smul.addr %s5704, 256
        %s5706 = scalar_lea.vmem [#allocation24], %s5705
        // Predicated region
        $region101: #{tpu_custom_call.1} parent=47 // pred_check
          %p5707 = pneg %p217
        $region102: #{tpu_custom_call.1} parent=47 // pred_check_branch
          %5709 = sbr.rel (%p5707) target = $region104
        $region103: #{tpu_custom_call.1} parent=47 // pred_region
          %p5710 = scmp.eq.s32.totalorder %s31, 2
          %s5711 = scalar_select %p5710, %s32, 0
          %s5712 = smul.u32 32, %s5711
          %s5714 = ssub.s32 4096, 4096
          %5715 = vsyncadd %s5703, %s5714
          %s5716 = smul.addr %s5712, 128
          %s5717 = scalar_lea.hbm %s7, %s5716
          %s5718 = sshll.u32 %s5706, 4
          %s5719 = int_to_ptr.vmem [resolvable:$true] %s5718
          %5724 = dma.vmem_to_hbm [thread:$0]  %s5719, 4096, %s5717, %s5703, 128, 128, 8
        $region104: #{tpu_custom_call.1} parent=47 // pred_fallthru
          _
      $region48: #{tpu_custom_call.1} parent=5 // pred_fallthru
        _
      %p5725 = scmp.le.s32.totalorder 2, %s22
      // Predicated region
      $region105: #{tpu_custom_call.1} parent=5 // pred_check
        %p5726 = pneg %p5725
      $region106: #{tpu_custom_call.1} parent=5 // pred_check_branch
        %5728 = sbr.rel (%p5726) target = $region108
      $region107: #{tpu_custom_call.1} parent=5 // pred_region
        %s5729 = ssub.s32 %s22, 2
        // Predicated region
        $region109: #{tpu_custom_call.1} parent=107 // pred_check
          %p5730 = pneg %p223
        $region110: #{tpu_custom_call.1} parent=107 // pred_check_branch
          %5732 = sbr.rel (%p5730) target = $region112
        $region111: #{tpu_custom_call.1} parent=107 // pred_region
          %s5733 = sand.u32 %s208, 1
          %s5734 = scalar_lea.sflag [#allocation14], %s5733
          %s5735 = sand.u32 %s208, 1
          %s5736 = smul.addr %s5735, 256
          %s5737 = scalar_lea.vmem [#allocation24], %s5736
          %5738 = dma.done %s5734, 4096
        $region112: #{tpu_custom_call.1} parent=107 // pred_fallthru
          _
      $region108: #{tpu_custom_call.1} parent=5 // pred_fallthru
        _
    $region6: #{tpu_custom_call.1} parent=1 // loop_footer
      %s26 = sadd.s32 1, %s22
    $region7: #{tpu_custom_call.1} parent=1 // loop_footer_branch
      %21 = sbr.rel target = $region3
    $region8: #{tpu_custom_call.1} parent=1 // loop_exit
      _
    %5739 = vsyncpa [#allocation13], 1
    %s5740 = scalar_lea.sflag [#allocation13], 1
    %5741 = vsyncpa %s5740, 1
    %5742 = vsyncpa [#allocation16], 1
    %5743 = vsyncpa [#allocation19], 1
    %5744 = vsyncpa [#allocation22], 1
    %5745 = vsyncpa [#allocation14], 1
    %s5746 = scalar_lea.sflag [#allocation14], 1
    %5747 = vsyncpa %s5746, 1

</llo_original>
